<compile_context>
chip_gen: v5e
topology: v5e:2x2
jax: 0.10.0
libtpu: 0.0.40
codegen_flags: <defaults>
</compile_context>

<pallas_src>
import functools
import math

import jax
import jax.numpy as jnp
from jax.experimental import pallas as pl
from jax.experimental.pallas import tpu as pltpu


# ----------------------------------------------------------------------------
# Hardware sizing
# ----------------------------------------------------------------------------

def _tpu_vmem_capacity_bytes():
    try:
        return int(pltpu.get_tpu_info().vmem_capacity_bytes)
    except Exception:
        return 64 * 1024 * 1024  # conservative (v7x-sized) fallback


_VMEM_BYTES = _tpu_vmem_capacity_bytes()
_VMEM_LIMIT = max(32 * 1024 * 1024,
                  min(_VMEM_BYTES - 16 * 1024 * 1024, 100 * 1024 * 1024))

# Same matmul tiles on every generation (per review: do NOT shrink on v7x --
# per-step footprint ~10 MiB is far under even the 32 MiB scoped default).
_TM, _TN, _TK = 512, 1024, 512

# Residual-stream dtype.  bf16 halves activation HBM traffic; set to
# jnp.float32 for tighter parity with the fp32 PyTorch reference.
_STREAM_DTYPE = jnp.bfloat16


def _round_up(x, m):
    return ((x + m - 1) // m) * m


def _choose_tile(dim, preferred, align):
    """Pick (tile, padded_dim); tile is a multiple of `align`.

    Never degenerates to align-sized tiles (the old tm=8 failure for L=197/257)
    and never returns a huge full-dim tile: if no reasonable exact divisor
    exists the dimension is padded and the wrapper slices the result."""
    if dim <= preferred:
        t = _round_up(dim, align)
        return t, t
    floor = max(align, (preferred // 4 // align) * align)
    t = (preferred // align) * align
    while t >= floor:
        if dim % t == 0:
            return t, dim
        t -= align
    n = -(-dim // preferred)                      # cdiv
    t = _round_up(-(-dim // n), align)
    return t, t * n


def _pad_to(a, shape):
    if tuple(a.shape) == tuple(shape):
        return a
    pads = [(0, s - d) for d, s in zip(a.shape, shape)]
    return jnp.pad(a, pads)


# ----------------------------------------------------------------------------
# Generic tiled matmul (+ bias / QuickGELU / residual epilogue)
# ----------------------------------------------------------------------------

def _matmul_kernel(*refs, activation, has_bias, has_residual):
    idx = 0
    x_ref = refs[idx]; idx += 1
    w_ref = refs[idx]; idx += 1
    bias_ref = None
    res_ref = None
    if has_bias:
        bias_ref = refs[idx]; idx += 1
    if has_residual:
        res_ref = refs[idx]; idx += 1
    o_ref = refs[idx]
    acc_ref = refs[idx + 1]

    @pl.when(pl.program_id(2) == 0)
    def _():
        acc_ref[...] = jnp.zeros_like(acc_ref)

    acc_ref[...] += jnp.dot(x_ref[...], w_ref[...],
                            preferred_element_type=jnp.float32)

    @pl.when(pl.program_id(2) == pl.num_programs(2) - 1)
    def _():
        r = acc_ref[...]
        if has_bias:
            r = r + bias_ref[...]
        if activation == "quick_gelu":
            r = r * jax.nn.sigmoid(1.702 * r)
        if has_residual:
            r = r + res_ref[...].astype(jnp.float32)
        o_ref[...] = r.astype(o_ref.dtype)


def matmul_tiled(x, w, b=None, residual=None, activation=None, out_dtype=None):
    """o = act(x @ w [+ b]) [+ residual]; x:[M,K], w:[K,N] -> [M,N].

    bf16 MXU inputs, f32 VMEM accumulator.  Zero-padding of K contributes
    nothing to the sum; padded M/N rows/cols are sliced off."""
    M, K = x.shape
    K2, N = w.shape
    assert K == K2
    out_dtype = x.dtype if out_dtype is None else out_dtype
    tm, Mp = _choose_tile(M, _TM, 8)
    tn, Np = _choose_tile(N, _TN, 128)
    tk, Kp = _choose_tile(K, _TK, 128)
    has_bias = b is not None
    has_res = residual is not None

    xb = _pad_to(x.astype(jnp.bfloat16), (Mp, Kp))
    wb = _pad_to(w.astype(jnp.bfloat16), (Kp, Np))

    in_specs = [pl.BlockSpec((tm, tk), lambda i, j, k: (i, k)),
                pl.BlockSpec((tk, tn), lambda i, j, k: (k, j))]
    args = [xb, wb]
    if has_bias:
        in_specs.append(pl.BlockSpec((1, tn), lambda i, j, k: (0, j)))
        args.append(_pad_to(b.reshape(1, N).astype(jnp.float32), (1, Np)))
    if has_res:
        in_specs.append(pl.BlockSpec((tm, tn), lambda i, j, k: (i, j)))
        args.append(_pad_to(residual, (Mp, Np)))

    kern = functools.partial(_matmul_kernel, activation=activation,
                             has_bias=has_bias, has_residual=has_res)
    out = pl.pallas_call(
        kern,
        grid=(Mp // tm, Np // tn, Kp // tk),
        out_shape=jax.ShapeDtypeStruct((Mp, Np), out_dtype),
        in_specs=in_specs,
        out_specs=pl.BlockSpec((tm, tn), lambda i, j, k: (i, j)),
        scratch_shapes=[pltpu.VMEM((tm, tn), jnp.float32)],
        compiler_params=pltpu.CompilerParams(
            dimension_semantics=("parallel", "parallel", "arbitrary"),
            vmem_limit_bytes=_VMEM_LIMIT),
    )(*args)
    if (Mp, Np) != (M, N):
        out = out[:M, :N]
    return out


# ----------------------------------------------------------------------------
# Fused LayerNorm + matmul (+ bias / QuickGELU), LN cached across N-tiles
# ----------------------------------------------------------------------------

def _ln_matmul_kernel(x_ref, g_ref, bln_ref, w_ref, *rest, activation, has_bias):
    if has_bias:
        bias_ref, o_ref, xn_ref = rest
    else:
        o_ref, xn_ref = rest

    # LayerNorm (f32) computed once per row-tile (first N-tile) and cached in
    # VMEM scratch; reused for the remaining N-tiles.
    @pl.when(pl.program_id(1) == 0)
    def _():
        x = x_ref[...].astype(jnp.float32)
        mean = jnp.mean(x, axis=-1, keepdims=True)
        xc = x - mean
        var = jnp.mean(xc * xc, axis=-1, keepdims=True)
        xn = xc * jax.lax.rsqrt(var + 1e-5)
        xn = xn * g_ref[...] + bln_ref[...]
        xn_ref[...] = xn.astype(xn_ref.dtype)

    acc = jnp.dot(xn_ref[...], w_ref[...], preferred_element_type=jnp.float32)
    if has_bias:
        acc = acc + bias_ref[...]
    if activation == "quick_gelu":
        acc = acc * jax.nn.sigmoid(1.702 * acc)
    o_ref[...] = acc.astype(o_ref.dtype)


def ln_matmul(x, g, bln, w, b=None, activation=None, out_dtype=None):
    """act(LayerNorm_f32(x) @ w [+ b]); x: [M, K], w: [K, N]."""
    M, K = x.shape
    K2, N = w.shape
    assert K == K2
    out_dtype = x.dtype if out_dtype is None else out_dtype
    tm, Mp = _choose_tile(M, _TM, 8)
    tn, Np = _choose_tile(N, _TN, 128)
    has_bias = b is not None

    xp = _pad_to(x, (Mp, K))
    wb = _pad_to(w.astype(jnp.bfloat16), (K, Np))
    in_specs = [pl.BlockSpec((tm, K), lambda i, j: (i, 0)),
                pl.BlockSpec((1, K), lambda i, j: (0, 0)),
                pl.BlockSpec((1, K), lambda i, j: (0, 0)),
                pl.BlockSpec((K, tn), lambda i, j: (0, j))]
    args = [xp,
            g.reshape(1, K).astype(jnp.float32),
            bln.reshape(1, K).astype(jnp.float32),
            wb]
    if has_bias:
        in_specs.append(pl.BlockSpec((1, tn), lambda i, j: (0, j)))
        args.append(_pad_to(b.reshape(1, N).astype(jnp.float32), (1, Np)))

    kern = functools.partial(_ln_matmul_kernel, activation=activation,
                             has_bias=has_bias)
    out = pl.pallas_call(
        kern,
        grid=(Mp // tm, Np // tn),
        out_shape=jax.ShapeDtypeStruct((Mp, Np), out_dtype),
        in_specs=in_specs,
        out_specs=pl.BlockSpec((tm, tn), lambda i, j: (i, j)),
        scratch_shapes=[pltpu.VMEM((tm, K), jnp.bfloat16)],
        compiler_params=pltpu.CompilerParams(
            dimension_semantics=("parallel", "arbitrary"),
            vmem_limit_bytes=_VMEM_LIMIT),
    )(*args)
    if (Mp, Np) != (M, N):
        out = out[:M, :N]
    return out


# ----------------------------------------------------------------------------
# Positional-embedding add + ln_pre (fused), tiled over batch and sequence
# ----------------------------------------------------------------------------

def _add_pos_ln_kernel(x_ref, pos_ref, g_ref, b_ref, o_ref):
    x = x_ref[0].astype(jnp.float32) + pos_ref[...].astype(jnp.float32)
    mean = jnp.mean(x, axis=-1, keepdims=True)
    xc = x - mean
    var = jnp.mean(xc * xc, axis=-1, keepdims=True)
    y = xc * jax.lax.rsqrt(var + 1e-5) * g_ref[...] + b_ref[...]
    o_ref[0] = y.astype(o_ref.dtype)


def _seq_tile(L, preferred=256):
    t = (min(L // 2, preferred) // 8) * 8
    while t >= 64:
        if L % t == 0:
            return t
        t -= 8
    return L


def add_pos_layernorm(x, pos, g, b, out_dtype):
    """o = LayerNorm_f32(x + pos); x: [B, L, D], pos: [L, D]."""
    B, L, D = x.shape
    lt = _seq_tile(L)
    return pl.pallas_call(
        _add_pos_ln_kernel,
        grid=(B, L // lt),
        out_shape=jax.ShapeDtypeStruct((B, L, D), out_dtype),
        in_specs=[pl.BlockSpec((1, lt, D), lambda i, l: (i, l, 0)),
                  pl.BlockSpec((lt, D), lambda i, l: (l, 0)),
                  pl.BlockSpec((1, D), lambda i, l: (0, 0)),
                  pl.BlockSpec((1, D), lambda i, l: (0, 0))],
        out_specs=pl.BlockSpec((1, lt, D), lambda i, l: (i, l, 0)),
        compiler_params=pltpu.CompilerParams(
            dimension_semantics=("parallel", "parallel"),
            vmem_limit_bytes=_VMEM_LIMIT),
    )(x, pos.astype(jnp.float32),
      g.reshape(1, D).astype(jnp.float32), b.reshape(1, D).astype(jnp.float32))


# ----------------------------------------------------------------------------
# Attention core fused with the output projection + residual
# ----------------------------------------------------------------------------

def _head_group(n_head, head_dim):
    """Smallest head-group size G (dividing n_head) whose per-group q/k/v column
    blocks are a multiple of 128 lanes; falls back to all heads (full-D)."""
    for g in range(1, n_head + 1):
        if n_head % g == 0 and (g * head_dim) % 128 == 0:
            return g
    return n_head


def _attn_outproj_kernel(qkv_ref, wout_ref, bout_ref, res_ref, o_ref, acc_ref,
                         *, heads_per_blk, head_dim, l_valid):
    """One batch element x one head-group per grid step.

    softmax(q k^T) v per head (1/sqrt(hd) pre-folded into the Q weights),
    immediately multiplied against that head's out-projection rows and
    accumulated in a f32 [L, D] VMEM scratch; on the last head-group the bias
    and residual are added and the block is written -- the per-head attention
    output never touches HBM and no sub-128-lane stores are issued."""
    g = pl.program_id(1)

    @pl.when(g == 0)
    def _():
        acc_ref[...] = jnp.zeros_like(acc_ref)

    qkv = qkv_ref[0]                               # [L, 3*G*hd] bf16
    L = qkv.shape[0]
    gw = heads_per_blk * head_dim
    q_blk = qkv[:, 0:gw]
    k_blk = qkv[:, gw:2 * gw]
    v_blk = qkv[:, 2 * gw:3 * gw]

    key_mask = None
    if l_valid < L:                                # mask padded key tokens
        key_mask = jax.lax.broadcasted_iota(jnp.int32, (L, L), 1) < l_valid

    for i in range(heads_per_blk):                 # G is small (usually 2)
        lo, hi = i * head_dim, (i + 1) * head_dim
        q = q_blk[:, lo:hi]
        k = k_blk[:, lo:hi]
        v = v_blk[:, lo:hi]
        s = jax.lax.dot_general(q, k, (((1,), (1,)), ((), ())),
                                preferred_element_type=jnp.float32)  # [L, L]
        if key_mask is not None:
            s = jnp.where(key_mask, s, -1e30)
        s = s - jnp.max(s, axis=-1, keepdims=True)
        p = jnp.exp(s)
        p = p * pl.reciprocal(jnp.sum(p, axis=-1, keepdims=True), approx=True)
        o_h = jnp.dot(p.astype(v.dtype), v,
                      preferred_element_type=jnp.float32)            # [L, hd]
        acc_ref[...] += jnp.dot(o_h.astype(jnp.bfloat16), wout_ref[lo:hi, :],
                                preferred_element_type=jnp.float32)

    @pl.when(g == pl.num_programs(1) - 1)
    def _():
        r = acc_ref[...] + bout_ref[...] + res_ref[0].astype(jnp.float32)
        o_ref[0] = r.astype(o_ref.dtype)


def attention_outproj(qkv, residual, w_out, b_out, n_head, l_valid):
    """qkv: [B, L, 3D] packed head-group-major (see _pack_attn_in_proj),
    residual: [B, L, D].  Returns residual + out_proj(multi-head attention)."""
    B, L, three_d = qkv.shape
    D = three_d // 3
    hd = D // n_head
    grp = _head_group(n_head, hd)
    kern = functools.partial(_attn_outproj_kernel, heads_per_blk=grp,
                             head_dim=hd, l_valid=l_valid)
    return pl.pallas_call(
        kern,
        grid=(B, n_head // grp),
        out_shape=jax.ShapeDtypeStruct((B, L, D), residual.dtype),
        in_specs=[
            pl.BlockSpec((1, L, 3 * grp * hd), lambda b, g: (b, 0, g)),
            pl.BlockSpec((grp * hd, D), lambda b, g: (g, 0)),
            pl.BlockSpec((1, D), lambda b, g: (0, 0)),
            pl.BlockSpec((1, L, D), lambda b, g: (b, 0, 0)),
        ],
        out_specs=pl.BlockSpec((1, L, D), lambda b, g: (b, 0, 0)),
        scratch_shapes=[pltpu.VMEM((L, D), jnp.float32)],
        compiler_params=pltpu.CompilerParams(
            dimension_semantics=("parallel", "arbitrary"),
            vmem_limit_bytes=_VMEM_LIMIT),
    )(qkv.astype(jnp.bfloat16), w_out.astype(jnp.bfloat16),
      b_out.reshape(1, D).astype(jnp.float32), residual)


# ----------------------------------------------------------------------------
# Model (thin JAX glue; all hot paths run in the Pallas kernels above)
# ----------------------------------------------------------------------------

def residual_attention_block(x, blk, n_head, l_valid):
    """x: [B, L, D] (L padded to a multiple of 8).  Matches CLIP's
    ResidualAttentionBlock; padded key tokens are masked inside attention."""
    B, L, D = x.shape
    xf = x.reshape(B * L, D)

    # attention branch: ln_1 fused into QKV projection; out_proj + residual
    # fused into the attention kernel.
    qkv = ln_matmul(xf, blk["ln1_g"], blk["ln1_b"], blk["w_in"], blk["b_in"],
                    out_dtype=jnp.bfloat16)                       # [B*L, 3D]
    x = attention_outproj(qkv.reshape(B, L, 3 * D), x, blk["w_out"],
                          blk["b_out"], n_head, l_valid)          # [B, L, D]

    # MLP branch: ln_2 fused into c_fc (+ QuickGELU); residual fused into c_proj
    xf = x.reshape(B * L, D)
    h = ln_matmul(xf, blk["ln2_g"], blk["ln2_b"], blk["w_fc"], blk["b_fc"],
                  activation="quick_gelu", out_dtype=jnp.bfloat16)  # [B*L, 4D]
    x = matmul_tiled(h, blk["w_proj"], blk["b_proj"], residual=xf,
                     out_dtype=_STREAM_DTYPE).reshape(B, L, D)
    return x


def vision_transformer_forward(params, x, *, patch_size, heads):
    """x: [B, 3, H, W] (NCHW, like PyTorch).  Returns [B, output_dim] f32."""
    B, C, H, W = x.shape
    gh, gw = H // patch_size, W // patch_size
    width = params["cls"].shape[0]

    # conv1 (stride == kernel_size, no bias) == unfold + matmul on the MXU.
    patches = x.reshape(B, C, gh, patch_size, gw, patch_size)
    patches = patches.transpose(0, 2, 4, 1, 3, 5)
    patches = patches.reshape(B * gh * gw, C * patch_size * patch_size)
    tokens = matmul_tiled(patches, params["conv_w"], out_dtype=jnp.bfloat16)
    tokens = tokens.reshape(B, gh * gw, width)

    # class token; pad the sequence once to a multiple of 8 so downstream tiles
    # are sublane-aligned (padded tokens are masked as attention keys and never
    # read at the end); pos-add + ln_pre fused into one kernel.
    cls = jnp.broadcast_to(params["cls"].astype(tokens.dtype), (B, 1, width))
    xt = jnp.concatenate([cls, tokens], axis=1)                   # [B, L, D]
    l_valid = xt.shape[1]
    l_pad = _round_up(l_valid, 8)
    pos = params["pos"].astype(jnp.float32)
    # TODO(synk): bicubic positional-embedding resize for mismatched resolutions.
    if l_pad != l_valid:
        xt = jnp.pad(xt, ((0, 0), (0, l_pad - l_valid), (0, 0)))
        pos = jnp.pad(pos, ((0, l_pad - l_valid), (0, 0)))
    xt = add_pos_layernorm(xt, pos, params["ln_pre_g"], params["ln_pre_b"],
                           out_dtype=_STREAM_DTYPE)               # [B, Lp, D]

    # transformer (the PyTorch NLD<->LND permutes are layout-only)
    for blk in params["blocks"]:
        xt = residual_attention_block(xt, blk, heads, l_valid)

    # ln_post on the CLS token fused into the output projection
    cls_tok = xt[:, 0, :]                                         # [B, D]
    return ln_matmul(cls_tok, params["ln_post_g"], params["ln_post_b"],
                     params["proj"], out_dtype=jnp.float32)


# ----------------------------------------------------------------------------
# Parameters (synthetic).  Attention QKV weights are repacked head-group-major
# with the softmax scale folded in -- do the same when loading a checkpoint.
# ----------------------------------------------------------------------------

def _pack_attn_in_proj(w_in, b_in, n_head, head_dim, group):
    """Repack QKV in-projection for the attention kernel.

    Input: columns ordered [q|k|v] x [head] x [head_dim] (i.e. PyTorch
    in_proj_weight.T / in_proj_bias).  Output: [head_group] x [q|k|v] x
    [group*head_dim], with 1/sqrt(head_dim) folded into the Q columns/bias."""
    d3 = w_in.shape[-1]
    scale = 1.0 / math.sqrt(head_dim)

    def pack(a):
        a = a.reshape(*a.shape[:-1], 3, n_head // group, group * head_dim)
        a = a.at[..., 0, :, :].multiply(scale)
        a = jnp.swapaxes(a, -3, -2)
        return a.reshape(*a.shape[:-3], d3)

    return pack(w_in), pack(b_in)


def init_params(key, *, width, layers, heads, patch_size, output_dim, grid_size):
    scale = width ** -0.5
    head_dim = width // heads
    group = _head_group(heads, head_dim)
    keys = jax.random.split(key, 4 + layers)
    f32, bf16 = jnp.float32, jnp.bfloat16
    params = {
        # conv weight stored flattened [(C, ph, pw), width] for x @ W
        "conv_w": (jax.random.normal(keys[0], (3 * patch_size * patch_size, width), f32)
                   * 0.02).astype(bf16),
        "cls": jax.random.normal(keys[1], (width,), f32) * scale,
        "pos": jax.random.normal(keys[2], (grid_size * grid_size + 1, width), f32) * scale,
        "ln_pre_g": jnp.ones((width,), f32), "ln_pre_b": jnp.zeros((width,), f32),
        "ln_post_g": jnp.ones((width,), f32), "ln_post_b": jnp.zeros((width,), f32),
        "proj": (jax.random.normal(keys[3], (width, output_dim), f32) * scale).astype(bf16),
    }
    blocks = []
    for l in range(layers):
        k = jax.random.split(keys[4 + l], 4)
        w_in = jax.random.normal(k[0], (width, 3 * width), f32) * 0.02
        b_in = jnp.zeros((3 * width,), f32)
        w_in, b_in = _pack_attn_in_proj(w_in, b_in, heads, head_dim, group)
        blocks.append({
            "ln1_g": jnp.ones((width,), f32), "ln1_b": jnp.zeros((width,), f32),
            "ln2_g": jnp.ones((width,), f32), "ln2_b": jnp.zeros((width,), f32),
            # all matmul weights stored [in, out] (PyTorch weight.T), bf16
            "w_in": w_in.astype(bf16), "b_in": b_in,
            "w_out": (jax.random.normal(k[1], (width, width), f32) * 0.02).astype(bf16),
            "b_out": jnp.zeros((width,), f32),
            "w_fc": (jax.random.normal(k[2], (width, 4 * width), f32) * 0.02).astype(bf16),
            "b_fc": jnp.zeros((4 * width,), f32),
            "w_proj": (jax.random.normal(k[3], (4 * width, width), f32) * 0.02).astype(bf16),
            "b_proj": jnp.zeros((width,), f32),
        })
    params["blocks"] = blocks
    return params


# ----------------------------------------------------------------------------
# Pure-JAX f32 reference (sanity check of the Pallas path)
# ----------------------------------------------------------------------------

def _reference_forward(params, x, *, patch_size, heads):
    f32 = jnp.float32

    def ln(v, g, b):
        m = jnp.mean(v, axis=-1, keepdims=True)
        c = v - m
        var = jnp.mean(c * c, axis=-1, keepdims=True)
        return c * jax.lax.rsqrt(var + 1e-5) * g + b

    B, C, H, W = x.shape
    gh, gw = H // patch_size, W // patch_size
    width = params["cls"].shape[0]
    patches = x.reshape(B, C, gh, patch_size, gw, patch_size)
    patches = patches.transpose(0, 2, 4, 1, 3, 5).reshape(B * gh * gw, -1)
    tokens = (patches @ params["conv_w"].astype(f32)).reshape(B, gh * gw, width)
    cls = jnp.broadcast_to(params["cls"], (B, 1, width))
    xt = jnp.concatenate([cls, tokens], axis=1)
    xt = ln(xt + params["pos"].astype(f32), params["ln_pre_g"], params["ln_pre_b"])

    head_dim = width // heads
    group = _head_group(heads, head_dim)
    for blk in params["blocks"]:
        xn = ln(xt, blk["ln1_g"], blk["ln1_b"])
        qkv = xn @ blk["w_in"].astype(f32) + blk["b_in"]
        L = qkv.shape[1]
        qkv = qkv.reshape(B, L, heads // group, 3, group, head_dim)
        q = qkv[:, :, :, 0].reshape(B, L, heads, head_dim).transpose(0, 2, 1, 3)
        k = qkv[:, :, :, 1].reshape(B, L, heads, head_dim).transpose(0, 2, 1, 3)
        v = qkv[:, :, :, 2].reshape(B, L, heads, head_dim).transpose(0, 2, 1, 3)
        s = jnp.einsum("bhqd,bhkd->bhqk", q, k)   # scale already folded into Q
        p = jax.nn.softmax(s, axis=-1)
        o = jnp.einsum("bhqk,bhkd->bhqd", p, v)
        o = o.transpose(0, 2, 1, 3).reshape(B, L, width)
        xt = xt + o @ blk["w_out"].astype(f32) + blk["b_out"]
        xn = ln(xt, blk["ln2_g"], blk["ln2_b"])
        h = xn @ blk["w_fc"].astype(f32) + blk["b_fc"]
        h = h * jax.nn.sigmoid(1.702 * h)
        xt = xt + h @ blk["w_proj"].astype(f32) + blk["b_proj"]
    cls_tok = ln(xt[:, 0, :], params["ln_post_g"], params["ln_post_b"])
    return cls_tok @ params["proj"].astype(f32)


if __name__ == "__main__":
    # Small config consistent with the module: 16x16 images, 4x4 patches,
    # width=32, 2 layers, 2 heads, output_dim=16.
    input_resolution = 16
    patch_size = 4
    width = 32
    layers = 2
    heads = 2
    output_dim = 16
    batch = 2
    grid_size = input_resolution // patch_size

    key = jax.random.PRNGKey(0)
    pkey, xkey = jax.random.split(key)
    params = init_params(pkey, width=width, layers=layers, heads=heads,
                         patch_size=patch_size, output_dim=output_dim,
                         grid_size=grid_size)
    x = jax.random.normal(xkey, (batch, 3, input_resolution, input_resolution),
                          jnp.float32)

    fwd = jax.jit(functools.partial(vision_transformer_forward,
                                    patch_size=patch_size, heads=heads))
    out = jax.block_until_ready(fwd(params, x))
    assert out.shape == (batch, output_dim), out.shape
    assert jnp.all(jnp.isfinite(out))

    # loose sanity check vs a pure-JAX f32 reference (stream runs in bf16)
    ref = _reference_forward(params, x, patch_size=patch_size, heads=heads)
    err = float(jnp.max(jnp.abs(out - ref)))
    assert err < 0.2, f"max abs err vs reference: {err}"
    print("KERNEL_OK")
</pallas_src>

<mosaic_0001>
module attributes {stable_mosaic.version = 11 : i64} {
  func.func @_matmul_kernel(%arg0: i32, %arg1: i32, %arg2: i32, %arg3: memref<32x128xbf16, #tpu.memory_space<vmem>>, %arg4: memref<128x128xbf16, #tpu.memory_space<vmem>>, %arg5: memref<32x128xbf16, #tpu.memory_space<vmem>>, %arg6: memref<32x128xf32, #tpu.memory_space<vmem>>) attributes {dimension_semantics = [#tpu.dimension_semantics<parallel>, #tpu.dimension_semantics<parallel>, #tpu.dimension_semantics<arbitrary>], iteration_bounds = array<i64: 1, 1, 1>, scalar_prefetch = 0 : i64, scratch_operands = 1 : i64, tpu.core_type = #tpu.core_type<tc>, window_params = [{transform_indices = @transform_0, window_bounds = array<i64: 32, 128>}, {transform_indices = @transform_1, window_bounds = array<i64: 128, 128>}, {transform_indices = @transform_2, window_bounds = array<i64: 32, 128>}]} {
    %c0_i32 = arith.constant 0 : i32
    %0 = arith.cmpi eq, %arg2, %c0_i32 : i32
    %1 = arith.extui %0 : i1 to i32
    %c0_i32_0 = arith.constant 0 : i32
    %2 = arith.cmpi ne, %1, %c0_i32_0 : i32
    scf.if %2 {
      %cst_10 = arith.constant 0.000000e+00 : f32
      %12 = vector.broadcast %cst_10 : f32 to vector<32x128xf32>
      %c0_11 = arith.constant 0 : index
      %c0_12 = arith.constant 0 : index
      %13 = vector.load %arg6[%c0_11, %c0_12] : memref<32x128xf32, #tpu.memory_space<vmem>>, vector<32x128xf32>
      tpu.vector_store %arg6[%c0_11, %c0_12], %12 {strides = array<i32>} : memref<32x128xf32, #tpu.memory_space<vmem>>, vector<32x128xf32>,
    } else {
    }
    %c0 = arith.constant 0 : index
    %c0_1 = arith.constant 0 : index
    %3 = vector.load %arg6[%c0, %c0_1] : memref<32x128xf32, #tpu.memory_space<vmem>>, vector<32x128xf32>
    %c0_2 = arith.constant 0 : index
    %c0_3 = arith.constant 0 : index
    %4 = vector.load %arg3[%c0_2, %c0_3] : memref<32x128xbf16, #tpu.memory_space<vmem>>, vector<32x128xbf16>
    %c0_4 = arith.constant 0 : index
    %c0_5 = arith.constant 0 : index
    %5 = vector.load %arg4[%c0_4, %c0_5] : memref<128x128xbf16, #tpu.memory_space<vmem>>, vector<128x128xbf16>
    %cst = arith.constant dense<0.000000e+00> : vector<32x128xf32>
    %6 = tpu.matmul %4, %5, %cst {dimension_numbers = #tpu.dot_dimension_numbers<[1], [0], [0], [1], [0, 0, 1, 1], [], []>} : vector<32x128xbf16>, vector<128x128xbf16>, vector<32x128xf32> -> vector<32x128xf32>
    %7 = arith.addf %3, %6 : vector<32x128xf32>
    %c0_6 = arith.constant 0 : index
    %c0_7 = arith.constant 0 : index
    %8 = vector.load %arg6[%c0_6, %c0_7] : memref<32x128xf32, #tpu.memory_space<vmem>>, vector<32x128xf32>
    tpu.vector_store %arg6[%c0_6, %c0_7], %7 {strides = array<i32>} : memref<32x128xf32, #tpu.memory_space<vmem>>, vector<32x128xf32>,
    %c0_i32_8 = arith.constant 0 : i32
    %9 = arith.cmpi eq, %arg2, %c0_i32_8 : i32
    %10 = arith.extui %9 : i1 to i32
    %c0_i32_9 = arith.constant 0 : i32
    %11 = arith.cmpi ne, %10, %c0_i32_9 : i32
    scf.if %11 {
      %c0_10 = arith.constant 0 : index
      %c0_11 = arith.constant 0 : index
      %12 = vector.load %arg6[%c0_10, %c0_11] : memref<32x128xf32, #tpu.memory_space<vmem>>, vector<32x128xf32>
      %13 = arith.truncf %12 : vector<32x128xf32> to vector<32x128xbf16>
      %c0_12 = arith.constant 0 : index
      %c0_13 = arith.constant 0 : index
      %14 = vector.load %arg5[%c0_12, %c0_13] : memref<32x128xbf16, #tpu.memory_space<vmem>>, vector<32x128xbf16>
      tpu.vector_store %arg5[%c0_12, %c0_13], %13 {strides = array<i32>} : memref<32x128xbf16, #tpu.memory_space<vmem>>, vector<32x128xbf16>,
    } else {
    }
    return
  }
  func.func @transform_0(%arg0: i32, %arg1: i32, %arg2: i32) -> (i32, i32) {
    %c0_i32 = arith.constant 0 : i32
    return %arg0, %arg2 : i32, i32
  }
  func.func @transform_1(%arg0: i32, %arg1: i32, %arg2: i32) -> (i32, i32) {
    %c0_i32 = arith.constant 0 : i32
    return %arg2, %arg1 : i32, i32
  }
  func.func @transform_2(%arg0: i32, %arg1: i32, %arg2: i32) -> (i32, i32) {
    %c0_i32 = arith.constant 0 : i32
    return %arg0, %arg1 : i32, i32
  }
}

module attributes {stable_mosaic.version = 11 : i64} {
  func.func @_add_pos_ln_kernel(%arg0: i32, %arg1: i32, %arg2: memref<1x24x32xbf16, #tpu.memory_space<vmem>>, %arg3: memref<24x32xf32, #tpu.memory_space<vmem>>, %arg4: memref<1x32xf32, #tpu.memory_space<vmem>>, %arg5: memref<1x32xf32, #tpu.memory_space<vmem>>, %arg6: memref<1x24x32xbf16, #tpu.memory_space<vmem>>) attributes {dimension_semantics = [#tpu.dimension_semantics<parallel>, #tpu.dimension_semantics<parallel>], iteration_bounds = array<i64: 2, 1>, scalar_prefetch = 0 : i64, scratch_operands = 0 : i64, tpu.core_type = #tpu.core_type<tc>, window_params = [{transform_indices = @transform_0, window_bounds = array<i64: 1, 24, 32>}, {transform_indices = @transform_1, window_bounds = array<i64: 24, 32>}, {pipeline_mode = #tpu.pipeline_mode<synchronous>, transform_indices = @transform_2, window_bounds = array<i64: 1, 32>}, {pipeline_mode = #tpu.pipeline_mode<synchronous>, transform_indices = @transform_3, window_bounds = array<i64: 1, 32>}, {transform_indices = @transform_4, window_bounds = array<i64: 1, 24, 32>}]} {
    %c0 = arith.constant 0 : index
    %c0_0 = arith.constant 0 : index
    %c0_1 = arith.constant 0 : index
    %0 = vector.load %arg2[%c0, %c0_0, %c0_1] : memref<1x24x32xbf16, #tpu.memory_space<vmem>>, vector<1x24x32xbf16>
    %1 = vector.shape_cast %0 : vector<1x24x32xbf16> to vector<24x32xbf16>
    %2 = arith.extf %1 : vector<24x32xbf16> to vector<24x32xf32>
    %c0_2 = arith.constant 0 : index
    %c0_3 = arith.constant 0 : index
    %3 = vector.load %arg3[%c0_2, %c0_3] : memref<24x32xf32, #tpu.memory_space<vmem>>, vector<24x32xf32>
    %4 = arith.addf %2, %3 : vector<24x32xf32>
    %cst = arith.constant dense<0.000000e+00> : vector<24xf32>
    %5 = vector.multi_reduction <add>, %4, %cst [1] : vector<24x32xf32> to vector<24xf32>
    %6 = vector.shape_cast %5 : vector<24xf32> to vector<24x1xf32>
    %cst_4 = arith.constant 3.200000e+01 : f32
    %7 = vector.broadcast %cst_4 : f32 to vector<24x1xf32>
    %8 = arith.divf %6, %7 : vector<24x1xf32>
    %9 = vector.broadcast %8 : vector<24x1xf32> to vector<24x32xf32>
    %10 = arith.subf %4, %9 : vector<24x32xf32>
    %11 = arith.mulf %10, %10 : vector<24x32xf32>
    %cst_5 = arith.constant dense<0.000000e+00> : vector<24xf32>
    %12 = vector.multi_reduction <add>, %11, %cst_5 [1] : vector<24x32xf32> to vector<24xf32>
    %13 = vector.shape_cast %12 : vector<24xf32> to vector<24x1xf32>
    %cst_6 = arith.constant 3.200000e+01 : f32
    %14 = vector.broadcast %cst_6 : f32 to vector<24x1xf32>
    %15 = arith.divf %13, %14 : vector<24x1xf32>
    %cst_7 = arith.constant 9.99999974E-6 : f32
    %16 = vector.broadcast %cst_7 : f32 to vector<24x1xf32>
    %17 = arith.addf %15, %16 : vector<24x1xf32>
    %18 = math.rsqrt %17 : vector<24x1xf32>
    %19 = vector.broadcast %18 : vector<24x1xf32> to vector<24x32xf32>
    %20 = arith.mulf %10, %19 : vector<24x32xf32>
    %c0_8 = arith.constant 0 : index
    %c0_9 = arith.constant 0 : index
    %21 = vector.load %arg4[%c0_8, %c0_9] : memref<1x32xf32, #tpu.memory_space<vmem>>, vector<1x32xf32>
    %22 = vector.broadcast %21 : vector<1x32xf32> to vector<24x32xf32>
    %23 = arith.mulf %20, %22 : vector<24x32xf32>
    %c0_10 = arith.constant 0 : index
    %c0_11 = arith.constant 0 : index
    %24 = vector.load %arg5[%c0_10, %c0_11] : memref<1x32xf32, #tpu.memory_space<vmem>>, vector<1x32xf32>
    %25 = vector.broadcast %24 : vector<1x32xf32> to vector<24x32xf32>
    %26 = arith.addf %23, %25 : vector<24x32xf32>
    %27 = arith.truncf %26 : vector<24x32xf32> to vector<24x32xbf16>
    %c0_12 = arith.constant 0 : index
    %c0_13 = arith.constant 0 : index
    %c0_14 = arith.constant 0 : index
    %28 = vector.load %arg6[%c0_12, %c0_13, %c0_14] : memref<1x24x32xbf16, #tpu.memory_space<vmem>>, vector<1x24x32xbf16>
    %29 = vector.shape_cast %28 : vector<1x24x32xbf16> to vector<24x32xbf16>
    %30 = vector.shape_cast %27 : vector<24x32xbf16> to vector<1x24x32xbf16>
    tpu.vector_store %arg6[%c0_12, %c0_13, %c0_14], %30 {strides = array<i32>} : memref<1x24x32xbf16, #tpu.memory_space<vmem>>, vector<1x24x32xbf16>,
    return
  }
  func.func @transform_0(%arg0: i32, %arg1: i32) -> (i32, i32, i32) {
    %c0_i32 = arith.constant 0 : i32
    %c0_i32_0 = arith.constant 0 : i32
    return %arg0, %arg1, %c0_i32 : i32, i32, i32
  }
  func.func @transform_1(%arg0: i32, %arg1: i32) -> (i32, i32) {
    %c0_i32 = arith.constant 0 : i32
    %c0_i32_0 = arith.constant 0 : i32
    return %arg1, %c0_i32 : i32, i32
  }
  func.func @transform_2(%arg0: i32, %arg1: i32) -> (i32, i32) {
    %c0_i32 = arith.constant 0 : i32
    %c0_i32_0 = arith.constant 0 : i32
    %c0_i32_1 = arith.constant 0 : i32
    return %c0_i32, %c0_i32_0 : i32, i32
  }
  func.func @transform_3(%arg0: i32, %arg1: i32) -> (i32, i32) {
    %c0_i32 = arith.constant 0 : i32
    %c0_i32_0 = arith.constant 0 : i32
    %c0_i32_1 = arith.constant 0 : i32
    return %c0_i32, %c0_i32_0 : i32, i32
  }
  func.func @transform_4(%arg0: i32, %arg1: i32) -> (i32, i32, i32) {
    %c0_i32 = arith.constant 0 : i32
    %c0_i32_0 = arith.constant 0 : i32
    return %arg0, %arg1, %c0_i32 : i32, i32, i32
  }
}

module attributes {stable_mosaic.version = 11 : i64} {
  func.func @_attn_outproj_kernel(%arg0: i32, %arg1: i32, %arg2: memref<1x24x96xbf16, #tpu.memory_space<vmem>>, %arg3: memref<32x32xbf16, #tpu.memory_space<vmem>>, %arg4: memref<1x32xf32, #tpu.memory_space<vmem>>, %arg5: memref<1x24x32xbf16, #tpu.memory_space<vmem>>, %arg6: memref<1x24x32xbf16, #tpu.memory_space<vmem>>, %arg7: memref<24x32xf32, #tpu.memory_space<vmem>>) attributes {dimension_semantics = [#tpu.dimension_semantics<parallel>, #tpu.dimension_semantics<arbitrary>], iteration_bounds = array<i64: 2, 1>, scalar_prefetch = 0 : i64, scratch_operands = 1 : i64, tpu.core_type = #tpu.core_type<tc>, window_params = [{transform_indices = @transform_0, window_bounds = array<i64: 1, 24, 96>}, {transform_indices = @transform_1, window_bounds = array<i64: 32, 32>}, {pipeline_mode = #tpu.pipeline_mode<synchronous>, transform_indices = @transform_2, window_bounds = array<i64: 1, 32>}, {transform_indices = @transform_3, window_bounds = array<i64: 1, 24, 32>}, {transform_indices = @transform_4, window_bounds = array<i64: 1, 24, 32>}]} {
    %c0_i32 = arith.constant 0 : i32
    %0 = arith.cmpi eq, %arg1, %c0_i32 : i32
    %1 = arith.extui %0 : i1 to i32
    %c0_i32_0 = arith.constant 0 : i32
    %2 = arith.cmpi ne, %1, %c0_i32_0 : i32
    scf.if %2 {
      %cst_27 = arith.constant 0.000000e+00 : f32
      %62 = vector.broadcast %cst_27 : f32 to vector<24x32xf32>
      %c0_28 = arith.constant 0 : index
      %c0_29 = arith.constant 0 : index
      %63 = vector.load %arg7[%c0_28, %c0_29] : memref<24x32xf32, #tpu.memory_space<vmem>>, vector<24x32xf32>
      tpu.vector_store %arg7[%c0_28, %c0_29], %62 {strides = array<i32>} : memref<24x32xf32, #tpu.memory_space<vmem>>, vector<24x32xf32>,
    } else {
    }
    %c0 = arith.constant 0 : index
    %c0_1 = arith.constant 0 : index
    %c0_2 = arith.constant 0 : index
    %3 = vector.load %arg2[%c0, %c0_1, %c0_2] : memref<1x24x96xbf16, #tpu.memory_space<vmem>>, vector<1x24x96xbf16>
    %4 = vector.shape_cast %3 : vector<1x24x96xbf16> to vector<24x96xbf16>
    %5 = vector.extract_strided_slice %4 {offsets = [0, 0], sizes = [24, 32], strides = [1, 1]} : vector<24x96xbf16> to vector<24x32xbf16>
    %6 = vector.extract_strided_slice %4 {offsets = [0, 32], sizes = [24, 32], strides = [1, 1]} : vector<24x96xbf16> to vector<24x32xbf16>
    %7 = vector.extract_strided_slice %4 {offsets = [0, 64], sizes = [24, 32], strides = [1, 1]} : vector<24x96xbf16> to vector<24x32xbf16>
    %8 = tpu.iota {dimensions = array<i32: 1>} : vector<24x24xi32>
    %c17_i32 = arith.constant 17 : i32
    %9 = vector.broadcast %c17_i32 : i32 to vector<24x24xi32>
    %10 = arith.cmpi slt, %8, %9 : vector<24x24xi32>
    %11 = vector.extract_strided_slice %5 {offsets = [0, 0], sizes = [24, 16], strides = [1, 1]} : vector<24x32xbf16> to vector<24x16xbf16>
    %12 = vector.extract_strided_slice %6 {offsets = [0, 0], sizes = [24, 16], strides = [1, 1]} : vector<24x32xbf16> to vector<24x16xbf16>
    %13 = vector.extract_strided_slice %7 {offsets = [0, 0], sizes = [24, 16], strides = [1, 1]} : vector<24x32xbf16> to vector<24x16xbf16>
    %cst = arith.constant dense<0.000000e+00> : vector<24x24xf32>
    %14 = tpu.matmul %11, %12, %cst {dimension_numbers = #tpu.dot_dimension_numbers<[1], [1], [0], [0], [0, 0, 1, 0], [], []>} : vector<24x16xbf16>, vector<24x16xbf16>, vector<24x24xf32> -> vector<24x24xf32>
    %cst_3 = arith.constant -1.000000e+30 : f32
    %15 = vector.broadcast %cst_3 : f32 to vector<24x24xf32>
    %16 = arith.select %10, %14, %15 : vector<24x24xi1>, vector<24x24xf32>
    %cst_4 = arith.constant dense<0xFF800000> : vector<24xf32>
    %17 = vector.multi_reduction <maximumf>, %16, %cst_4 [1] : vector<24x24xf32> to vector<24xf32>
    %18 = vector.shape_cast %17 : vector<24xf32> to vector<24x1xf32>
    %19 = vector.broadcast %18 : vector<24x1xf32> to vector<24x24xf32>
    %20 = arith.subf %16, %19 : vector<24x24xf32>
    %21 = math.exp %20 : vector<24x24xf32>
    %cst_5 = arith.constant dense<0.000000e+00> : vector<24xf32>
    %22 = vector.multi_reduction <add>, %21, %cst_5 [1] : vector<24x24xf32> to vector<24xf32>
    %23 = vector.shape_cast %22 : vector<24xf32> to vector<24x1xf32>
    %24 = tpu.reciprocal %23 {approx = true} : vector<24x1xf32> -> vector<24x1xf32>
    %25 = vector.broadcast %24 : vector<24x1xf32> to vector<24x24xf32>
    %26 = arith.mulf %21, %25 : vector<24x24xf32>
    %27 = arith.truncf %26 : vector<24x24xf32> to vector<24x24xbf16>
    %cst_6 = arith.constant dense<0.000000e+00> : vector<24x16xf32>
    %28 = tpu.matmul %27, %13, %cst_6 {dimension_numbers = #tpu.dot_dimension_numbers<[1], [0], [0], [1], [0, 0, 1, 1], [], []>} : vector<24x24xbf16>, vector<24x16xbf16>, vector<24x16xf32> -> vector<24x16xf32>
    %c0_7 = arith.constant 0 : index
    %c0_8 = arith.constant 0 : index
    %29 = vector.load %arg7[%c0_7, %c0_8] : memref<24x32xf32, #tpu.memory_space<vmem>>, vector<24x32xf32>
    %30 = arith.truncf %28 : vector<24x16xf32> to vector<24x16xbf16>
    %c0_9 = arith.constant 0 : index
    %c0_10 = arith.constant 0 : index
    %31 = vector.load %arg3[%c0_9, %c0_10] : memref<32x32xbf16, #tpu.memory_space<vmem>>, vector<16x32xbf16>
    %cst_11 = arith.constant dense<0.000000e+00> : vector<24x32xf32>
    %32 = tpu.matmul %30, %31, %cst_11 {dimension_numbers = #tpu.dot_dimension_numbers<[1], [0], [0], [1], [0, 0, 1, 1], [], []>} : vector<24x16xbf16>, vector<16x32xbf16>, vector<24x32xf32> -> vector<24x32xf32>
    %33 = arith.addf %29, %32 : vector<24x32xf32>
    %c0_12 = arith.constant 0 : index
    %c0_13 = arith.constant 0 : index
    %34 = vector.load %arg7[%c0_12, %c0_13] : memref<24x32xf32, #tpu.memory_space<vmem>>, vector<24x32xf32>
    tpu.vector_store %arg7[%c0_12, %c0_13], %33 {strides = array<i32>} : memref<24x32xf32, #tpu.memory_space<vmem>>, vector<24x32xf32>,
    %35 = vector.extract_strided_slice %5 {offsets = [0, 16], sizes = [24, 16], strides = [1, 1]} : vector<24x32xbf16> to vector<24x16xbf16>
    %36 = vector.extract_strided_slice %6 {offsets = [0, 16], sizes = [24, 16], strides = [1, 1]} : vector<24x32xbf16> to vector<24x16xbf16>
    %37 = vector.extract_strided_slice %7 {offsets = [0, 16], sizes = [24, 16], strides = [1, 1]} : vector<24x32xbf16> to vector<24x16xbf16>
    %cst_14 = arith.constant dense<0.000000e+00> : vector<24x24xf32>
    %38 = tpu.matmul %35, %36, %cst_14 {dimension_numbers = #tpu.dot_dimension_numbers<[1], [1], [0], [0], [0, 0, 1, 0], [], []>} : vector<24x16xbf16>, vector<24x16xbf16>, vector<24x24xf32> -> vector<24x24xf32>
    %cst_15 = arith.constant -1.000000e+30 : f32
    %39 = vector.broadcast %cst_15 : f32 to vector<24x24xf32>
    %40 = arith.select %10, %38, %39 : vector<24x24xi1>, vector<24x24xf32>
    %cst_16 = arith.constant dense<0xFF800000> : vector<24xf32>
    %41 = vector.multi_reduction <maximumf>, %40, %cst_16 [1] : vector<24x24xf32> to vector<24xf32>
    %42 = vector.shape_cast %41 : vector<24xf32> to vector<24x1xf32>
    %43 = vector.broadcast %42 : vector<24x1xf32> to vector<24x24xf32>
    %44 = arith.subf %40, %43 : vector<24x24xf32>
    %45 = math.exp %44 : vector<24x24xf32>
    %cst_17 = arith.constant dense<0.000000e+00> : vector<24xf32>
    %46 = vector.multi_reduction <add>, %45, %cst_17 [1] : vector<24x24xf32> to vector<24xf32>
    %47 = vector.shape_cast %46 : vector<24xf32> to vector<24x1xf32>
    %48 = tpu.reciprocal %47 {approx = true} : vector<24x1xf32> -> vector<24x1xf32>
    %49 = vector.broadcast %48 : vector<24x1xf32> to vector<24x24xf32>
    %50 = arith.mulf %45, %49 : vector<24x24xf32>
    %51 = arith.truncf %50 : vector<24x24xf32> to vector<24x24xbf16>
    %cst_18 = arith.constant dense<0.000000e+00> : vector<24x16xf32>
    %52 = tpu.matmul %51, %37, %cst_18 {dimension_numbers = #tpu.dot_dimension_numbers<[1], [0], [0], [1], [0, 0, 1, 1], [], []>} : vector<24x24xbf16>, vector<24x16xbf16>, vector<24x16xf32> -> vector<24x16xf32>
    %c0_19 = arith.constant 0 : index
    %c0_20 = arith.constant 0 : index
    %53 = vector.load %arg7[%c0_19, %c0_20] : memref<24x32xf32, #tpu.memory_space<vmem>>, vector<24x32xf32>
    %54 = arith.truncf %52 : vector<24x16xf32> to vector<24x16xbf16>
    %c16 = arith.constant 16 : index
    %c0_21 = arith.constant 0 : index
    %55 = vector.load %arg3[%c16, %c0_21] : memref<32x32xbf16, #tpu.memory_space<vmem>>, vector<16x32xbf16>
    %cst_22 = arith.constant dense<0.000000e+00> : vector<24x32xf32>
    %56 = tpu.matmul %54, %55, %cst_22 {dimension_numbers = #tpu.dot_dimension_numbers<[1], [0], [0], [1], [0, 0, 1, 1], [], []>} : vector<24x16xbf16>, vector<16x32xbf16>, vector<24x32xf32> -> vector<24x32xf32>
    %57 = arith.addf %53, %56 : vector<24x32xf32>
    %c0_23 = arith.constant 0 : index
    %c0_24 = arith.constant 0 : index
    %58 = vector.load %arg7[%c0_23, %c0_24] : memref<24x32xf32, #tpu.memory_space<vmem>>, vector<24x32xf32>
    tpu.vector_store %arg7[%c0_23, %c0_24], %57 {strides = array<i32>} : memref<24x32xf32, #tpu.memory_space<vmem>>, vector<24x32xf32>,
    %c0_i32_25 = arith.constant 0 : i32
    %59 = arith.cmpi eq, %arg1, %c0_i32_25 : i32
    %60 = arith.extui %59 : i1 to i32
    %c0_i32_26 = arith.constant 0 : i32
    %61 = arith.cmpi ne, %60, %c0_i32_26 : i32
    scf.if %61 {
      %c0_27 = arith.constant 0 : index
      %c0_28 = arith.constant 0 : index
      %62 = vector.load %arg7[%c0_27, %c0_28] : memref<24x32xf32, #tpu.memory_space<vmem>>, vector<24x32xf32>
      %c0_29 = arith.constant 0 : index
      %c0_30 = arith.constant 0 : index
      %63 = vector.load %arg4[%c0_29, %c0_30] : memref<1x32xf32, #tpu.memory_space<vmem>>, vector<1x32xf32>
      %64 = vector.broadcast %63 : vector<1x32xf32> to vector<24x32xf32>
      %65 = arith.addf %62, %64 : vector<24x32xf32>
      %c0_31 = arith.constant 0 : index
      %c0_32 = arith.constant 0 : index
      %c0_33 = arith.constant 0 : index
      %66 = vector.load %arg5[%c0_31, %c0_32, %c0_33] : memref<1x24x32xbf16, #tpu.memory_space<vmem>>, vector<1x24x32xbf16>
      %67 = vector.shape_cast %66 : vector<1x24x32xbf16> to vector<24x32xbf16>
      %68 = arith.extf %67 : vector<24x32xbf16> to vector<24x32xf32>
      %69 = arith.addf %65, %68 : vector<24x32xf32>
      %70 = arith.truncf %69 : vector<24x32xf32> to vector<24x32xbf16>
      %c0_34 = arith.constant 0 : index
      %c0_35 = arith.constant 0 : index
      %c0_36 = arith.constant 0 : index
      %71 = vector.load %arg6[%c0_34, %c0_35, %c0_36] : memref<1x24x32xbf16, #tpu.memory_space<vmem>>, vector<1x24x32xbf16>
      %72 = vector.shape_cast %71 : vector<1x24x32xbf16> to vector<24x32xbf16>
      %73 = vector.shape_cast %70 : vector<24x32xbf16> to vector<1x24x32xbf16>
      tpu.vector_store %arg6[%c0_34, %c0_35, %c0_36], %73 {strides = array<i32>} : memref<1x24x32xbf16, #tpu.memory_space<vmem>>, vector<1x24x32xbf16>,
    } else {
    }
    return
  }
  func.func @transform_0(%arg0: i32, %arg1: i32) -> (i32, i32, i32) {
    %c0_i32 = arith.constant 0 : i32
    %c0_i32_0 = arith.constant 0 : i32
    return %arg0, %c0_i32, %arg1 : i32, i32, i32
  }
  func.func @transform_1(%arg0: i32, %arg1: i32) -> (i32, i32) {
    %c0_i32 = arith.constant 0 : i32
    %c0_i32_0 = arith.constant 0 : i32
    return %arg1, %c0_i32 : i32, i32
  }
  func.func @transform_2(%arg0: i32, %arg1: i32) -> (i32, i32) {
    %c0_i32 = arith.constant 0 : i32
    %c0_i32_0 = arith.constant 0 : i32
    %c0_i32_1 = arith.constant 0 : i32
    return %c0_i32, %c0_i32_0 : i32, i32
  }
  func.func @transform_3(%arg0: i32, %arg1: i32) -> (i32, i32, i32) {
    %c0_i32 = arith.constant 0 : i32
    %c0_i32_0 = arith.constant 0 : i32
    %c0_i32_1 = arith.constant 0 : i32
    return %arg0, %c0_i32, %c0_i32_0 : i32, i32, i32
  }
  func.func @transform_4(%arg0: i32, %arg1: i32) -> (i32, i32, i32) {
    %c0_i32 = arith.constant 0 : i32
    %c0_i32_0 = arith.constant 0 : i32
    %c0_i32_1 = arith.constant 0 : i32
    return %arg0, %c0_i32, %c0_i32_0 : i32, i32, i32
  }
}

module attributes {stable_mosaic.version = 11 : i64} {
  func.func @_ln_matmul_kernel(%arg0: i32, %arg1: i32, %arg2: memref<48x32xbf16, #tpu.memory_space<vmem>>, %arg3: memref<1x32xf32, #tpu.memory_space<vmem>>, %arg4: memref<1x32xf32, #tpu.memory_space<vmem>>, %arg5: memref<32x128xbf16, #tpu.memory_space<vmem>>, %arg6: memref<1x128xf32, #tpu.memory_space<vmem>>, %arg7: memref<48x128xbf16, #tpu.memory_space<vmem>>, %arg8: memref<48x32xbf16, #tpu.memory_space<vmem>>) attributes {dimension_semantics = [#tpu.dimension_semantics<parallel>, #tpu.dimension_semantics<arbitrary>], iteration_bounds = array<i64: 1, 1>, scalar_prefetch = 0 : i64, scratch_operands = 1 : i64, tpu.core_type = #tpu.core_type<tc>, window_params = [{transform_indices = @transform_0, window_bounds = array<i64: 48, 32>}, {pipeline_mode = #tpu.pipeline_mode<synchronous>, transform_indices = @transform_1, window_bounds = array<i64: 1, 32>}, {pipeline_mode = #tpu.pipeline_mode<synchronous>, transform_indices = @transform_2, window_bounds = array<i64: 1, 32>}, {transform_indices = @transform_3, window_bounds = array<i64: 32, 128>}, {transform_indices = @transform_4, window_bounds = array<i64: 1, 128>}, {transform_indices = @transform_5, window_bounds = array<i64: 48, 128>}]} {
    %c0_i32 = arith.constant 0 : i32
    %0 = arith.cmpi eq, %arg1, %c0_i32 : i32
    %1 = arith.extui %0 : i1 to i32
    %c0_i32_0 = arith.constant 0 : i32
    %2 = arith.cmpi ne, %1, %c0_i32_0 : i32
    scf.if %2 {
      %c0_8 = arith.constant 0 : index
      %c0_9 = arith.constant 0 : index
      %11 = vector.load %arg2[%c0_8, %c0_9] : memref<48x32xbf16, #tpu.memory_space<vmem>>, vector<48x32xbf16>
      %12 = arith.extf %11 : vector<48x32xbf16> to vector<48x32xf32>
      %cst_10 = arith.constant dense<0.000000e+00> : vector<48xf32>
      %13 = vector.multi_reduction <add>, %12, %cst_10 [1] : vector<48x32xf32> to vector<48xf32>
      %14 = vector.shape_cast %13 : vector<48xf32> to vector<48x1xf32>
      %cst_11 = arith.constant 3.200000e+01 : f32
      %15 = vector.broadcast %cst_11 : f32 to vector<48x1xf32>
      %16 = arith.divf %14, %15 : vector<48x1xf32>
      %17 = vector.broadcast %16 : vector<48x1xf32> to vector<48x32xf32>
      %18 = arith.subf %12, %17 : vector<48x32xf32>
      %19 = arith.mulf %18, %18 : vector<48x32xf32>
      %cst_12 = arith.constant dense<0.000000e+00> : vector<48xf32>
      %20 = vector.multi_reduction <add>, %19, %cst_12 [1] : vector<48x32xf32> to vector<48xf32>
      %21 = vector.shape_cast %20 : vector<48xf32> to vector<48x1xf32>
      %cst_13 = arith.constant 3.200000e+01 : f32
      %22 = vector.broadcast %cst_13 : f32 to vector<48x1xf32>
      %23 = arith.divf %21, %22 : vector<48x1xf32>
      %cst_14 = arith.constant 9.99999974E-6 : f32
      %24 = vector.broadcast %cst_14 : f32 to vector<48x1xf32>
      %25 = arith.addf %23, %24 : vector<48x1xf32>
      %26 = math.rsqrt %25 : vector<48x1xf32>
      %27 = vector.broadcast %26 : vector<48x1xf32> to vector<48x32xf32>
      %28 = arith.mulf %18, %27 : vector<48x32xf32>
      %c0_15 = arith.constant 0 : index
      %c0_16 = arith.constant 0 : index
      %29 = vector.load %arg3[%c0_15, %c0_16] : memref<1x32xf32, #tpu.memory_space<vmem>>, vector<1x32xf32>
      %30 = vector.broadcast %29 : vector<1x32xf32> to vector<48x32xf32>
      %31 = arith.mulf %28, %30 : vector<48x32xf32>
      %c0_17 = arith.constant 0 : index
      %c0_18 = arith.constant 0 : index
      %32 = vector.load %arg4[%c0_17, %c0_18] : memref<1x32xf32, #tpu.memory_space<vmem>>, vector<1x32xf32>
      %33 = vector.broadcast %32 : vector<1x32xf32> to vector<48x32xf32>
      %34 = arith.addf %31, %33 : vector<48x32xf32>
      %35 = arith.truncf %34 : vector<48x32xf32> to vector<48x32xbf16>
      %c0_19 = arith.constant 0 : index
      %c0_20 = arith.constant 0 : index
      %36 = vector.load %arg8[%c0_19, %c0_20] : memref<48x32xbf16, #tpu.memory_space<vmem>>, vector<48x32xbf16>
      tpu.vector_store %arg8[%c0_19, %c0_20], %35 {strides = array<i32>} : memref<48x32xbf16, #tpu.memory_space<vmem>>, vector<48x32xbf16>,
    } else {
    }
    %c0 = arith.constant 0 : index
    %c0_1 = arith.constant 0 : index
    %3 = vector.load %arg8[%c0, %c0_1] : memref<48x32xbf16, #tpu.memory_space<vmem>>, vector<48x32xbf16>
    %c0_2 = arith.constant 0 : index
    %c0_3 = arith.constant 0 : index
    %4 = vector.load %arg5[%c0_2, %c0_3] : memref<32x128xbf16, #tpu.memory_space<vmem>>, vector<32x128xbf16>
    %cst = arith.constant dense<0.000000e+00> : vector<48x128xf32>
    %5 = tpu.matmul %3, %4, %cst {dimension_numbers = #tpu.dot_dimension_numbers<[1], [0], [0], [1], [0, 0, 1, 1], [], []>} : vector<48x32xbf16>, vector<32x128xbf16>, vector<48x128xf32> -> vector<48x128xf32>
    %c0_4 = arith.constant 0 : index
    %c0_5 = arith.constant 0 : index
    %6 = vector.load %arg6[%c0_4, %c0_5] : memref<1x128xf32, #tpu.memory_space<vmem>>, vector<1x128xf32>
    %7 = vector.broadcast %6 : vector<1x128xf32> to vector<48x128xf32>
    %8 = arith.addf %5, %7 : vector<48x128xf32>
    %9 = arith.truncf %8 : vector<48x128xf32> to vector<48x128xbf16>
    %c0_6 = arith.constant 0 : index
    %c0_7 = arith.constant 0 : index
    %10 = vector.load %arg7[%c0_6, %c0_7] : memref<48x128xbf16, #tpu.memory_space<vmem>>, vector<48x128xbf16>
    tpu.vector_store %arg7[%c0_6, %c0_7], %9 {strides = array<i32>} : memref<48x128xbf16, #tpu.memory_space<vmem>>, vector<48x128xbf16>,
    return
  }
  func.func @transform_0(%arg0: i32, %arg1: i32) -> (i32, i32) {
    %c0_i32 = arith.constant 0 : i32
    %c0_i32_0 = arith.constant 0 : i32
    return %arg0, %c0_i32 : i32, i32
  }
  func.func @transform_1(%arg0: i32, %arg1: i32) -> (i32, i32) {
    %c0_i32 = arith.constant 0 : i32
    %c0_i32_0 = arith.constant 0 : i32
    %c0_i32_1 = arith.constant 0 : i32
    return %c0_i32, %c0_i32_0 : i32, i32
  }
  func.func @transform_2(%arg0: i32, %arg1: i32) -> (i32, i32) {
    %c0_i32 = arith.constant 0 : i32
    %c0_i32_0 = arith.constant 0 : i32
    %c0_i32_1 = arith.constant 0 : i32
    return %c0_i32, %c0_i32_0 : i32, i32
  }
  func.func @transform_3(%arg0: i32, %arg1: i32) -> (i32, i32) {
    %c0_i32 = arith.constant 0 : i32
    %c0_i32_0 = arith.constant 0 : i32
    return %c0_i32, %arg1 : i32, i32
  }
  func.func @transform_4(%arg0: i32, %arg1: i32) -> (i32, i32) {
    %c0_i32 = arith.constant 0 : i32
    %c0_i32_0 = arith.constant 0 : i32
    return %c0_i32, %arg1 : i32, i32
  }
  func.func @transform_5(%arg0: i32, %arg1: i32) -> (i32, i32) {
    %c0_i32 = arith.constant 0 : i32
    return %arg0, %arg1 : i32, i32
  }
}

module attributes {stable_mosaic.version = 11 : i64} {
  func.func @_ln_matmul_kernel(%arg0: i32, %arg1: i32, %arg2: memref<48x32xbf16, #tpu.memory_space<vmem>>, %arg3: memref<1x32xf32, #tpu.memory_space<vmem>>, %arg4: memref<1x32xf32, #tpu.memory_space<vmem>>, %arg5: memref<32x128xbf16, #tpu.memory_space<vmem>>, %arg6: memref<1x128xf32, #tpu.memory_space<vmem>>, %arg7: memref<48x128xbf16, #tpu.memory_space<vmem>>, %arg8: memref<48x32xbf16, #tpu.memory_space<vmem>>) attributes {dimension_semantics = [#tpu.dimension_semantics<parallel>, #tpu.dimension_semantics<arbitrary>], iteration_bounds = array<i64: 1, 1>, scalar_prefetch = 0 : i64, scratch_operands = 1 : i64, tpu.core_type = #tpu.core_type<tc>, window_params = [{transform_indices = @transform_0, window_bounds = array<i64: 48, 32>}, {pipeline_mode = #tpu.pipeline_mode<synchronous>, transform_indices = @transform_1, window_bounds = array<i64: 1, 32>}, {pipeline_mode = #tpu.pipeline_mode<synchronous>, transform_indices = @transform_2, window_bounds = array<i64: 1, 32>}, {transform_indices = @transform_3, window_bounds = array<i64: 32, 128>}, {transform_indices = @transform_4, window_bounds = array<i64: 1, 128>}, {transform_indices = @transform_5, window_bounds = array<i64: 48, 128>}]} {
    %c0_i32 = arith.constant 0 : i32
    %0 = arith.cmpi eq, %arg1, %c0_i32 : i32
    %1 = arith.extui %0 : i1 to i32
    %c0_i32_0 = arith.constant 0 : i32
    %2 = arith.cmpi ne, %1, %c0_i32_0 : i32
    scf.if %2 {
      %c0_10 = arith.constant 0 : index
      %c0_11 = arith.constant 0 : index
      %19 = vector.load %arg2[%c0_10, %c0_11] : memref<48x32xbf16, #tpu.memory_space<vmem>>, vector<48x32xbf16>
      %20 = arith.extf %19 : vector<48x32xbf16> to vector<48x32xf32>
      %cst_12 = arith.constant dense<0.000000e+00> : vector<48xf32>
      %21 = vector.multi_reduction <add>, %20, %cst_12 [1] : vector<48x32xf32> to vector<48xf32>
      %22 = vector.shape_cast %21 : vector<48xf32> to vector<48x1xf32>
      %cst_13 = arith.constant 3.200000e+01 : f32
      %23 = vector.broadcast %cst_13 : f32 to vector<48x1xf32>
      %24 = arith.divf %22, %23 : vector<48x1xf32>
      %25 = vector.broadcast %24 : vector<48x1xf32> to vector<48x32xf32>
      %26 = arith.subf %20, %25 : vector<48x32xf32>
      %27 = arith.mulf %26, %26 : vector<48x32xf32>
      %cst_14 = arith.constant dense<0.000000e+00> : vector<48xf32>
      %28 = vector.multi_reduction <add>, %27, %cst_14 [1] : vector<48x32xf32> to vector<48xf32>
      %29 = vector.shape_cast %28 : vector<48xf32> to vector<48x1xf32>
      %cst_15 = arith.constant 3.200000e+01 : f32
      %30 = vector.broadcast %cst_15 : f32 to vector<48x1xf32>
      %31 = arith.divf %29, %30 : vector<48x1xf32>
      %cst_16 = arith.constant 9.99999974E-6 : f32
      %32 = vector.broadcast %cst_16 : f32 to vector<48x1xf32>
      %33 = arith.addf %31, %32 : vector<48x1xf32>
      %34 = math.rsqrt %33 : vector<48x1xf32>
      %35 = vector.broadcast %34 : vector<48x1xf32> to vector<48x32xf32>
      %36 = arith.mulf %26, %35 : vector<48x32xf32>
      %c0_17 = arith.constant 0 : index
      %c0_18 = arith.constant 0 : index
      %37 = vector.load %arg3[%c0_17, %c0_18] : memref<1x32xf32, #tpu.memory_space<vmem>>, vector<1x32xf32>
      %38 = vector.broadcast %37 : vector<1x32xf32> to vector<48x32xf32>
      %39 = arith.mulf %36, %38 : vector<48x32xf32>
      %c0_19 = arith.constant 0 : index
      %c0_20 = arith.constant 0 : index
      %40 = vector.load %arg4[%c0_19, %c0_20] : memref<1x32xf32, #tpu.memory_space<vmem>>, vector<1x32xf32>
      %41 = vector.broadcast %40 : vector<1x32xf32> to vector<48x32xf32>
      %42 = arith.addf %39, %41 : vector<48x32xf32>
      %43 = arith.truncf %42 : vector<48x32xf32> to vector<48x32xbf16>
      %c0_21 = arith.constant 0 : index
      %c0_22 = arith.constant 0 : index
      %44 = vector.load %arg8[%c0_21, %c0_22] : memref<48x32xbf16, #tpu.memory_space<vmem>>, vector<48x32xbf16>
      tpu.vector_store %arg8[%c0_21, %c0_22], %43 {strides = array<i32>} : memref<48x32xbf16, #tpu.memory_space<vmem>>, vector<48x32xbf16>,
    } else {
    }
    %c0 = arith.constant 0 : index
    %c0_1 = arith.constant 0 : index
    %3 = vector.load %arg8[%c0, %c0_1] : memref<48x32xbf16, #tpu.memory_space<vmem>>, vector<48x32xbf16>
    %c0_2 = arith.constant 0 : index
    %c0_3 = arith.constant 0 : index
    %4 = vector.load %arg5[%c0_2, %c0_3] : memref<32x128xbf16, #tpu.memory_space<vmem>>, vector<32x128xbf16>
    %cst = arith.constant dense<0.000000e+00> : vector<48x128xf32>
    %5 = tpu.matmul %3, %4, %cst {dimension_numbers = #tpu.dot_dimension_numbers<[1], [0], [0], [1], [0, 0, 1, 1], [], []>} : vector<48x32xbf16>, vector<32x128xbf16>, vector<48x128xf32> -> vector<48x128xf32>
    %c0_4 = arith.constant 0 : index
    %c0_5 = arith.constant 0 : index
    %6 = vector.load %arg6[%c0_4, %c0_5] : memref<1x128xf32, #tpu.memory_space<vmem>>, vector<1x128xf32>
    %7 = vector.broadcast %6 : vector<1x128xf32> to vector<48x128xf32>
    %8 = arith.addf %5, %7 : vector<48x128xf32>
    %cst_6 = arith.constant 1.702000e+00 : f32
    %9 = vector.broadcast %cst_6 : f32 to vector<48x128xf32>
    %10 = arith.mulf %9, %8 : vector<48x128xf32>
    %11 = arith.negf %10 : vector<48x128xf32>
    %12 = math.exp %11 : vector<48x128xf32>
    %cst_7 = arith.constant 1.000000e+00 : f32
    %13 = vector.broadcast %cst_7 : f32 to vector<48x128xf32>
    %14 = arith.addf %13, %12 : vector<48x128xf32>
    %15 = arith.divf %13, %14 : vector<48x128xf32>
    %16 = arith.mulf %8, %15 : vector<48x128xf32>
    %17 = arith.truncf %16 : vector<48x128xf32> to vector<48x128xbf16>
    %c0_8 = arith.constant 0 : index
    %c0_9 = arith.constant 0 : index
    %18 = vector.load %arg7[%c0_8, %c0_9] : memref<48x128xbf16, #tpu.memory_space<vmem>>, vector<48x128xbf16>
    tpu.vector_store %arg7[%c0_8, %c0_9], %17 {strides = array<i32>} : memref<48x128xbf16, #tpu.memory_space<vmem>>, vector<48x128xbf16>,
    return
  }
  func.func @transform_0(%arg0: i32, %arg1: i32) -> (i32, i32) {
    %c0_i32 = arith.constant 0 : i32
    %c0_i32_0 = arith.constant 0 : i32
    return %arg0, %c0_i32 : i32, i32
  }
  func.func @transform_1(%arg0: i32, %arg1: i32) -> (i32, i32) {
    %c0_i32 = arith.constant 0 : i32
    %c0_i32_0 = arith.constant 0 : i32
    %c0_i32_1 = arith.constant 0 : i32
    return %c0_i32, %c0_i32_0 : i32, i32
  }
  func.func @transform_2(%arg0: i32, %arg1: i32) -> (i32, i32) {
    %c0_i32 = arith.constant 0 : i32
    %c0_i32_0 = arith.constant 0 : i32
    %c0_i32_1 = arith.constant 0 : i32
    return %c0_i32, %c0_i32_0 : i32, i32
  }
  func.func @transform_3(%arg0: i32, %arg1: i32) -> (i32, i32) {
    %c0_i32 = arith.constant 0 : i32
    %c0_i32_0 = arith.constant 0 : i32
    return %c0_i32, %arg1 : i32, i32
  }
  func.func @transform_4(%arg0: i32, %arg1: i32) -> (i32, i32) {
    %c0_i32 = arith.constant 0 : i32
    %c0_i32_0 = arith.constant 0 : i32
    return %c0_i32, %arg1 : i32, i32
  }
  func.func @transform_5(%arg0: i32, %arg1: i32) -> (i32, i32) {
    %c0_i32 = arith.constant 0 : i32
    return %arg0, %arg1 : i32, i32
  }
}

module attributes {stable_mosaic.version = 11 : i64} {
  func.func @_matmul_kernel(%arg0: i32, %arg1: i32, %arg2: i32, %arg3: memref<48x128xbf16, #tpu.memory_space<vmem>>, %arg4: memref<128x128xbf16, #tpu.memory_space<vmem>>, %arg5: memref<1x128xf32, #tpu.memory_space<vmem>>, %arg6: memref<48x128xbf16, #tpu.memory_space<vmem>>, %arg7: memref<48x128xbf16, #tpu.memory_space<vmem>>, %arg8: memref<48x128xf32, #tpu.memory_space<vmem>>) attributes {dimension_semantics = [#tpu.dimension_semantics<parallel>, #tpu.dimension_semantics<parallel>, #tpu.dimension_semantics<arbitrary>], iteration_bounds = array<i64: 1, 1, 1>, scalar_prefetch = 0 : i64, scratch_operands = 1 : i64, tpu.core_type = #tpu.core_type<tc>, window_params = [{transform_indices = @transform_0, window_bounds = array<i64: 48, 128>}, {transform_indices = @transform_1, window_bounds = array<i64: 128, 128>}, {transform_indices = @transform_2, window_bounds = array<i64: 1, 128>}, {transform_indices = @transform_3, window_bounds = array<i64: 48, 128>}, {transform_indices = @transform_4, window_bounds = array<i64: 48, 128>}]} {
    %c0_i32 = arith.constant 0 : i32
    %0 = arith.cmpi eq, %arg2, %c0_i32 : i32
    %1 = arith.extui %0 : i1 to i32
    %c0_i32_0 = arith.constant 0 : i32
    %2 = arith.cmpi ne, %1, %c0_i32_0 : i32
    scf.if %2 {
      %cst_10 = arith.constant 0.000000e+00 : f32
      %12 = vector.broadcast %cst_10 : f32 to vector<48x128xf32>
      %c0_11 = arith.constant 0 : index
      %c0_12 = arith.constant 0 : index
      %13 = vector.load %arg8[%c0_11, %c0_12] : memref<48x128xf32, #tpu.memory_space<vmem>>, vector<48x128xf32>
      tpu.vector_store %arg8[%c0_11, %c0_12], %12 {strides = array<i32>} : memref<48x128xf32, #tpu.memory_space<vmem>>, vector<48x128xf32>,
    } else {
    }
    %c0 = arith.constant 0 : index
    %c0_1 = arith.constant 0 : index
    %3 = vector.load %arg8[%c0, %c0_1] : memref<48x128xf32, #tpu.memory_space<vmem>>, vector<48x128xf32>
    %c0_2 = arith.constant 0 : index
    %c0_3 = arith.constant 0 : index
    %4 = vector.load %arg3[%c0_2, %c0_3] : memref<48x128xbf16, #tpu.memory_space<vmem>>, vector<48x128xbf16>
    %c0_4 = arith.constant 0 : index
    %c0_5 = arith.constant 0 : index
    %5 = vector.load %arg4[%c0_4, %c0_5] : memref<128x128xbf16, #tpu.memory_space<vmem>>, vector<128x128xbf16>
    %cst = arith.constant dense<0.000000e+00> : vector<48x128xf32>
    %6 = tpu.matmul %4, %5, %cst {dimension_numbers = #tpu.dot_dimension_numbers<[1], [0], [0], [1], [0, 0, 1, 1], [], []>} : vector<48x128xbf16>, vector<128x128xbf16>, vector<48x128xf32> -> vector<48x128xf32>
    %7 = arith.addf %3, %6 : vector<48x128xf32>
    %c0_6 = arith.constant 0 : index
    %c0_7 = arith.constant 0 : index
    %8 = vector.load %arg8[%c0_6, %c0_7] : memref<48x128xf32, #tpu.memory_space<vmem>>, vector<48x128xf32>
    tpu.vector_store %arg8[%c0_6, %c0_7], %7 {strides = array<i32>} : memref<48x128xf32, #tpu.memory_space<vmem>>, vector<48x128xf32>,
    %c0_i32_8 = arith.constant 0 : i32
    %9 = arith.cmpi eq, %arg2, %c0_i32_8 : i32
    %10 = arith.extui %9 : i1 to i32
    %c0_i32_9 = arith.constant 0 : i32
    %11 = arith.cmpi ne, %10, %c0_i32_9 : i32
    scf.if %11 {
      %c0_10 = arith.constant 0 : index
      %c0_11 = arith.constant 0 : index
      %12 = vector.load %arg8[%c0_10, %c0_11] : memref<48x128xf32, #tpu.memory_space<vmem>>, vector<48x128xf32>
      %c0_12 = arith.constant 0 : index
      %c0_13 = arith.constant 0 : index
      %13 = vector.load %arg5[%c0_12, %c0_13] : memref<1x128xf32, #tpu.memory_space<vmem>>, vector<1x128xf32>
      %14 = vector.broadcast %13 : vector<1x128xf32> to vector<48x128xf32>
      %15 = arith.addf %12, %14 : vector<48x128xf32>
      %c0_14 = arith.constant 0 : index
      %c0_15 = arith.constant 0 : index
      %16 = vector.load %arg6[%c0_14, %c0_15] : memref<48x128xbf16, #tpu.memory_space<vmem>>, vector<48x128xbf16>
      %17 = arith.extf %16 : vector<48x128xbf16> to vector<48x128xf32>
      %18 = arith.addf %15, %17 : vector<48x128xf32>
      %19 = arith.truncf %18 : vector<48x128xf32> to vector<48x128xbf16>
      %c0_16 = arith.constant 0 : index
      %c0_17 = arith.constant 0 : index
      %20 = vector.load %arg7[%c0_16, %c0_17] : memref<48x128xbf16, #tpu.memory_space<vmem>>, vector<48x128xbf16>
      tpu.vector_store %arg7[%c0_16, %c0_17], %19 {strides = array<i32>} : memref<48x128xbf16, #tpu.memory_space<vmem>>, vector<48x128xbf16>,
    } else {
    }
    return
  }
  func.func @transform_0(%arg0: i32, %arg1: i32, %arg2: i32) -> (i32, i32) {
    %c0_i32 = arith.constant 0 : i32
    return %arg0, %arg2 : i32, i32
  }
  func.func @transform_1(%arg0: i32, %arg1: i32, %arg2: i32) -> (i32, i32) {
    %c0_i32 = arith.constant 0 : i32
    return %arg2, %arg1 : i32, i32
  }
  func.func @transform_2(%arg0: i32, %arg1: i32, %arg2: i32) -> (i32, i32) {
    %c0_i32 = arith.constant 0 : i32
    %c0_i32_0 = arith.constant 0 : i32
    return %c0_i32, %arg1 : i32, i32
  }
  func.func @transform_3(%arg0: i32, %arg1: i32, %arg2: i32) -> (i32, i32) {
    %c0_i32 = arith.constant 0 : i32
    return %arg0, %arg1 : i32, i32
  }
  func.func @transform_4(%arg0: i32, %arg1: i32, %arg2: i32) -> (i32, i32) {
    %c0_i32 = arith.constant 0 : i32
    return %arg0, %arg1 : i32, i32
  }
}

module attributes {stable_mosaic.version = 11 : i64} {
  func.func @_ln_matmul_kernel(%arg0: i32, %arg1: i32, %arg2: memref<8x32xbf16, #tpu.memory_space<vmem>>, %arg3: memref<1x32xf32, #tpu.memory_space<vmem>>, %arg4: memref<1x32xf32, #tpu.memory_space<vmem>>, %arg5: memref<32x128xbf16, #tpu.memory_space<vmem>>, %arg6: memref<8x128xf32, #tpu.memory_space<vmem>>, %arg7: memref<8x32xbf16, #tpu.memory_space<vmem>>) attributes {dimension_semantics = [#tpu.dimension_semantics<parallel>, #tpu.dimension_semantics<arbitrary>], iteration_bounds = array<i64: 1, 1>, scalar_prefetch = 0 : i64, scratch_operands = 1 : i64, tpu.core_type = #tpu.core_type<tc>, window_params = [{transform_indices = @transform_0, window_bounds = array<i64: 8, 32>}, {pipeline_mode = #tpu.pipeline_mode<synchronous>, transform_indices = @transform_1, window_bounds = array<i64: 1, 32>}, {pipeline_mode = #tpu.pipeline_mode<synchronous>, transform_indices = @transform_2, window_bounds = array<i64: 1, 32>}, {transform_indices = @transform_3, window_bounds = array<i64: 32, 128>}, {transform_indices = @transform_4, window_bounds = array<i64: 8, 128>}]} {
    %c0_i32 = arith.constant 0 : i32
    %0 = arith.cmpi eq, %arg1, %c0_i32 : i32
    %1 = arith.extui %0 : i1 to i32
    %c0_i32_0 = arith.constant 0 : i32
    %2 = arith.cmpi ne, %1, %c0_i32_0 : i32
    scf.if %2 {
      %c0_6 = arith.constant 0 : index
      %c0_7 = arith.constant 0 : index
      %7 = vector.load %arg2[%c0_6, %c0_7] : memref<8x32xbf16, #tpu.memory_space<vmem>>, vector<8x32xbf16>
      %8 = arith.extf %7 : vector<8x32xbf16> to vector<8x32xf32>
      %cst_8 = arith.constant dense<0.000000e+00> : vector<8xf32>
      %9 = vector.multi_reduction <add>, %8, %cst_8 [1] : vector<8x32xf32> to vector<8xf32>
      %10 = vector.shape_cast %9 : vector<8xf32> to vector<8x1xf32>
      %cst_9 = arith.constant 3.200000e+01 : f32
      %11 = vector.broadcast %cst_9 : f32 to vector<8x1xf32>
      %12 = arith.divf %10, %11 : vector<8x1xf32>
      %13 = vector.broadcast %12 : vector<8x1xf32> to vector<8x32xf32>
      %14 = arith.subf %8, %13 : vector<8x32xf32>
      %15 = arith.mulf %14, %14 : vector<8x32xf32>
      %cst_10 = arith.constant dense<0.000000e+00> : vector<8xf32>
      %16 = vector.multi_reduction <add>, %15, %cst_10 [1] : vector<8x32xf32> to vector<8xf32>
      %17 = vector.shape_cast %16 : vector<8xf32> to vector<8x1xf32>
      %cst_11 = arith.constant 3.200000e+01 : f32
      %18 = vector.broadcast %cst_11 : f32 to vector<8x1xf32>
      %19 = arith.divf %17, %18 : vector<8x1xf32>
      %cst_12 = arith.constant 9.99999974E-6 : f32
      %20 = vector.broadcast %cst_12 : f32 to vector<8x1xf32>
      %21 = arith.addf %19, %20 : vector<8x1xf32>
      %22 = math.rsqrt %21 : vector<8x1xf32>
      %23 = vector.broadcast %22 : vector<8x1xf32> to vector<8x32xf32>
      %24 = arith.mulf %14, %23 : vector<8x32xf32>
      %c0_13 = arith.constant 0 : index
      %c0_14 = arith.constant 0 : index
      %25 = vector.load %arg3[%c0_13, %c0_14] : memref<1x32xf32, #tpu.memory_space<vmem>>, vector<1x32xf32>
      %26 = vector.broadcast %25 : vector<1x32xf32> to vector<8x32xf32>
      %27 = arith.mulf %24, %26 : vector<8x32xf32>
      %c0_15 = arith.constant 0 : index
      %c0_16 = arith.constant 0 : index
      %28 = vector.load %arg4[%c0_15, %c0_16] : memref<1x32xf32, #tpu.memory_space<vmem>>, vector<1x32xf32>
      %29 = vector.broadcast %28 : vector<1x32xf32> to vector<8x32xf32>
      %30 = arith.addf %27, %29 : vector<8x32xf32>
      %31 = arith.truncf %30 : vector<8x32xf32> to vector<8x32xbf16>
      %c0_17 = arith.constant 0 : index
      %c0_18 = arith.constant 0 : index
      %32 = vector.load %arg7[%c0_17, %c0_18] : memref<8x32xbf16, #tpu.memory_space<vmem>>, vector<8x32xbf16>
      tpu.vector_store %arg7[%c0_17, %c0_18], %31 {strides = array<i32>} : memref<8x32xbf16, #tpu.memory_space<vmem>>, vector<8x32xbf16>,
    } else {
    }
    %c0 = arith.constant 0 : index
    %c0_1 = arith.constant 0 : index
    %3 = vector.load %arg7[%c0, %c0_1] : memref<8x32xbf16, #tpu.memory_space<vmem>>, vector<8x32xbf16>
    %c0_2 = arith.constant 0 : index
    %c0_3 = arith.constant 0 : index
    %4 = vector.load %arg5[%c0_2, %c0_3] : memref<32x128xbf16, #tpu.memory_space<vmem>>, vector<32x128xbf16>
    %cst = arith.constant dense<0.000000e+00> : vector<8x128xf32>
    %5 = tpu.matmul %3, %4, %cst {dimension_numbers = #tpu.dot_dimension_numbers<[1], [0], [0], [1], [0, 0, 1, 1], [], []>} : vector<8x32xbf16>, vector<32x128xbf16>, vector<8x128xf32> -> vector<8x128xf32>
    %c0_4 = arith.constant 0 : index
    %c0_5 = arith.constant 0 : index
    %6 = vector.load %arg6[%c0_4, %c0_5] : memref<8x128xf32, #tpu.memory_space<vmem>>, vector<8x128xf32>
    tpu.vector_store %arg6[%c0_4, %c0_5], %5 {strides = array<i32>} : memref<8x128xf32, #tpu.memory_space<vmem>>, vector<8x128xf32>,
    return
  }
  func.func @transform_0(%arg0: i32, %arg1: i32) -> (i32, i32) {
    %c0_i32 = arith.constant 0 : i32
    %c0_i32_0 = arith.constant 0 : i32
    return %arg0, %c0_i32 : i32, i32
  }
  func.func @transform_1(%arg0: i32, %arg1: i32) -> (i32, i32) {
    %c0_i32 = arith.constant 0 : i32
    %c0_i32_0 = arith.constant 0 : i32
    %c0_i32_1 = arith.constant 0 : i32
    return %c0_i32, %c0_i32_0 : i32, i32
  }
  func.func @transform_2(%arg0: i32, %arg1: i32) -> (i32, i32) {
    %c0_i32 = arith.constant 0 : i32
    %c0_i32_0 = arith.constant 0 : i32
    %c0_i32_1 = arith.constant 0 : i32
    return %c0_i32, %c0_i32_0 : i32, i32
  }
  func.func @transform_3(%arg0: i32, %arg1: i32) -> (i32, i32) {
    %c0_i32 = arith.constant 0 : i32
    %c0_i32_0 = arith.constant 0 : i32
    return %c0_i32, %arg1 : i32, i32
  }
  func.func @transform_4(%arg0: i32, %arg1: i32) -> (i32, i32) {
    %c0_i32 = arith.constant 0 : i32
    return %arg0, %arg1 : i32, i32
  }
}

</mosaic_0001>

<llo_original>
// kernel: vision_transformer_forward.11
$region0: #{vision_transformer_forward.11}
  #allocation0 [shape = 'u32[]', space=smem, size = 0x4, offset = 0x4, fixed_abs, tag = 'smem constant byte address 0x4 - core index']
  #allocation1 [shape = 'u32[72,128]{1,0:T(1,128)}', space=vmem, size = 0x9000, scoped, tag = 'internal scratch']
  #allocation2 [shape = 'f32[32,128]{1,0:T(8,128)}', space=vmem, size = 0x4000, scoped, tag = 'scratch operand']
  %s0 = inlined_call_operand.vmem [shape: bf16[32,128], index: 0, kind: input, shape index: {}]
  %s1 = inlined_call_operand.vmem [shape: bf16[128,128], index: 1, kind: input, shape index: {}]
  %s2 = inlined_call_operand.vmem [shape: bf16[32,128], index: 2, kind: output, shape index: {}]
  %s3 = sld [smem:[#allocation0]]
  $region26: #{vision_transformer_forward.11} parent=0
    _
  %s5 = ssub.s32 1, %s3
  %s6 = scalar_select 0, %s5, %s3
  // Predicated region
  $region2: #{vision_transformer_forward.11} parent=0 // pred_check
    _
  $region3: #{vision_transformer_forward.11} parent=0 // pred_check_branch
    %8 = sbr.rel (0) target = $region5
  $region4: #{vision_transformer_forward.11} parent=0 // pred_region
    _
  $region5: #{vision_transformer_forward.11} parent=0 // pred_fallthru
    _
  // Predicated region
  $region6: #{vision_transformer_forward.11} parent=0 // pred_check
    _
  $region7: #{vision_transformer_forward.11} parent=0 // pred_check_branch
    %10 = sbr.rel (0) target = $region9
  $region8: #{vision_transformer_forward.11} parent=0 // pred_region
    _
  $region9: #{vision_transformer_forward.11} parent=0 // pred_fallthru
    _
  %p11 = scmp.eq.s32.totalorder 0, 0
  // Predicated region
  $region10: #{vision_transformer_forward.11} parent=0 // pred_check
    %p12 = pneg %p11
  $region11: #{vision_transformer_forward.11} parent=0 // pred_check_branch
    %14 = sbr.rel (%p12) target = $region13
  $region12: #{vision_transformer_forward.11} parent=0 // pred_region
    %15 = vst [vmem:[#allocation2] sm:$0xff] 0.0
    %16 = vst [vmem:[#allocation2 + $0x8] sm:$0xff] 0.0
    %17 = vst [vmem:[#allocation2 + $0x10] sm:$0xff] 0.0
    %18 = vst [vmem:[#allocation2 + $0x18] sm:$0xff] 0.0
  $region13: #{vision_transformer_forward.11} parent=0 // pred_fallthru
    _
  %v19 = vld [vmem:[#allocation2] sm:$0xff]
  %v20 = vld [vmem:[#allocation2 + $0x8] sm:$0xff]
  %v21 = vld [vmem:[#allocation2 + $0x10] sm:$0xff]
  %v22 = vld [vmem:[#allocation2 + $0x18] sm:$0xff]
  %v23 = vld [vmem:[%s0] sm:$0xf]
  %v24 = vld [vmem:[%s0 + $0x4] sm:$0xf]
  %v25 = vld [vmem:[%s0 + $0x8] sm:$0xf]
  %v26 = vld [vmem:[%s0 + $0xc] sm:$0xf]
  %v27 = vld [vmem:[%s1] sm:$0xf]
  %v28 = vld [vmem:[%s1 + $0x4] sm:$0xf]
  %v29 = vld [vmem:[%s1 + $0x8] sm:$0xf]
  %v30 = vld [vmem:[%s1 + $0xc] sm:$0xf]
  %v31 = vld [vmem:[%s1 + $0x10] sm:$0xf]
  %v32 = vld [vmem:[%s1 + $0x14] sm:$0xf]
  %v33 = vld [vmem:[%s1 + $0x18] sm:$0xf]
  %v34 = vld [vmem:[%s1 + $0x1c] sm:$0xf]
  %v35 = vld [vmem:[%s1 + $0x20] sm:$0xf]
  %v36 = vld [vmem:[%s1 + $0x24] sm:$0xf]
  %v37 = vld [vmem:[%s1 + $0x28] sm:$0xf]
  %v38 = vld [vmem:[%s1 + $0x2c] sm:$0xf]
  %v39 = vld [vmem:[%s1 + $0x30] sm:$0xf]
  %v40 = vld [vmem:[%s1 + $0x34] sm:$0xf]
  %v41 = vld [vmem:[%s1 + $0x38] sm:$0xf]
  %v42 = vld [vmem:[%s1 + $0x3c] sm:$0xf]
  %v47 = vunpack.c.l.b16 %v23
  %v48 = vunpack.c.l.b16 %v24
  %v49 = vunpack.c.l.b16 %v25
  %v50 = vunpack.c.l.b16 %v26
  %v51 = vpack.c.b16 %v48, %v47
  %v52 = vpack.c.b16 %v50, %v49
  %v71 = vunpack.c.l.b16 %v27
  %v72 = vunpack.c.l.b16 %v28
  %v73 = vunpack.c.l.b16 %v29
  %v74 = vunpack.c.l.b16 %v30
  %v75 = vunpack.c.l.b16 %v31
  %v76 = vunpack.c.l.b16 %v32
  %v77 = vunpack.c.l.b16 %v33
  %v78 = vunpack.c.l.b16 %v34
  %v79 = vunpack.c.l.b16 %v35
  %v80 = vunpack.c.l.b16 %v36
  %v81 = vunpack.c.l.b16 %v37
  %v82 = vunpack.c.l.b16 %v38
  %v83 = vunpack.c.l.b16 %v39
  %v84 = vunpack.c.l.b16 %v40
  %v85 = vunpack.c.l.b16 %v41
  %v86 = vunpack.c.l.b16 %v42
  %v87 = vpack.c.b16 %v72, %v71
  %v88 = vpack.c.b16 %v74, %v73
  %v89 = vpack.c.b16 %v76, %v75
  %v90 = vpack.c.b16 %v78, %v77
  %v91 = vpack.c.b16 %v80, %v79
  %v92 = vpack.c.b16 %v82, %v81
  %v93 = vpack.c.b16 %v84, %v83
  %v94 = vpack.c.b16 %v86, %v85
  %103 = vmatpush.bf16.msra.mxu0 %v94
  %104 = vmatpush.bf16.msra.mxu0 %v93
  %105 = vmatpush.bf16.msra.mxu0 %v92
  %106 = vmatpush.bf16.msra.mxu0 %v91
  %107 = vmatpush.bf16.msra.mxu0 %v90
  %108 = vmatpush.bf16.msra.mxu0 %v89
  %109 = vmatpush.bf16.msra.mxu0 %v88
  %110 = vmatpush.bf16.msra.mxu0 %v87
  %111 = vmatmul.bf16.gmra.mxu0 %v51
  %v112 = vpop.f32.mrf.mxu0
  %v113 = vadd.f32 0.0, %v112
  %v114 = vpop.f32.mrf.mxu0
  %v115 = vadd.f32 0.0, %v114
  %116 = vmatmul.bf16.gmra.mxu0 %v52
  %v117 = vpop.f32.mrf.mxu0
  %v118 = vadd.f32 0.0, %v117
  %v119 = vpop.f32.mrf.mxu0
  %v120 = vadd.f32 0.0, %v119
  %121 = vdwg.mxu0
  %v122 = vadd.f32 %v19, %v113
  %v123 = vadd.f32 %v20, %v115
  %v124 = vadd.f32 %v21, %v118
  %v125 = vadd.f32 %v22, %v120
  %126 = vst [vmem:[#allocation2] sm:$0xff] %v122
  %127 = vst [vmem:[#allocation2 + $0x8] sm:$0xff] %v123
  %128 = vst [vmem:[#allocation2 + $0x10] sm:$0xff] %v124
  %129 = vst [vmem:[#allocation2 + $0x18] sm:$0xff] %v125
  // Predicated region
  $region14: #{vision_transformer_forward.11} parent=0 // pred_check
    %p130 = pneg %p11
  $region15: #{vision_transformer_forward.11} parent=0 // pred_check_branch
    %132 = sbr.rel (%p130) target = $region17
  $region16: #{vision_transformer_forward.11} parent=0 // pred_region
    %v133 = vld [vmem:[#allocation2] sm:$0xff]
    %v134 = vld [vmem:[#allocation2 + $0x8] sm:$0xff]
    %v135 = vld [vmem:[#allocation2 + $0x10] sm:$0xff]
    %v136 = vld [vmem:[#allocation2 + $0x18] sm:$0xff]
    %v137 = vpack.c.bf16 %v133, %v133
    %v138 = vpack.c.bf16 %v134, %v134
    %v139 = vpack.c.bf16 %v135, %v135
    %v140 = vpack.c.bf16 %v136, %v136
    %141 = vst [vmem:[%s2] sm:$0xf] %v137
    %142 = vst [vmem:[%s2 + $0x4] sm:$0xf] %v138
    %143 = vst [vmem:[%s2 + $0x8] sm:$0xf] %v139
    %144 = vst [vmem:[%s2 + $0xc] sm:$0xf] %v140
  $region17: #{vision_transformer_forward.11} parent=0 // pred_fallthru
    _
  // Predicated region
  $region18: #{vision_transformer_forward.11} parent=0 // pred_check
    _
  $region19: #{vision_transformer_forward.11} parent=0 // pred_check_branch
    %146 = sbr.rel (0) target = $region21
  $region20: #{vision_transformer_forward.11} parent=0 // pred_region
    _
  $region21: #{vision_transformer_forward.11} parent=0 // pred_fallthru
    _
  // Predicated region
  $region22: #{vision_transformer_forward.11} parent=0 // pred_check
    _
  $region23: #{vision_transformer_forward.11} parent=0 // pred_check_branch
    %148 = sbr.rel (0) target = $region25
  $region24: #{vision_transformer_forward.11} parent=0 // pred_region
    _
  $region25: #{vision_transformer_forward.11} parent=0 // pred_fallthru
    _

// kernel: vision_transformer_forward.12
$region0: #{vision_transformer_forward.12}
  #allocation0 [shape = 'u32[]', space=smem, size = 0x4, offset = 0x4, fixed_abs, tag = 'smem constant byte address 0x4 - core index']
  #allocation1 [shape = 'u32[72,128]{1,0:T(1,128)}', space=vmem, size = 0x9000, scoped, tag = 'internal scratch']
  %s0 = inlined_call_operand.vmem [shape: bf16[2,24,32], index: 0, kind: input, shape index: {}]
  %s1 = inlined_call_operand.vmem [shape: f32[24,32], index: 1, kind: input, shape index: {}]
  %s2 = inlined_call_operand.vmem [shape: f32[1,32], index: 2, kind: input, shape index: {}]
  %s3 = inlined_call_operand.vmem [shape: f32[1,32], index: 3, kind: input, shape index: {}]
  %s4 = inlined_call_operand.vmem [shape: bf16[2,24,32], index: 4, kind: output, shape index: {}]
  %s5 = sld [smem:[#allocation0]]
  $region49: #{vision_transformer_forward.12} parent=0
    _
  %s7 = ssub.s32 1, %s5
  %s8 = scalar_select 0, %s7, %s5
  loop: start=0, step=1, limit=4
  $region2: #{vision_transformer_forward.12} parent=0 // loop_pre_header
    _
  $region3: #{vision_transformer_forward.12} parent=0 // loop_header
    %s10 = sphi 0, %s14
    %p11 = scmp.ge.s32.totalorder %s10, 4
    %s17 = sphi 0, %s29
    %s18 = sphi 0, %s25
    %s19 = sphi 0, %s17
    %s20 = sphi 0, %s18
    %s21 = sphi 0, %s19
    %s22 = sphi 0, %s20
    %s34 = sphi 0, %s36
    %s37 = sphi 0, %s34
    %s38 = sphi 0, %s37
    %s54 = sphi 0, %s38
    %s60 = sphi 0, %s62
    %s63 = sphi 0, %s60
    %s64 = sphi 0, %s63
    %s80 = sphi 0, %s64
    %s84 = sphi 0, %s84
    %s86 = sphi 0, %s84
    %s87 = sphi 0, %s86
    %s101 = sphi 0, %s87
    %s105 = sphi 0, %s105
    %s107 = sphi 0, %s105
    %s108 = sphi 0, %s107
    %s122 = sphi 0, %s108
    %s130 = sphi 0, %s132
    %s133 = sphi 0, %s130
    %s134 = sphi 0, %s133
    %s150 = sphi 0, %s134
  $region4: #{vision_transformer_forward.12} parent=0 // loop_header_branch
    %13 = sbr.rel (%p11) target = $region8
  $region5: #{vision_transformer_forward.12} parent=0 // loop_body
    %s15 = ssub.s32 %s10, 1
    %s16 = ssub.s32 %s10, 2
    %s23 = sadd.s32 1, %s18
    %p24 = scmp.ge.s32.totalorder %s23, 1
    %s25 = scalar_select %p24, 0, %s23
    %s26 = sadd.s32 1, %s17
    %s27 = scalar_select %p24, %s26, %s17
    %p28 = scmp.ge.s32.totalorder %s27, 2
    %s29 = scalar_select %p28, 0, %s27
    %s30 = ssub.s32 %s17, %s29
    %s31 = ssub.s32 %s18, %s25
    %s32 = sor.u32 %s30, %s31
    %p33 = scmp.eq.s32.totalorder %s32, 0
    %s35 = sadd.s32 %s34, 1
    %s36 = scalar_select %p33, %s34, %s35
    %p39 = pneg %p33
    %p40 = scmp.eq.s32.totalorder %s10, 1
    %p41 = por %p39, %p40
    %p42 = scmp.ne.s32.totalorder %s34, %s37
    %p43 = scmp.eq.s32.totalorder %s10, 0
    %p44 = por %p42, %p43
    %p45 = scmp.ne.s32.totalorder %s34, %s37
    %p46 = scmp.eq.s32.totalorder %s15, 1
    %p47 = por %p45, %p46
    %p48 = scmp.ne.s32.totalorder %s37, %s38
    %p49 = scmp.eq.s32.totalorder %s15, 0
    %p50 = por %p48, %p49
    %p51 = scmp.ne.s32.totalorder %s37, %s38
    %p52 = scmp.eq.s32.totalorder %s16, 1
    %p53 = por %p51, %p52
    %p55 = scmp.ne.s32.totalorder %s38, %s54
    %p56 = scmp.eq.s32.totalorder %s16, 0
    %p57 = por %p55, %p56
    %s58 = ssub.s32 %s18, %s25
    %p59 = scmp.eq.s32.totalorder %s58, 0
    %s61 = sadd.s32 %s60, 1
    %s62 = scalar_select %p59, %s60, %s61
    %p65 = pneg %p59
    %p66 = scmp.eq.s32.totalorder %s10, 1
    %p67 = por %p65, %p66
    %p68 = scmp.ne.s32.totalorder %s60, %s63
    %p69 = scmp.eq.s32.totalorder %s10, 0
    %p70 = por %p68, %p69
    %p71 = scmp.ne.s32.totalorder %s60, %s63
    %p72 = scmp.eq.s32.totalorder %s15, 1
    %p73 = por %p71, %p72
    %p74 = scmp.ne.s32.totalorder %s63, %s64
    %p75 = scmp.eq.s32.totalorder %s15, 0
    %p76 = por %p74, %p75
    %p77 = scmp.ne.s32.totalorder %s63, %s64
    %p78 = scmp.eq.s32.totalorder %s16, 1
    %p79 = por %p77, %p78
    %p81 = scmp.ne.s32.totalorder %s64, %s80
    %p82 = scmp.eq.s32.totalorder %s16, 0
    %p83 = por %p81, %p82
    %s85 = sadd.s32 %s84, 1
    %p88 = scmp.eq.s32.totalorder %s10, 1
    %p89 = scmp.ne.s32.totalorder %s84, %s86
    %p90 = scmp.eq.s32.totalorder %s10, 0
    %p91 = por %p89, %p90
    %p92 = scmp.ne.s32.totalorder %s84, %s86
    %p93 = scmp.eq.s32.totalorder %s15, 1
    %p94 = por %p92, %p93
    %p95 = scmp.ne.s32.totalorder %s86, %s87
    %p96 = scmp.eq.s32.totalorder %s15, 0
    %p97 = por %p95, %p96
    %p98 = scmp.ne.s32.totalorder %s86, %s87
    %p99 = scmp.eq.s32.totalorder %s16, 1
    %p100 = por %p98, %p99
    %p102 = scmp.ne.s32.totalorder %s87, %s101
    %p103 = scmp.eq.s32.totalorder %s16, 0
    %p104 = por %p102, %p103
    %s106 = sadd.s32 %s105, 1
    %p109 = scmp.eq.s32.totalorder %s10, 1
    %p110 = scmp.ne.s32.totalorder %s105, %s107
    %p111 = scmp.eq.s32.totalorder %s10, 0
    %p112 = por %p110, %p111
    %p113 = scmp.ne.s32.totalorder %s105, %s107
    %p114 = scmp.eq.s32.totalorder %s15, 1
    %p115 = por %p113, %p114
    %p116 = scmp.ne.s32.totalorder %s107, %s108
    %p117 = scmp.eq.s32.totalorder %s15, 0
    %p118 = por %p116, %p117
    %p119 = scmp.ne.s32.totalorder %s107, %s108
    %p120 = scmp.eq.s32.totalorder %s16, 1
    %p121 = por %p119, %p120
    %p123 = scmp.ne.s32.totalorder %s108, %s122
    %p124 = scmp.eq.s32.totalorder %s16, 0
    %p125 = por %p123, %p124
    %s126 = ssub.s32 %s17, %s29
    %s127 = ssub.s32 %s18, %s25
    %s128 = sor.u32 %s126, %s127
    %p129 = scmp.eq.s32.totalorder %s128, 0
    %s131 = sadd.s32 %s130, 1
    %s132 = scalar_select %p129, %s130, %s131
    %p135 = pneg %p129
    %p136 = scmp.eq.s32.totalorder %s10, 1
    %p137 = por %p135, %p136
    %p138 = scmp.ne.s32.totalorder %s130, %s133
    %p139 = scmp.eq.s32.totalorder %s10, 0
    %p140 = por %p138, %p139
    %p141 = scmp.ne.s32.totalorder %s130, %s133
    %p142 = scmp.eq.s32.totalorder %s15, 1
    %p143 = por %p141, %p142
    %p144 = scmp.ne.s32.totalorder %s133, %s134
    %p145 = scmp.eq.s32.totalorder %s15, 0
    %p146 = por %p144, %p145
    %p147 = scmp.ne.s32.totalorder %s133, %s134
    %p148 = scmp.eq.s32.totalorder %s16, 1
    %p149 = por %p147, %p148
    %p151 = scmp.ne.s32.totalorder %s134, %s150
    %p152 = scmp.eq.s32.totalorder %s16, 0
    %p153 = por %p151, %p152
    %p154 = scmp.le.s32.totalorder 1, %s10
    %p155 = scmp.lt.s32.totalorder %s10, 3
    %p156 = pnand %p154, %p155
    %p157 = pneg %p156
    // Predicated region
    $region9: #{vision_transformer_forward.12} parent=5 // pred_check
      _
    $region10: #{vision_transformer_forward.12} parent=5 // pred_check_branch
      %159 = sbr.rel (%p156) target = $region12
    $region11: #{vision_transformer_forward.12} parent=5 // pred_region
      %s160 = ssub.s32 %s10, 1
      // Predicated region
      $region13: #{vision_transformer_forward.12} parent=11 // pred_check
        %p161 = pneg %p76
      $region14: #{vision_transformer_forward.12} parent=11 // pred_check_branch
        %163 = sbr.rel (%p161) target = $region16
      $region15: #{vision_transformer_forward.12} parent=11 // pred_region
        %s164 = smul.u32 3, %s20
        %p165 = scmp.lt.s32.totalorder %s164, 2
        %s166 = scalar_select %p165, %s164, 2
        %s167 = smul.addr %s166, 8
        %s168 = scalar_lea.vmem %s1, %s167
        %s169 = smul.u32 3, %s20
      $region16: #{vision_transformer_forward.12} parent=11 // pred_fallthru
        _
      // Predicated region
      $region17: #{vision_transformer_forward.12} parent=11 // pred_check
        %p170 = pneg %p97
      $region18: #{vision_transformer_forward.12} parent=11 // pred_check_branch
        %172 = sbr.rel (%p170) target = $region20
      $region19: #{vision_transformer_forward.12} parent=11 // pred_region
        _
      $region20: #{vision_transformer_forward.12} parent=11 // pred_fallthru
        _
      // Predicated region
      $region21: #{vision_transformer_forward.12} parent=11 // pred_check
        %p173 = pneg %p118
      $region22: #{vision_transformer_forward.12} parent=11 // pred_check_branch
        %175 = sbr.rel (%p173) target = $region24
      $region23: #{vision_transformer_forward.12} parent=11 // pred_region
        _
      $region24: #{vision_transformer_forward.12} parent=11 // pred_fallthru
        _
    $region12: #{vision_transformer_forward.12} parent=5 // pred_fallthru
      _
    %p176 = scmp.lt.s32.totalorder %s10, 2
    // Predicated region
    $region25: #{vision_transformer_forward.12} parent=5 // pred_check
      %p177 = pneg %p176
    $region26: #{vision_transformer_forward.12} parent=5 // pred_check_branch
      %179 = sbr.rel (%p177) target = $region28
    $region27: #{vision_transformer_forward.12} parent=5 // pred_region
      // Predicated region
      $region29: #{vision_transformer_forward.12} parent=27 // pred_check
        %p180 = pneg %p44
      $region30: #{vision_transformer_forward.12} parent=27 // pred_check_branch
        %182 = sbr.rel (%p180) target = $region32
      $region31: #{vision_transformer_forward.12} parent=27 // pred_region
        %s183 = smul.u32 3, %s18
        %p184 = scmp.lt.s32.totalorder %s17, 1
        %s185 = scalar_select %p184, %s17, 1
        %p186 = scmp.lt.s32.totalorder %s183, 2
        %s187 = scalar_select %p186, %s183, 2
        %s188 = smul.addr %s185, 3
        %s189 = sadd.s32 %s187, %s188
        %s190 = smul.addr %s189, 4
        %s191 = scalar_lea.vmem %s0, %s190
        %s192 = smul.u32 3, %s18
      $region32: #{vision_transformer_forward.12} parent=27 // pred_fallthru
        _
    $region28: #{vision_transformer_forward.12} parent=5 // pred_fallthru
      _
    %p193 = scmp.le.s32.totalorder 1, %s10
    %p194 = scmp.lt.s32.totalorder %s10, 3
    %p195 = pnand %p193, %p194
    %p196 = pneg %p195
    // Predicated region
    $region33: #{vision_transformer_forward.12} parent=5 // pred_check
      _
    $region34: #{vision_transformer_forward.12} parent=5 // pred_check_branch
      %198 = sbr.rel (%p195) target = $region36
    $region35: #{vision_transformer_forward.12} parent=5 // pred_region
      %s199 = ssub.s32 %s10, 1
      %s200 = smul.u32 3, %s20
      %p201 = scmp.lt.s32.totalorder %s19, 1
      %s202 = scalar_select %p201, %s19, 1
      %p203 = scmp.lt.s32.totalorder %s200, 2
      %s204 = scalar_select %p203, %s200, 2
      %s205 = smul.addr %s202, 3
      %s206 = sadd.s32 %s204, %s205
      %s207 = smul.addr %s206, 4
      %s208 = scalar_lea.vmem %s0, %s207
      %p209 = pneg %p50
      %p210 = pneg %p47
      %s211 = smul.u32 3, %s20
      %p212 = scmp.lt.s32.totalorder %s211, 2
      %s213 = scalar_select %p212, %s211, 2
      %s214 = smul.addr %s213, 8
      %s215 = scalar_lea.vmem %s1, %s214
      %p216 = pneg %p76
      %p217 = pneg %p73
      %p218 = pneg %p97
      %p219 = pneg %p94
      %p220 = pneg %p118
      %p221 = pneg %p115
      %p222 = pneg %p146
      %p223 = pneg %p143
      %s224 = smul.u32 3, %s20
      %p225 = scmp.lt.s32.totalorder %s19, 1
      %s226 = scalar_select %p225, %s19, 1
      %p227 = scmp.lt.s32.totalorder %s224, 2
      %s228 = scalar_select %p227, %s224, 2
      %s229 = smul.addr %s226, 3
      %s230 = sadd.s32 %s228, %s229
      %s231 = smul.addr %s230, 4
      %s232 = scalar_lea.vmem %s4, %s231
      %s233 = smul.u32 3, %s20
      %p234 = scmp.lt.s32.totalorder %s19, 1
      %s235 = scalar_select %p234, %s19, 1
      %p236 = scmp.lt.s32.totalorder %s233, 2
      %s237 = scalar_select %p236, %s233, 2
      %s238 = smul.addr %s235, 3
      %s239 = sadd.s32 %s237, %s238
      %s240 = smul.addr %s239, 4
      %s241 = scalar_lea.vmem %s0, %s240
      %s242 = smul.u32 3, %s20
      %s243 = smul.u32 3, %s20
      %p244 = scmp.lt.s32.totalorder %s243, 2
      %s245 = scalar_select %p244, %s243, 2
      %s246 = smul.addr %s245, 8
      %s247 = scalar_lea.vmem %s1, %s246
      %s248 = smul.u32 3, %s20
      %s249 = smul.u32 3, %s20
      %p250 = scmp.lt.s32.totalorder %s19, 1
      %s251 = scalar_select %p250, %s19, 1
      %p252 = scmp.lt.s32.totalorder %s249, 2
      %s253 = scalar_select %p252, %s249, 2
      %s254 = smul.addr %s251, 3
      %s255 = sadd.s32 %s253, %s254
      %s256 = smul.addr %s255, 4
      %s257 = scalar_lea.vmem %s4, %s256
      %s258 = smul.u32 3, %s20
      %v259 = vld [vmem:[%s241] sm:$0xf]
      %v260 = vld [vmem:[%s241 + $0x4] sm:$0xf]
      %v261 = vld [vmem:[%s241 + $0x8] sm:$0xf]
      %v262 = vunpack.c.l.bf16 %v259
      %v263 = vunpack.c.l.bf16 %v260
      %v264 = vunpack.c.l.bf16 %v261
      %v265 = vld [vmem:[%s247] sm:$0xff]
      %v266 = vld [vmem:[%s247 + $0x8] sm:$0xff]
      %v267 = vld [vmem:[%s247 + $0x10] sm:$0xff]
      %v268 = vadd.f32 %v262, %v265
      %v269 = vadd.f32 %v263, %v266
      %v270 = vadd.f32 %v264, %v267
      %vm271 = vcmask 261120
      %v272 = vsel %vm271, %v268, 0.0
      %273 = vadd.xlane.f32.xlu0 %v272
      %v274 = vpop.xlane.xlu0 %273
      %v275 = vsel %vm271, %v269, 0.0
      %276 = vadd.xlane.f32.xlu0 %v275
      %v277 = vpop.xlane.xlu0 %276
      %v278 = vsel %vm271, %v270, 0.0
      %279 = vadd.xlane.f32.xlu0 %v278
      %v280 = vpop.xlane.xlu0 %279
      %v281 = vrcp.pop 32.0
      %v282 = vmul.f32 32.0, %v281
      %v283 = vsub.f32 1.0, %v282
      %v284 = vmul.f32 %v281, %v283
      %v285 = vadd.f32 %v281, %v284
      %vm286 = vweird.f32 %v281
      %v287 = vsel %vm286, %v281, %v285
      %v288 = vmul.f32 %v274, %v287
      %v289 = vmul.f32 %v277, %v287
      %v290 = vmul.f32 %v280, %v287
      %v291 = vsub.f32 %v268, %v288
      %v292 = vsub.f32 %v269, %v289
      %v293 = vsub.f32 %v270, %v290
      %v294 = vmul.f32 %v291, %v291
      %v295 = vmul.f32 %v292, %v292
      %v296 = vmul.f32 %v293, %v293
      %v297 = vsel %vm271, %v294, 0.0
      %298 = vadd.xlane.f32.xlu0 %v297
      %v299 = vpop.xlane.xlu0 %298
      %v300 = vsel %vm271, %v295, 0.0
      %301 = vadd.xlane.f32.xlu0 %v300
      %v302 = vpop.xlane.xlu0 %301
      %v303 = vsel %vm271, %v296, 0.0
      %304 = vadd.xlane.f32.xlu0 %v303
      %v305 = vpop.xlane.xlu0 %304
      %v306 = vmul.f32 %v299, %v287
      %v307 = vmul.f32 %v302, %v287
      %v308 = vmul.f32 %v305, %v287
      %v309 = vadd.f32 %v306, 1e-05
      %v310 = vadd.f32 %v307, 1e-05
      %v311 = vadd.f32 %v308, 1e-05
      %v312 = vrsqrt.pop %v309
      %v313 = vmul.f32 %v312, %v309
      %v314 = vmul.f32 %v313, %v312
      %v315 = vmul.f32 0.5, %v314
      %v316 = vsub.f32 1.5, %v315
      %v317 = vmul.f32 %v312, %v316
      %vm318 = vweird.f32 %v309
      %vm319 = vweird.f32 %v312
      %vm320 = vmor %vm318, %vm319
      %v321 = vsel %vm320, %v312, %v317
      %v322 = vrsqrt.pop %v310
      %v323 = vmul.f32 %v322, %v310
      %v324 = vmul.f32 %v323, %v322
      %v325 = vmul.f32 0.5, %v324
      %v326 = vsub.f32 1.5, %v325
      %v327 = vmul.f32 %v322, %v326
      %vm328 = vweird.f32 %v310
      %vm329 = vweird.f32 %v322
      %vm330 = vmor %vm328, %vm329
      %v331 = vsel %vm330, %v322, %v327
      %v332 = vrsqrt.pop %v311
      %v333 = vmul.f32 %v332, %v311
      %v334 = vmul.f32 %v333, %v332
      %v335 = vmul.f32 0.5, %v334
      %v336 = vsub.f32 1.5, %v335
      %v337 = vmul.f32 %v332, %v336
      %vm338 = vweird.f32 %v311
      %vm339 = vweird.f32 %v332
      %vm340 = vmor %vm338, %vm339
      %v341 = vsel %vm340, %v332, %v337
      %v342 = vmul.f32 %v291, %v321
      %v343 = vmul.f32 %v292, %v331
      %v344 = vmul.f32 %v293, %v341
      %v345 = vld [vmem:[%s2] sm:$0x1]
      %v347 = vperm.slane %v345, 0
      %v349 = vmul.f32 %v342, %v347
      %v350 = vmul.f32 %v343, %v347
      %v351 = vmul.f32 %v344, %v347
      %v352 = vld [vmem:[%s3] sm:$0x1]
      %v354 = vperm.slane %v352, 0
      %v356 = vadd.f32 %v349, %v354
      %v357 = vadd.f32 %v350, %v354
      %v358 = vadd.f32 %v351, %v354
      %v359 = vpack.c.bf16 %v356, %v356
      %v360 = vpack.c.bf16 %v357, %v357
      %v361 = vpack.c.bf16 %v358, %v358
      %vm362 = vcmask 257024
      %363 = vst.msk [vmem:[%s257] sm:$0xf] %vm362, %v359
      %364 = vst.msk [vmem:[%s257 + $0x4] sm:$0xf] %vm362, %v360
      %365 = vst.msk [vmem:[%s257 + $0x8] sm:$0xf] %vm362, %v361
      %s366 = smul.u32 3, %s20
      %p367 = scmp.lt.s32.totalorder %s19, 1
      %s368 = scalar_select %p367, %s19, 1
      %p369 = scmp.lt.s32.totalorder %s366, 2
      %s370 = scalar_select %p369, %s366, 2
      %s371 = smul.addr %s368, 3
      %s372 = sadd.s32 %s370, %s371
      %s373 = smul.addr %s372, 4
      %s374 = scalar_lea.vmem %s4, %s373
      // Predicated region
      $region37: #{vision_transformer_forward.12} parent=35 // pred_check
        %p375 = pneg %p143
      $region38: #{vision_transformer_forward.12} parent=35 // pred_check_branch
        %377 = sbr.rel (%p375) target = $region40
      $region39: #{vision_transformer_forward.12} parent=35 // pred_region
        %s378 = smul.u32 3, %s20
      $region40: #{vision_transformer_forward.12} parent=35 // pred_fallthru
        _
    $region36: #{vision_transformer_forward.12} parent=5 // pred_fallthru
      _
    %p379 = scmp.le.s32.totalorder 2, %s10
    // Predicated region
    $region41: #{vision_transformer_forward.12} parent=5 // pred_check
      %p380 = pneg %p379
    $region42: #{vision_transformer_forward.12} parent=5 // pred_check_branch
      %382 = sbr.rel (%p380) target = $region44
    $region43: #{vision_transformer_forward.12} parent=5 // pred_region
      %s383 = ssub.s32 %s10, 2
      // Predicated region
      $region45: #{vision_transformer_forward.12} parent=43 // pred_check
        %p384 = pneg %p149
      $region46: #{vision_transformer_forward.12} parent=43 // pred_check_branch
        %386 = sbr.rel (%p384) target = $region48
      $region47: #{vision_transformer_forward.12} parent=43 // pred_region
        %s387 = smul.u32 3, %s22
        %p388 = scmp.lt.s32.totalorder %s21, 1
        %s389 = scalar_select %p388, %s21, 1
        %p390 = scmp.lt.s32.totalorder %s387, 2
        %s391 = scalar_select %p390, %s387, 2
        %s392 = smul.addr %s389, 3
        %s393 = sadd.s32 %s391, %s392
        %s394 = smul.addr %s393, 4
        %s395 = scalar_lea.vmem %s4, %s394
      $region48: #{vision_transformer_forward.12} parent=43 // pred_fallthru
        _
    $region44: #{vision_transformer_forward.12} parent=5 // pred_fallthru
      _
  $region6: #{vision_transformer_forward.12} parent=0 // loop_footer
    %s14 = sadd.s32 1, %s10
  $region7: #{vision_transformer_forward.12} parent=0 // loop_footer_branch
    %9 = sbr.rel target = $region3
  $region8: #{vision_transformer_forward.12} parent=0 // loop_exit
    _

// kernel: vision_transformer_forward.13
$region0: #{vision_transformer_forward.13}
  #allocation0 [shape = 'u32[]', space=smem, size = 0x4, offset = 0x4, fixed_abs, tag = 'smem constant byte address 0x4 - core index']
  #allocation1 [shape = 'u32[72,128]{1,0:T(1,128)}', space=vmem, size = 0x9000, scoped, tag = 'internal scratch']
  #allocation2 [shape = 'bf16[48,32]{1,0:T(8,128)(2,1)}', space=vmem, size = 0x3000, scoped, tag = 'scratch operand']
  %s0 = inlined_call_operand.vmem [shape: bf16[48,32], index: 0, kind: input, shape index: {}]
  %s1 = inlined_call_operand.vmem [shape: f32[1,32], index: 1, kind: input, shape index: {}]
  %s2 = inlined_call_operand.vmem [shape: f32[1,32], index: 2, kind: input, shape index: {}]
  %s3 = inlined_call_operand.vmem [shape: bf16[32,128], index: 3, kind: input, shape index: {}]
  %s4 = inlined_call_operand.vmem [shape: f32[1,128], index: 4, kind: input, shape index: {}]
  %s5 = inlined_call_operand.vmem [shape: bf16[48,128], index: 5, kind: output, shape index: {}]
  %s6 = sld [smem:[#allocation0]]
  $region34: #{vision_transformer_forward.13} parent=0
    _
  %s8 = ssub.s32 1, %s6
  %s9 = scalar_select 0, %s8, %s6
  // Predicated region
  $region2: #{vision_transformer_forward.13} parent=0 // pred_check
    _
  $region3: #{vision_transformer_forward.13} parent=0 // pred_check_branch
    %11 = sbr.rel (0) target = $region5
  $region4: #{vision_transformer_forward.13} parent=0 // pred_region
    _
  $region5: #{vision_transformer_forward.13} parent=0 // pred_fallthru
    _
  // Predicated region
  $region6: #{vision_transformer_forward.13} parent=0 // pred_check
    _
  $region7: #{vision_transformer_forward.13} parent=0 // pred_check_branch
    %13 = sbr.rel (0) target = $region9
  $region8: #{vision_transformer_forward.13} parent=0 // pred_region
    _
  $region9: #{vision_transformer_forward.13} parent=0 // pred_fallthru
    _
  // Predicated region
  $region10: #{vision_transformer_forward.13} parent=0 // pred_check
    _
  $region11: #{vision_transformer_forward.13} parent=0 // pred_check_branch
    %15 = sbr.rel (0) target = $region13
  $region12: #{vision_transformer_forward.13} parent=0 // pred_region
    _
  $region13: #{vision_transformer_forward.13} parent=0 // pred_fallthru
    _
  // Predicated region
  $region14: #{vision_transformer_forward.13} parent=0 // pred_check
    _
  $region15: #{vision_transformer_forward.13} parent=0 // pred_check_branch
    %17 = sbr.rel (0) target = $region17
  $region16: #{vision_transformer_forward.13} parent=0 // pred_region
    _
  $region17: #{vision_transformer_forward.13} parent=0 // pred_fallthru
    _
  // Predicated region
  $region18: #{vision_transformer_forward.13} parent=0 // pred_check
    _
  $region19: #{vision_transformer_forward.13} parent=0 // pred_check_branch
    %19 = sbr.rel (0) target = $region21
  $region20: #{vision_transformer_forward.13} parent=0 // pred_region
    _
  $region21: #{vision_transformer_forward.13} parent=0 // pred_fallthru
    _
  %p21 = scmp.eq.s32.totalorder 0, 0
  // Predicated region
  $region22: #{vision_transformer_forward.13} parent=0 // pred_check
    %p22 = pneg %p21
  $region23: #{vision_transformer_forward.13} parent=0 // pred_check_branch
    %24 = sbr.rel (%p22) target = $region25
  $region24: #{vision_transformer_forward.13} parent=0 // pred_region
    %v25 = vld [vmem:[%s0] sm:$0xf]
    %v26 = vld [vmem:[%s0 + $0x4] sm:$0xf]
    %v27 = vld [vmem:[%s0 + $0x8] sm:$0xf]
    %v28 = vld [vmem:[%s0 + $0xc] sm:$0xf]
    %v29 = vld [vmem:[%s0 + $0x10] sm:$0xf]
    %v30 = vld [vmem:[%s0 + $0x14] sm:$0xf]
    %v31 = vunpack.c.l.bf16 %v25
    %v32 = vunpack.c.l.bf16 %v26
    %v33 = vunpack.c.l.bf16 %v27
    %v34 = vunpack.c.l.bf16 %v28
    %v35 = vunpack.c.l.bf16 %v29
    %v36 = vunpack.c.l.bf16 %v30
    %vm37 = vcmask 261120
    %v38 = vsel %vm37, %v31, 0.0
    %39 = vadd.xlane.f32.xlu0 %v38
    %v40 = vpop.xlane.xlu0 %39
    %v41 = vsel %vm37, %v32, 0.0
    %42 = vadd.xlane.f32.xlu0 %v41
    %v43 = vpop.xlane.xlu0 %42
    %v44 = vsel %vm37, %v33, 0.0
    %45 = vadd.xlane.f32.xlu0 %v44
    %v46 = vpop.xlane.xlu0 %45
    %v47 = vsel %vm37, %v34, 0.0
    %48 = vadd.xlane.f32.xlu0 %v47
    %v49 = vpop.xlane.xlu0 %48
    %v50 = vsel %vm37, %v35, 0.0
    %51 = vadd.xlane.f32.xlu0 %v50
    %v52 = vpop.xlane.xlu0 %51
    %v53 = vsel %vm37, %v36, 0.0
    %54 = vadd.xlane.f32.xlu0 %v53
    %v55 = vpop.xlane.xlu0 %54
    %v56 = vrcp.pop 32.0
    %v57 = vmul.f32 32.0, %v56
    %v58 = vsub.f32 1.0, %v57
    %v59 = vmul.f32 %v56, %v58
    %v60 = vadd.f32 %v56, %v59
    %vm61 = vweird.f32 %v56
    %v62 = vsel %vm61, %v56, %v60
    %v63 = vmul.f32 %v40, %v62
    %v64 = vmul.f32 %v43, %v62
    %v65 = vmul.f32 %v46, %v62
    %v66 = vmul.f32 %v49, %v62
    %v67 = vmul.f32 %v52, %v62
    %v68 = vmul.f32 %v55, %v62
    %v69 = vsub.f32 %v31, %v63
    %v70 = vsub.f32 %v32, %v64
    %v71 = vsub.f32 %v33, %v65
    %v72 = vsub.f32 %v34, %v66
    %v73 = vsub.f32 %v35, %v67
    %v74 = vsub.f32 %v36, %v68
    %v75 = vmul.f32 %v69, %v69
    %v76 = vmul.f32 %v70, %v70
    %v77 = vmul.f32 %v71, %v71
    %v78 = vmul.f32 %v72, %v72
    %v79 = vmul.f32 %v73, %v73
    %v80 = vmul.f32 %v74, %v74
    %v81 = vsel %vm37, %v75, 0.0
    %82 = vadd.xlane.f32.xlu0 %v81
    %v83 = vpop.xlane.xlu0 %82
    %v84 = vsel %vm37, %v76, 0.0
    %85 = vadd.xlane.f32.xlu0 %v84
    %v86 = vpop.xlane.xlu0 %85
    %v87 = vsel %vm37, %v77, 0.0
    %88 = vadd.xlane.f32.xlu0 %v87
    %v89 = vpop.xlane.xlu0 %88
    %v90 = vsel %vm37, %v78, 0.0
    %91 = vadd.xlane.f32.xlu0 %v90
    %v92 = vpop.xlane.xlu0 %91
    %v93 = vsel %vm37, %v79, 0.0
    %94 = vadd.xlane.f32.xlu0 %v93
    %v95 = vpop.xlane.xlu0 %94
    %v96 = vsel %vm37, %v80, 0.0
    %97 = vadd.xlane.f32.xlu0 %v96
    %v98 = vpop.xlane.xlu0 %97
    %v99 = vmul.f32 %v83, %v62
    %v100 = vmul.f32 %v86, %v62
    %v101 = vmul.f32 %v89, %v62
    %v102 = vmul.f32 %v92, %v62
    %v103 = vmul.f32 %v95, %v62
    %v104 = vmul.f32 %v98, %v62
    %v105 = vadd.f32 %v99, 1e-05
    %v106 = vadd.f32 %v100, 1e-05
    %v107 = vadd.f32 %v101, 1e-05
    %v108 = vadd.f32 %v102, 1e-05
    %v109 = vadd.f32 %v103, 1e-05
    %v110 = vadd.f32 %v104, 1e-05
    %v111 = vrsqrt.pop %v105
    %v112 = vmul.f32 %v111, %v105
    %v113 = vmul.f32 %v112, %v111
    %v114 = vmul.f32 0.5, %v113
    %v115 = vsub.f32 1.5, %v114
    %v116 = vmul.f32 %v111, %v115
    %vm117 = vweird.f32 %v105
    %vm118 = vweird.f32 %v111
    %vm119 = vmor %vm117, %vm118
    %v120 = vsel %vm119, %v111, %v116
    %v121 = vrsqrt.pop %v106
    %v122 = vmul.f32 %v121, %v106
    %v123 = vmul.f32 %v122, %v121
    %v124 = vmul.f32 0.5, %v123
    %v125 = vsub.f32 1.5, %v124
    %v126 = vmul.f32 %v121, %v125
    %vm127 = vweird.f32 %v106
    %vm128 = vweird.f32 %v121
    %vm129 = vmor %vm127, %vm128
    %v130 = vsel %vm129, %v121, %v126
    %v131 = vrsqrt.pop %v107
    %v132 = vmul.f32 %v131, %v107
    %v133 = vmul.f32 %v132, %v131
    %v134 = vmul.f32 0.5, %v133
    %v135 = vsub.f32 1.5, %v134
    %v136 = vmul.f32 %v131, %v135
    %vm137 = vweird.f32 %v107
    %vm138 = vweird.f32 %v131
    %vm139 = vmor %vm137, %vm138
    %v140 = vsel %vm139, %v131, %v136
    %v141 = vrsqrt.pop %v108
    %v142 = vmul.f32 %v141, %v108
    %v143 = vmul.f32 %v142, %v141
    %v144 = vmul.f32 0.5, %v143
    %v145 = vsub.f32 1.5, %v144
    %v146 = vmul.f32 %v141, %v145
    %vm147 = vweird.f32 %v108
    %vm148 = vweird.f32 %v141
    %vm149 = vmor %vm147, %vm148
    %v150 = vsel %vm149, %v141, %v146
    %v151 = vrsqrt.pop %v109
    %v152 = vmul.f32 %v151, %v109
    %v153 = vmul.f32 %v152, %v151
    %v154 = vmul.f32 0.5, %v153
    %v155 = vsub.f32 1.5, %v154
    %v156 = vmul.f32 %v151, %v155
    %vm157 = vweird.f32 %v109
    %vm158 = vweird.f32 %v151
    %vm159 = vmor %vm157, %vm158
    %v160 = vsel %vm159, %v151, %v156
    %v161 = vrsqrt.pop %v110
    %v162 = vmul.f32 %v161, %v110
    %v163 = vmul.f32 %v162, %v161
    %v164 = vmul.f32 0.5, %v163
    %v165 = vsub.f32 1.5, %v164
    %v166 = vmul.f32 %v161, %v165
    %vm167 = vweird.f32 %v110
    %vm168 = vweird.f32 %v161
    %vm169 = vmor %vm167, %vm168
    %v170 = vsel %vm169, %v161, %v166
    %v171 = vmul.f32 %v69, %v120
    %v172 = vmul.f32 %v70, %v130
    %v173 = vmul.f32 %v71, %v140
    %v174 = vmul.f32 %v72, %v150
    %v175 = vmul.f32 %v73, %v160
    %v176 = vmul.f32 %v74, %v170
    %v177 = vld [vmem:[%s1] sm:$0x1]
    %v179 = vperm.slane %v177, 0
    %v181 = vmul.f32 %v171, %v179
    %v182 = vmul.f32 %v172, %v179
    %v183 = vmul.f32 %v173, %v179
    %v184 = vmul.f32 %v174, %v179
    %v185 = vmul.f32 %v175, %v179
    %v186 = vmul.f32 %v176, %v179
    %v187 = vld [vmem:[%s2] sm:$0x1]
    %v189 = vperm.slane %v187, 0
    %v191 = vadd.f32 %v181, %v189
    %v192 = vadd.f32 %v182, %v189
    %v193 = vadd.f32 %v183, %v189
    %v194 = vadd.f32 %v184, %v189
    %v195 = vadd.f32 %v185, %v189
    %v196 = vadd.f32 %v186, %v189
    %v197 = vpack.c.bf16 %v191, %v191
    %v198 = vpack.c.bf16 %v192, %v192
    %v199 = vpack.c.bf16 %v193, %v193
    %v200 = vpack.c.bf16 %v194, %v194
    %v201 = vpack.c.bf16 %v195, %v195
    %v202 = vpack.c.bf16 %v196, %v196
    %vm203 = vcmask 257024
    %204 = vst.msk [vmem:[#allocation2] sm:$0xf] %vm203, %v197
    %205 = vst.msk [vmem:[#allocation2 + $0x4] sm:$0xf] %vm203, %v198
    %206 = vst.msk [vmem:[#allocation2 + $0x8] sm:$0xf] %vm203, %v199
    %207 = vst.msk [vmem:[#allocation2 + $0xc] sm:$0xf] %vm203, %v200
    %208 = vst.msk [vmem:[#allocation2 + $0x10] sm:$0xf] %vm203, %v201
    %209 = vst.msk [vmem:[#allocation2 + $0x14] sm:$0xf] %vm203, %v202
  $region25: #{vision_transformer_forward.13} parent=0 // pred_fallthru
    _
  %v210 = vld [vmem:[#allocation2] sm:$0xf]
  %v211 = vld [vmem:[#allocation2 + $0x4] sm:$0xf]
  %v212 = vld [vmem:[#allocation2 + $0x8] sm:$0xf]
  %v213 = vld [vmem:[#allocation2 + $0xc] sm:$0xf]
  %v214 = vld [vmem:[#allocation2 + $0x10] sm:$0xf]
  %v215 = vld [vmem:[#allocation2 + $0x14] sm:$0xf]
  %v216 = vld [vmem:[%s3] sm:$0xf]
  %v217 = vld [vmem:[%s3 + $0x4] sm:$0xf]
  %v218 = vld [vmem:[%s3 + $0x8] sm:$0xf]
  %v219 = vld [vmem:[%s3 + $0xc] sm:$0xf]
  %v220 = vld [vmem:[%s4] sm:$0x1]
  %v222 = vperm.slane %v220, 0
  %v230 = vunpack.c.l.b16 %v210
  %v231 = vunpack.c.l.b16 %v211
  %v232 = vunpack.c.l.b16 %v212
  %v233 = vunpack.c.l.b16 %v213
  %v234 = vunpack.c.l.b16 %v214
  %v235 = vunpack.c.l.b16 %v215
  %v236 = vpack.c.b16 %v231, %v230
  %v237 = vpack.c.b16 %v233, %v232
  %v238 = vpack.c.b16 %v235, %v234
  %v243 = vunpack.c.l.b16 %v216
  %v244 = vunpack.c.l.b16 %v217
  %v245 = vunpack.c.l.b16 %v218
  %v246 = vunpack.c.l.b16 %v219
  %v247 = vpack.c.b16 %v244, %v243
  %v248 = vpack.c.b16 %v246, %v245
  %vm251 = vcmask 261120
  %v253 = vsel %vm251, %v236, 0
  %v256 = vsel %vm251, %v237, 0
  %v259 = vsel %vm251, %v238, 0
  %261 = vmatpush.bf16.msra.mxu0 0
  %262 = vmatpush.bf16.msra.mxu0 0
  %263 = vmatpush.bf16.msra.mxu0 0
  %264 = vmatpush.bf16.msra.mxu0 0
  %265 = vmatpush.bf16.msra.mxu0 0
  %266 = vmatpush.bf16.msra.mxu0 0
  %267 = vmatpush.bf16.msra.mxu0 %v248
  %268 = vmatpush.bf16.msra.mxu0 %v247
  %269 = vmatmul.bf16.gmra.mxu0 %v253
  %v270 = vpop.f32.mrf.mxu0
  %v271 = vadd.f32 %v222, %v270
  %v272 = vpop.f32.mrf.mxu0
  %v273 = vadd.f32 %v222, %v272
  %274 = vmatmul.bf16.gmra.mxu0 %v256
  %v275 = vpop.f32.mrf.mxu0
  %v276 = vadd.f32 %v222, %v275
  %v277 = vpop.f32.mrf.mxu0
  %v278 = vadd.f32 %v222, %v277
  %279 = vmatmul.bf16.gmra.mxu0 %v259
  %v280 = vpop.f32.mrf.mxu0
  %v281 = vadd.f32 %v222, %v280
  %v282 = vpop.f32.mrf.mxu0
  %v283 = vadd.f32 %v222, %v282
  %284 = vdwg.mxu0
  %v285 = vpack.c.bf16 %v271, %v271
  %v286 = vpack.c.bf16 %v273, %v273
  %v287 = vpack.c.bf16 %v276, %v276
  %v288 = vpack.c.bf16 %v278, %v278
  %v289 = vpack.c.bf16 %v281, %v281
  %v290 = vpack.c.bf16 %v283, %v283
  %291 = vst [vmem:[%s5] sm:$0xf] %v285
  %292 = vst [vmem:[%s5 + $0x4] sm:$0xf] %v286
  %293 = vst [vmem:[%s5 + $0x8] sm:$0xf] %v287
  %294 = vst [vmem:[%s5 + $0xc] sm:$0xf] %v288
  %295 = vst [vmem:[%s5 + $0x10] sm:$0xf] %v289
  %296 = vst [vmem:[%s5 + $0x14] sm:$0xf] %v290
  // Predicated region
  $region26: #{vision_transformer_forward.13} parent=0 // pred_check
    _
  $region27: #{vision_transformer_forward.13} parent=0 // pred_check_branch
    %298 = sbr.rel (0) target = $region29
  $region28: #{vision_transformer_forward.13} parent=0 // pred_region
    _
  $region29: #{vision_transformer_forward.13} parent=0 // pred_fallthru
    _
  // Predicated region
  $region30: #{vision_transformer_forward.13} parent=0 // pred_check
    _
  $region31: #{vision_transformer_forward.13} parent=0 // pred_check_branch
    %300 = sbr.rel (0) target = $region33
  $region32: #{vision_transformer_forward.13} parent=0 // pred_region
    _
  $region33: #{vision_transformer_forward.13} parent=0 // pred_fallthru
    _

// kernel: vision_transformer_forward.14
$region0: #{vision_transformer_forward.14}
  #allocation0 [shape = 'u32[]', space=smem, size = 0x4, offset = 0x4, fixed_abs, tag = 'smem constant byte address 0x4 - core index']
  #allocation1 [shape = 'u32[72,128]{1,0:T(1,128)}', space=vmem, size = 0x9000, scoped, tag = 'internal scratch']
  #allocation2 [shape = 'f32[24,32]{1,0:T(8,128)}', space=vmem, size = 0x3000, scoped, tag = 'scratch operand']
  %s0 = inlined_call_operand.vmem [shape: bf16[2,24,96], index: 0, kind: input, shape index: {}]
  %s1 = inlined_call_operand.vmem [shape: bf16[32,32], index: 1, kind: input, shape index: {}]
  %s2 = inlined_call_operand.vmem [shape: f32[1,32], index: 2, kind: input, shape index: {}]
  %s3 = inlined_call_operand.vmem [shape: bf16[2,24,32], index: 3, kind: input, shape index: {}]
  %s4 = inlined_call_operand.vmem [shape: bf16[2,24,32], index: 4, kind: output, shape index: {}]
  %s5 = sld [smem:[#allocation0]]
  $region57: #{vision_transformer_forward.14} parent=0
    _
  %s7 = ssub.s32 1, %s5
  %s8 = scalar_select 0, %s7, %s5
  loop: start=0, step=1, limit=4
  $region2: #{vision_transformer_forward.14} parent=0 // loop_pre_header
    _
  $region3: #{vision_transformer_forward.14} parent=0 // loop_header
    %s10 = sphi 0, %s14
    %p11 = scmp.ge.s32.totalorder %s10, 4
    %s17 = sphi 0, %s29
    %s18 = sphi 0, %s25
    %s19 = sphi 0, %s17
    %s20 = sphi 0, %s18
    %s21 = sphi 0, %s19
    %s22 = sphi 0, %s20
    %s34 = sphi 0, %s36
    %s37 = sphi 0, %s34
    %s38 = sphi 0, %s37
    %s54 = sphi 0, %s38
    %s60 = sphi 0, %s62
    %s63 = sphi 0, %s60
    %s64 = sphi 0, %s63
    %s80 = sphi 0, %s64
    %s84 = sphi 0, %s84
    %s86 = sphi 0, %s84
    %s87 = sphi 0, %s86
    %s101 = sphi 0, %s87
    %s107 = sphi 0, %s109
    %s110 = sphi 0, %s107
    %s111 = sphi 0, %s110
    %s127 = sphi 0, %s111
    %s133 = sphi 0, %s135
    %s136 = sphi 0, %s133
    %s137 = sphi 0, %s136
    %s153 = sphi 0, %s137
  $region4: #{vision_transformer_forward.14} parent=0 // loop_header_branch
    %13 = sbr.rel (%p11) target = $region8
  $region5: #{vision_transformer_forward.14} parent=0 // loop_body
    %s15 = ssub.s32 %s10, 1
    %s16 = ssub.s32 %s10, 2
    %s23 = sadd.s32 1, %s18
    %p24 = scmp.ge.s32.totalorder %s23, 1
    %s25 = scalar_select %p24, 0, %s23
    %s26 = sadd.s32 1, %s17
    %s27 = scalar_select %p24, %s26, %s17
    %p28 = scmp.ge.s32.totalorder %s27, 2
    %s29 = scalar_select %p28, 0, %s27
    %s30 = ssub.s32 %s17, %s29
    %s31 = ssub.s32 %s18, %s25
    %s32 = sor.u32 %s30, %s31
    %p33 = scmp.eq.s32.totalorder %s32, 0
    %s35 = sadd.s32 %s34, 1
    %s36 = scalar_select %p33, %s34, %s35
    %p39 = pneg %p33
    %p40 = scmp.eq.s32.totalorder %s10, 1
    %p41 = por %p39, %p40
    %p42 = scmp.ne.s32.totalorder %s34, %s37
    %p43 = scmp.eq.s32.totalorder %s10, 0
    %p44 = por %p42, %p43
    %p45 = scmp.ne.s32.totalorder %s34, %s37
    %p46 = scmp.eq.s32.totalorder %s15, 1
    %p47 = por %p45, %p46
    %p48 = scmp.ne.s32.totalorder %s37, %s38
    %p49 = scmp.eq.s32.totalorder %s15, 0
    %p50 = por %p48, %p49
    %p51 = scmp.ne.s32.totalorder %s37, %s38
    %p52 = scmp.eq.s32.totalorder %s16, 1
    %p53 = por %p51, %p52
    %p55 = scmp.ne.s32.totalorder %s38, %s54
    %p56 = scmp.eq.s32.totalorder %s16, 0
    %p57 = por %p55, %p56
    %s58 = ssub.s32 %s18, %s25
    %p59 = scmp.eq.s32.totalorder %s58, 0
    %s61 = sadd.s32 %s60, 1
    %s62 = scalar_select %p59, %s60, %s61
    %p65 = pneg %p59
    %p66 = scmp.eq.s32.totalorder %s10, 1
    %p67 = por %p65, %p66
    %p68 = scmp.ne.s32.totalorder %s60, %s63
    %p69 = scmp.eq.s32.totalorder %s10, 0
    %p70 = por %p68, %p69
    %p71 = scmp.ne.s32.totalorder %s60, %s63
    %p72 = scmp.eq.s32.totalorder %s15, 1
    %p73 = por %p71, %p72
    %p74 = scmp.ne.s32.totalorder %s63, %s64
    %p75 = scmp.eq.s32.totalorder %s15, 0
    %p76 = por %p74, %p75
    %p77 = scmp.ne.s32.totalorder %s63, %s64
    %p78 = scmp.eq.s32.totalorder %s16, 1
    %p79 = por %p77, %p78
    %p81 = scmp.ne.s32.totalorder %s64, %s80
    %p82 = scmp.eq.s32.totalorder %s16, 0
    %p83 = por %p81, %p82
    %s85 = sadd.s32 %s84, 1
    %p88 = scmp.eq.s32.totalorder %s10, 1
    %p89 = scmp.ne.s32.totalorder %s84, %s86
    %p90 = scmp.eq.s32.totalorder %s10, 0
    %p91 = por %p89, %p90
    %p92 = scmp.ne.s32.totalorder %s84, %s86
    %p93 = scmp.eq.s32.totalorder %s15, 1
    %p94 = por %p92, %p93
    %p95 = scmp.ne.s32.totalorder %s86, %s87
    %p96 = scmp.eq.s32.totalorder %s15, 0
    %p97 = por %p95, %p96
    %p98 = scmp.ne.s32.totalorder %s86, %s87
    %p99 = scmp.eq.s32.totalorder %s16, 1
    %p100 = por %p98, %p99
    %p102 = scmp.ne.s32.totalorder %s87, %s101
    %p103 = scmp.eq.s32.totalorder %s16, 0
    %p104 = por %p102, %p103
    %s105 = ssub.s32 %s17, %s29
    %p106 = scmp.eq.s32.totalorder %s105, 0
    %s108 = sadd.s32 %s107, 1
    %s109 = scalar_select %p106, %s107, %s108
    %p112 = pneg %p106
    %p113 = scmp.eq.s32.totalorder %s10, 1
    %p114 = por %p112, %p113
    %p115 = scmp.ne.s32.totalorder %s107, %s110
    %p116 = scmp.eq.s32.totalorder %s10, 0
    %p117 = por %p115, %p116
    %p118 = scmp.ne.s32.totalorder %s107, %s110
    %p119 = scmp.eq.s32.totalorder %s15, 1
    %p120 = por %p118, %p119
    %p121 = scmp.ne.s32.totalorder %s110, %s111
    %p122 = scmp.eq.s32.totalorder %s15, 0
    %p123 = por %p121, %p122
    %p124 = scmp.ne.s32.totalorder %s110, %s111
    %p125 = scmp.eq.s32.totalorder %s16, 1
    %p126 = por %p124, %p125
    %p128 = scmp.ne.s32.totalorder %s111, %s127
    %p129 = scmp.eq.s32.totalorder %s16, 0
    %p130 = por %p128, %p129
    %s131 = ssub.s32 %s17, %s29
    %p132 = scmp.eq.s32.totalorder %s131, 0
    %s134 = sadd.s32 %s133, 1
    %s135 = scalar_select %p132, %s133, %s134
    %p138 = pneg %p132
    %p139 = scmp.eq.s32.totalorder %s10, 1
    %p140 = por %p138, %p139
    %p141 = scmp.ne.s32.totalorder %s133, %s136
    %p142 = scmp.eq.s32.totalorder %s10, 0
    %p143 = por %p141, %p142
    %p144 = scmp.ne.s32.totalorder %s133, %s136
    %p145 = scmp.eq.s32.totalorder %s15, 1
    %p146 = por %p144, %p145
    %p147 = scmp.ne.s32.totalorder %s136, %s137
    %p148 = scmp.eq.s32.totalorder %s15, 0
    %p149 = por %p147, %p148
    %p150 = scmp.ne.s32.totalorder %s136, %s137
    %p151 = scmp.eq.s32.totalorder %s16, 1
    %p152 = por %p150, %p151
    %p154 = scmp.ne.s32.totalorder %s137, %s153
    %p155 = scmp.eq.s32.totalorder %s16, 0
    %p156 = por %p154, %p155
    %p157 = scmp.le.s32.totalorder 1, %s10
    %p158 = scmp.lt.s32.totalorder %s10, 3
    %p159 = pnand %p157, %p158
    %p160 = pneg %p159
    // Predicated region
    $region9: #{vision_transformer_forward.14} parent=5 // pred_check
      _
    $region10: #{vision_transformer_forward.14} parent=5 // pred_check_branch
      %162 = sbr.rel (%p159) target = $region12
    $region11: #{vision_transformer_forward.14} parent=5 // pred_region
      %s163 = ssub.s32 %s10, 1
      // Predicated region
      $region13: #{vision_transformer_forward.14} parent=11 // pred_check
        %p164 = pneg %p76
      $region14: #{vision_transformer_forward.14} parent=11 // pred_check_branch
        %166 = sbr.rel (%p164) target = $region16
      $region15: #{vision_transformer_forward.14} parent=11 // pred_region
        %s167 = smul.u32 4, %s20
        %p168 = scmp.lt.s32.totalorder %s167, 3
        %s169 = scalar_select %p168, %s167, 3
        %s170 = smul.addr %s169, 4
        %s171 = scalar_lea.vmem %s1, %s170
        %s172 = smul.u32 4, %s20
      $region16: #{vision_transformer_forward.14} parent=11 // pred_fallthru
        _
      // Predicated region
      $region17: #{vision_transformer_forward.14} parent=11 // pred_check
        %p173 = pneg %p97
      $region18: #{vision_transformer_forward.14} parent=11 // pred_check_branch
        %175 = sbr.rel (%p173) target = $region20
      $region19: #{vision_transformer_forward.14} parent=11 // pred_region
        _
      $region20: #{vision_transformer_forward.14} parent=11 // pred_fallthru
        _
    $region12: #{vision_transformer_forward.14} parent=5 // pred_fallthru
      _
    %p176 = scmp.lt.s32.totalorder %s10, 2
    // Predicated region
    $region21: #{vision_transformer_forward.14} parent=5 // pred_check
      %p177 = pneg %p176
    $region22: #{vision_transformer_forward.14} parent=5 // pred_check_branch
      %179 = sbr.rel (%p177) target = $region24
    $region23: #{vision_transformer_forward.14} parent=5 // pred_region
      // Predicated region
      $region25: #{vision_transformer_forward.14} parent=23 // pred_check
        %p180 = pneg %p44
      $region26: #{vision_transformer_forward.14} parent=23 // pred_check_branch
        %182 = sbr.rel (%p180) target = $region28
      $region27: #{vision_transformer_forward.14} parent=23 // pred_region
        %p183 = scmp.lt.s32.totalorder %s17, 1
        %s184 = scalar_select %p183, %s17, 1
        %p185 = scmp.lt.s32.totalorder %s18, 0
        %s186 = scalar_select %p185, %s18, 0
        %s187 = smul.addr %s184, 3
        %s188 = sadd.s32 %s186, %s187
        %s189 = smul.addr %s188, 4
        %s190 = scalar_lea.vmem %s0, %s189
      $region28: #{vision_transformer_forward.14} parent=23 // pred_fallthru
        _
      // Predicated region
      $region29: #{vision_transformer_forward.14} parent=23 // pred_check
        %p191 = pneg %p117
      $region30: #{vision_transformer_forward.14} parent=23 // pred_check_branch
        %193 = sbr.rel (%p191) target = $region32
      $region31: #{vision_transformer_forward.14} parent=23 // pred_region
        %p194 = scmp.lt.s32.totalorder %s17, 1
        %s195 = scalar_select %p194, %s17, 1
        %s196 = smul.addr %s195, 3
        %s197 = smul.addr %s196, 4
        %s198 = scalar_lea.vmem %s3, %s197
      $region32: #{vision_transformer_forward.14} parent=23 // pred_fallthru
        _
    $region24: #{vision_transformer_forward.14} parent=5 // pred_fallthru
      _
    %p199 = scmp.le.s32.totalorder 1, %s10
    %p200 = scmp.lt.s32.totalorder %s10, 3
    %p201 = pnand %p199, %p200
    %p202 = pneg %p201
    // Predicated region
    $region33: #{vision_transformer_forward.14} parent=5 // pred_check
      _
    $region34: #{vision_transformer_forward.14} parent=5 // pred_check_branch
      %204 = sbr.rel (%p201) target = $region36
    $region35: #{vision_transformer_forward.14} parent=5 // pred_region
      %s205 = ssub.s32 %s10, 1
      %p206 = scmp.lt.s32.totalorder %s19, 1
      %s207 = scalar_select %p206, %s19, 1
      %p208 = scmp.lt.s32.totalorder %s20, 0
      %s209 = scalar_select %p208, %s20, 0
      %s210 = smul.addr %s207, 3
      %s211 = sadd.s32 %s209, %s210
      %s212 = smul.addr %s211, 4
      %s213 = scalar_lea.vmem %s0, %s212
      %p214 = pneg %p50
      %p215 = pneg %p47
      %s216 = smul.u32 4, %s20
      %p217 = scmp.lt.s32.totalorder %s216, 3
      %s218 = scalar_select %p217, %s216, 3
      %s219 = smul.addr %s218, 4
      %s220 = scalar_lea.vmem %s1, %s219
      %p221 = pneg %p76
      %p222 = pneg %p73
      %p223 = pneg %p97
      %p224 = pneg %p94
      %p225 = scmp.lt.s32.totalorder %s19, 1
      %s226 = scalar_select %p225, %s19, 1
      %s227 = smul.addr %s226, 3
      %s228 = smul.addr %s227, 4
      %s229 = scalar_lea.vmem %s3, %s228
      %p230 = pneg %p123
      %p231 = pneg %p120
      %p232 = pneg %p149
      %p233 = pneg %p146
      %p234 = scmp.lt.s32.totalorder %s19, 1
      %s235 = scalar_select %p234, %s19, 1
      %s236 = smul.addr %s235, 3
      %s237 = smul.addr %s236, 4
      %s238 = scalar_lea.vmem %s4, %s237
      %p239 = scmp.lt.s32.totalorder %s19, 1
      %s240 = scalar_select %p239, %s19, 1
      %p241 = scmp.lt.s32.totalorder %s20, 0
      %s242 = scalar_select %p241, %s20, 0
      %s243 = smul.addr %s240, 3
      %s244 = sadd.s32 %s242, %s243
      %s245 = smul.addr %s244, 4
      %s246 = scalar_lea.vmem %s0, %s245
      %s247 = smul.u32 4, %s20
      %p248 = scmp.lt.s32.totalorder %s247, 3
      %s249 = scalar_select %p248, %s247, 3
      %s250 = smul.addr %s249, 4
      %s251 = scalar_lea.vmem %s1, %s250
      %s252 = smul.u32 4, %s20
      %p253 = scmp.lt.s32.totalorder %s19, 1
      %s254 = scalar_select %p253, %s19, 1
      %s255 = smul.addr %s254, 3
      %s256 = smul.addr %s255, 4
      %s257 = scalar_lea.vmem %s3, %s256
      %p258 = scmp.lt.s32.totalorder %s19, 1
      %s259 = scalar_select %p258, %s19, 1
      %s260 = smul.addr %s259, 3
      %s261 = smul.addr %s260, 4
      %s262 = scalar_lea.vmem %s4, %s261
      %p264 = scmp.eq.s32.totalorder %s20, 0
      // Predicated region
      $region37: #{vision_transformer_forward.14} parent=35 // pred_check
        %p265 = pneg %p264
      $region38: #{vision_transformer_forward.14} parent=35 // pred_check_branch
        %267 = sbr.rel (%p265) target = $region40
      $region39: #{vision_transformer_forward.14} parent=35 // pred_region
        %vm268 = vcmask 261120
        %269 = vst.msk [vmem:[#allocation2] sm:$0xff] %vm268, 0.0
        %270 = vst.msk [vmem:[#allocation2 + $0x8] sm:$0xff] %vm268, 0.0
        %271 = vst.msk [vmem:[#allocation2 + $0x10] sm:$0xff] %vm268, 0.0
      $region40: #{vision_transformer_forward.14} parent=35 // pred_fallthru
        _
      %v272 = vld [vmem:[%s246] sm:$0xf]
      %v273 = vld [vmem:[%s246 + $0x4] sm:$0xf]
      %v274 = vld [vmem:[%s246 + $0x8] sm:$0xf]
      %v275 = vlaneseq
      %v276 = vand.u32 %v275, 127
      %vm277 = vcmp.lt.s32.totalorder %v276, 17
      %v281 = vunpack.c.l.b16 %v272
      %v282 = vunpack.c.l.b16 %v273
      %v283 = vunpack.c.l.b16 %v274
      %v284 = vpack.c.b16 %v282, %v281
      %v285 = vpack.c.b16 %v283, %v283
      %286 = vrot.lane.b32.xlu0 %v284, 96
      %v287 = vpop.permute.xlu0 %286
      %288 = vrot.lane.b32.xlu0 %v285, 96
      %v289 = vpop.permute.xlu0 %288
      %vm290 = vcmask 130048
      %v292 = vsel %vm290, %v284, 0
      %v295 = vsel %vm290, %v285, 0
      %v298 = vsel %vm290, %v287, 0
      %v301 = vsel %vm290, %v289, 0
      %303 = vmatpush.bf16.xpose.msra.mxu0 0
      %304 = vmatpush.bf16.xpose.msra.mxu0 0
      %305 = vmatpush.bf16.xpose.msra.mxu0 0
      %306 = vmatpush.bf16.xpose.msra.mxu0 0
      %307 = vmatpush.bf16.xpose.msra.mxu0 0
      %308 = vmatpush.bf16.xpose.msra.mxu0 0
      %309 = vmatpush.bf16.xpose.msra.mxu0 %v301
      %310 = vmatpush.bf16.xpose.msra.mxu0 %v298
      %311 = vmatmul.bf16.gmra.mxu0 %v292
      %v312 = vpop.f32.mrf.mxu0
      %v313 = vadd.f32 0.0, %v312
      %v314 = vpop.f32.mrf.mxu0
      %v315 = vadd.f32 0.0, %v314
      %316 = vmatmul.bf16.gmra.mxu0 %v295
      %v317 = vpop.f32.mrf.mxu0
      %v318 = vadd.f32 0.0, %v317
      %v319 = vpop.f32.mrf.mxu0
      %320 = vdwg.mxu0
      %v321 = vsel %vm277, %v313, -1e+30
      %v322 = vsel %vm277, %v315, -1e+30
      %v323 = vsel %vm277, %v318, -1e+30
      %vm324 = vcmask 195584
      %v325 = vsel %vm324, %v321, -inf
      %326 = vmax.xlane.f32.xlu0 %v325
      %v327 = vpop.xlane.xlu0 %326
      %v328 = vsel %vm324, %v322, -inf
      %329 = vmax.xlane.f32.xlu0 %v328
      %v330 = vpop.xlane.xlu0 %329
      %v331 = vsel %vm324, %v323, -inf
      %332 = vmax.xlane.f32.xlu0 %v331
      %v333 = vpop.xlane.xlu0 %332
      %v334 = vsub.f32 %v321, %v327
      %v335 = vsub.f32 %v322, %v330
      %v336 = vsub.f32 %v323, %v333
      %v337 = vmul.f32 %v334, 1.442695
      %v338 = vpow.pop %v337
      %v339 = vmul.f32 %v335, 1.442695
      %v340 = vpow.pop %v339
      %v341 = vmul.f32 %v336, 1.442695
      %v342 = vpow.pop %v341
      %v343 = vsel %vm324, %v338, 0.0
      %344 = vadd.xlane.f32.xlu0 %v343
      %v345 = vpop.xlane.xlu0 %344
      %v346 = vsel %vm324, %v340, 0.0
      %347 = vadd.xlane.f32.xlu0 %v346
      %v348 = vpop.xlane.xlu0 %347
      %v349 = vsel %vm324, %v342, 0.0
      %350 = vadd.xlane.f32.xlu0 %v349
      %v351 = vpop.xlane.xlu0 %350
      %v352 = vrcp.pop %v345
      %v353 = vrcp.pop %v348
      %v354 = vrcp.pop %v351
      %v355 = vmul.f32 %v338, %v352
      %v356 = vmul.f32 %v340, %v353
      %v357 = vmul.f32 %v342, %v354
      %v358 = vpack.c.bf16 %v356, %v355
      %v359 = vpack.c.bf16 %v357, %v357
      %360 = vrot.lane.b32.xlu0 %v284, 64
      %v361 = vpop.permute.xlu0 %360
      %362 = vrot.lane.b32.xlu0 %v285, 64
      %v363 = vpop.permute.xlu0 %362
      %v366 = vsel %vm324, %v358, 0
      %v369 = vsel %vm324, %v359, 0
      %vm371 = vcmask 1043456
      %v373 = vsel %vm371, %v363, 0
      %375 = vmatpush.bf16.msra.mxu0 0
      %376 = vmatpush.bf16.msra.mxu0 0
      %377 = vmatpush.bf16.msra.mxu0 0
      %378 = vmatpush.bf16.msra.mxu0 0
      %379 = vmatpush.bf16.msra.mxu0 0
      %380 = vmatpush.bf16.msra.mxu0 0
      %381 = vmatpush.bf16.msra.mxu0 %v373
      %382 = vmatpush.bf16.msra.mxu0 %v361
      %383 = vmatmul.bf16.gmra.mxu0 %v366
      %v384 = vpop.f32.mrf.mxu0
      %v385 = vadd.f32 0.0, %v384
      %v386 = vpop.f32.mrf.mxu0
      %v387 = vadd.f32 0.0, %v386
      %388 = vmatmul.bf16.gmra.mxu0 %v369
      %v389 = vpop.f32.mrf.mxu0
      %v390 = vadd.f32 0.0, %v389
      %v391 = vpop.f32.mrf.mxu0
      %392 = vdwg.mxu0
      %v393 = vld [vmem:[#allocation2] sm:$0xff]
      %v394 = vld [vmem:[#allocation2 + $0x8] sm:$0xff]
      %v395 = vld [vmem:[#allocation2 + $0x10] sm:$0xff]
      %v396 = vpack.c.bf16 %v387, %v385
      %v397 = vpack.c.bf16 %v390, %v390
      %v398 = vld [vmem:[%s251] sm:$0xf]
      %v399 = vld [vmem:[%s251 + $0x4] sm:$0xf]
      %v402 = vunpack.c.l.b16 %v398
      %v403 = vunpack.c.l.b16 %v399
      %v404 = vpack.c.b16 %v403, %v402
      %v407 = vsel %vm290, %v396, 0
      %v410 = vsel %vm290, %v397, 0
      %412 = vmatpush.bf16.msra.mxu0 0
      %413 = vmatpush.bf16.msra.mxu0 0
      %414 = vmatpush.bf16.msra.mxu0 0
      %415 = vmatpush.bf16.msra.mxu0 0
      %416 = vmatpush.bf16.msra.mxu0 0
      %417 = vmatpush.bf16.msra.mxu0 0
      %418 = vmatpush.bf16.msra.mxu0 0
      %419 = vmatpush.bf16.msra.mxu0 %v404
      %420 = vmatmul.bf16.gmra.mxu0 %v407
      %v421 = vpop.f32.mrf.mxu0
      %v422 = vadd.f32 0.0, %v421
      %v423 = vpop.f32.mrf.mxu0
      %v424 = vadd.f32 0.0, %v423
      %425 = vmatmul.bf16.gmra.mxu0 %v410
      %v426 = vpop.f32.mrf.mxu0
      %v427 = vadd.f32 0.0, %v426
      %v428 = vpop.f32.mrf.mxu0
      %429 = vdwg.mxu0
      %v430 = vadd.f32 %v393, %v422
      %v431 = vadd.f32 %v394, %v424
      %v432 = vadd.f32 %v395, %v427
      %vm433 = vcmask 261120
      %434 = vst.msk [vmem:[#allocation2] sm:$0xff] %vm433, %v430
      %435 = vst.msk [vmem:[#allocation2 + $0x8] sm:$0xff] %vm433, %v431
      %436 = vst.msk [vmem:[#allocation2 + $0x10] sm:$0xff] %vm433, %v432
      %437 = vrot.lane.b32.xlu0 %v284, 112
      %v438 = vpop.permute.xlu0 %437
      %439 = vrot.lane.b32.xlu0 %v285, 112
      %v440 = vpop.permute.xlu0 %439
      %441 = vrot.lane.b32.xlu0 %v284, 80
      %v442 = vpop.permute.xlu0 %441
      %443 = vrot.lane.b32.xlu0 %v285, 80
      %v444 = vpop.permute.xlu0 %443
      %v446 = vsel %vm290, %v438, 0
      %v449 = vsel %vm290, %v440, 0
      %v452 = vsel %vm290, %v442, 0
      %v455 = vsel %vm290, %v444, 0
      %457 = vmatpush.bf16.xpose.msra.mxu0 0
      %458 = vmatpush.bf16.xpose.msra.mxu0 0
      %459 = vmatpush.bf16.xpose.msra.mxu0 0
      %460 = vmatpush.bf16.xpose.msra.mxu0 0
      %461 = vmatpush.bf16.xpose.msra.mxu0 0
      %462 = vmatpush.bf16.xpose.msra.mxu0 0
      %463 = vmatpush.bf16.xpose.msra.mxu0 %v455
      %464 = vmatpush.bf16.xpose.msra.mxu0 %v452
      %465 = vmatmul.bf16.gmra.mxu0 %v446
      %v466 = vpop.f32.mrf.mxu0
      %v467 = vadd.f32 0.0, %v466
      %v468 = vpop.f32.mrf.mxu0
      %v469 = vadd.f32 0.0, %v468
      %470 = vmatmul.bf16.gmra.mxu0 %v449
      %v471 = vpop.f32.mrf.mxu0
      %v472 = vadd.f32 0.0, %v471
      %v473 = vpop.f32.mrf.mxu0
      %474 = vdwg.mxu0
      %v475 = vsel %vm277, %v467, -1e+30
      %v476 = vsel %vm277, %v469, -1e+30
      %v477 = vsel %vm277, %v472, -1e+30
      %v478 = vsel %vm324, %v475, -inf
      %479 = vmax.xlane.f32.xlu0 %v478
      %v480 = vpop.xlane.xlu0 %479
      %v481 = vsel %vm324, %v476, -inf
      %482 = vmax.xlane.f32.xlu0 %v481
      %v483 = vpop.xlane.xlu0 %482
      %v484 = vsel %vm324, %v477, -inf
      %485 = vmax.xlane.f32.xlu0 %v484
      %v486 = vpop.xlane.xlu0 %485
      %v487 = vsub.f32 %v475, %v480
      %v488 = vsub.f32 %v476, %v483
      %v489 = vsub.f32 %v477, %v486
      %v490 = vmul.f32 %v487, 1.442695
      %v491 = vpow.pop %v490
      %v492 = vmul.f32 %v488, 1.442695
      %v493 = vpow.pop %v492
      %v494 = vmul.f32 %v489, 1.442695
      %v495 = vpow.pop %v494
      %v496 = vsel %vm324, %v491, 0.0
      %497 = vadd.xlane.f32.xlu0 %v496
      %v498 = vpop.xlane.xlu0 %497
      %v499 = vsel %vm324, %v493, 0.0
      %500 = vadd.xlane.f32.xlu0 %v499
      %v501 = vpop.xlane.xlu0 %500
      %v502 = vsel %vm324, %v495, 0.0
      %503 = vadd.xlane.f32.xlu0 %v502
      %v504 = vpop.xlane.xlu0 %503
      %v505 = vrcp.pop %v498
      %v506 = vrcp.pop %v501
      %v507 = vrcp.pop %v504
      %v508 = vmul.f32 %v491, %v505
      %v509 = vmul.f32 %v493, %v506
      %v510 = vmul.f32 %v495, %v507
      %v511 = vpack.c.bf16 %v509, %v508
      %v512 = vpack.c.bf16 %v510, %v510
      %513 = vrot.lane.b32.xlu0 %v284, 48
      %v514 = vpop.permute.xlu0 %513
      %515 = vrot.lane.b32.xlu0 %v285, 48
      %v516 = vpop.permute.xlu0 %515
      %v519 = vsel %vm324, %v511, 0
      %v522 = vsel %vm324, %v512, 0
      %v525 = vsel %vm371, %v516, 0
      %527 = vmatpush.bf16.msra.mxu0 0
      %528 = vmatpush.bf16.msra.mxu0 0
      %529 = vmatpush.bf16.msra.mxu0 0
      %530 = vmatpush.bf16.msra.mxu0 0
      %531 = vmatpush.bf16.msra.mxu0 0
      %532 = vmatpush.bf16.msra.mxu0 0
      %533 = vmatpush.bf16.msra.mxu0 %v525
      %534 = vmatpush.bf16.msra.mxu0 %v514
      %535 = vmatmul.bf16.gmra.mxu0 %v519
      %v536 = vpop.f32.mrf.mxu0
      %v537 = vadd.f32 0.0, %v536
      %v538 = vpop.f32.mrf.mxu0
      %v539 = vadd.f32 0.0, %v538
      %540 = vmatmul.bf16.gmra.mxu0 %v522
      %v541 = vpop.f32.mrf.mxu0
      %v542 = vadd.f32 0.0, %v541
      %v543 = vpop.f32.mrf.mxu0
      %544 = vdwg.mxu0
      %v545 = vld [vmem:[#allocation2] sm:$0xff]
      %v546 = vld [vmem:[#allocation2 + $0x8] sm:$0xff]
      %v547 = vld [vmem:[#allocation2 + $0x10] sm:$0xff]
      %v548 = vpack.c.bf16 %v539, %v537
      %v549 = vpack.c.bf16 %v542, %v542
      %v550 = vld [vmem:[%s251 + $0x8] sm:$0xf]
      %v551 = vld [vmem:[%s251 + $0xc] sm:$0xf]
      %v554 = vunpack.c.l.b16 %v550
      %v555 = vunpack.c.l.b16 %v551
      %v556 = vpack.c.b16 %v555, %v554
      %v559 = vsel %vm290, %v548, 0
      %v562 = vsel %vm290, %v549, 0
      %564 = vmatpush.bf16.msra.mxu0 0
      %565 = vmatpush.bf16.msra.mxu0 0
      %566 = vmatpush.bf16.msra.mxu0 0
      %567 = vmatpush.bf16.msra.mxu0 0
      %568 = vmatpush.bf16.msra.mxu0 0
      %569 = vmatpush.bf16.msra.mxu0 0
      %570 = vmatpush.bf16.msra.mxu0 0
      %571 = vmatpush.bf16.msra.mxu0 %v556
      %572 = vmatmul.bf16.gmra.mxu0 %v559
      %v573 = vpop.f32.mrf.mxu0
      %v574 = vadd.f32 0.0, %v573
      %v575 = vpop.f32.mrf.mxu0
      %v576 = vadd.f32 0.0, %v575
      %577 = vmatmul.bf16.gmra.mxu0 %v562
      %v578 = vpop.f32.mrf.mxu0
      %v579 = vadd.f32 0.0, %v578
      %v580 = vpop.f32.mrf.mxu0
      %581 = vdwg.mxu0
      %v582 = vadd.f32 %v545, %v574
      %v583 = vadd.f32 %v546, %v576
      %v584 = vadd.f32 %v547, %v579
      %585 = vst.msk [vmem:[#allocation2] sm:$0xff] %vm433, %v582
      %586 = vst.msk [vmem:[#allocation2 + $0x8] sm:$0xff] %vm433, %v583
      %587 = vst.msk [vmem:[#allocation2 + $0x10] sm:$0xff] %vm433, %v584
      // Predicated region
      $region41: #{vision_transformer_forward.14} parent=35 // pred_check
        %p588 = pneg %p264
      $region42: #{vision_transformer_forward.14} parent=35 // pred_check_branch
        %590 = sbr.rel (%p588) target = $region44
      $region43: #{vision_transformer_forward.14} parent=35 // pred_region
        %v591 = vld [vmem:[#allocation2] sm:$0xff]
        %v592 = vld [vmem:[#allocation2 + $0x8] sm:$0xff]
        %v593 = vld [vmem:[#allocation2 + $0x10] sm:$0xff]
        %v594 = vld [vmem:[%s2] sm:$0x1]
        %v596 = vperm.slane %v594, 0
        %v598 = vadd.f32 %v591, %v596
        %v599 = vadd.f32 %v592, %v596
        %v600 = vadd.f32 %v593, %v596
        %v601 = vld [vmem:[%s257] sm:$0xf]
        %v602 = vld [vmem:[%s257 + $0x4] sm:$0xf]
        %v603 = vld [vmem:[%s257 + $0x8] sm:$0xf]
        %v604 = vunpack.c.l.bf16 %v601
        %v605 = vunpack.c.l.bf16 %v602
        %v606 = vunpack.c.l.bf16 %v603
        %v607 = vadd.f32 %v598, %v604
        %v608 = vadd.f32 %v599, %v605
        %v609 = vadd.f32 %v600, %v606
        %v610 = vpack.c.bf16 %v607, %v607
        %v611 = vpack.c.bf16 %v608, %v608
        %v612 = vpack.c.bf16 %v609, %v609
        %vm613 = vcmask 257024
        %614 = vst.msk [vmem:[%s262] sm:$0xf] %vm613, %v610
        %615 = vst.msk [vmem:[%s262 + $0x4] sm:$0xf] %vm613, %v611
        %616 = vst.msk [vmem:[%s262 + $0x8] sm:$0xf] %vm613, %v612
      $region44: #{vision_transformer_forward.14} parent=35 // pred_fallthru
        _
      %p617 = scmp.lt.s32.totalorder %s19, 1
      %s618 = scalar_select %p617, %s19, 1
      %s619 = smul.addr %s618, 3
      %s620 = smul.addr %s619, 4
      %s621 = scalar_lea.vmem %s4, %s620
      // Predicated region
      $region45: #{vision_transformer_forward.14} parent=35 // pred_check
        %p622 = pneg %p146
      $region46: #{vision_transformer_forward.14} parent=35 // pred_check_branch
        %624 = sbr.rel (%p622) target = $region48
      $region47: #{vision_transformer_forward.14} parent=35 // pred_region
        _
      $region48: #{vision_transformer_forward.14} parent=35 // pred_fallthru
        _
    $region36: #{vision_transformer_forward.14} parent=5 // pred_fallthru
      _
    %p625 = scmp.le.s32.totalorder 2, %s10
    // Predicated region
    $region49: #{vision_transformer_forward.14} parent=5 // pred_check
      %p626 = pneg %p625
    $region50: #{vision_transformer_forward.14} parent=5 // pred_check_branch
      %628 = sbr.rel (%p626) target = $region52
    $region51: #{vision_transformer_forward.14} parent=5 // pred_region
      %s629 = ssub.s32 %s10, 2
      // Predicated region
      $region53: #{vision_transformer_forward.14} parent=51 // pred_check
        %p630 = pneg %p152
      $region54: #{vision_transformer_forward.14} parent=51 // pred_check_branch
        %632 = sbr.rel (%p630) target = $region56
      $region55: #{vision_transformer_forward.14} parent=51 // pred_region
        %p633 = scmp.lt.s32.totalorder %s21, 1
        %s634 = scalar_select %p633, %s21, 1
        %s635 = smul.addr %s634, 3
        %s636 = smul.addr %s635, 4
        %s637 = scalar_lea.vmem %s4, %s636
      $region56: #{vision_transformer_forward.14} parent=51 // pred_fallthru
        _
    $region52: #{vision_transformer_forward.14} parent=5 // pred_fallthru
      _
  $region6: #{vision_transformer_forward.14} parent=0 // loop_footer
    %s14 = sadd.s32 1, %s10
  $region7: #{vision_transformer_forward.14} parent=0 // loop_footer_branch
    %9 = sbr.rel target = $region3
  $region8: #{vision_transformer_forward.14} parent=0 // loop_exit
    _

// kernel: vision_transformer_forward.15
$region0: #{vision_transformer_forward.15}
  #allocation0 [shape = 'u32[]', space=smem, size = 0x4, offset = 0x4, fixed_abs, tag = 'smem constant byte address 0x4 - core index']
  #allocation1 [shape = 'u32[72,128]{1,0:T(1,128)}', space=vmem, size = 0x9000, scoped, tag = 'internal scratch']
  #allocation2 [shape = 'bf16[48,32]{1,0:T(8,128)(2,1)}', space=vmem, size = 0x3000, scoped, tag = 'scratch operand']
  %s0 = inlined_call_operand.vmem [shape: bf16[48,32], index: 0, kind: input, shape index: {}]
  %s1 = inlined_call_operand.vmem [shape: f32[1,32], index: 1, kind: input, shape index: {}]
  %s2 = inlined_call_operand.vmem [shape: f32[1,32], index: 2, kind: input, shape index: {}]
  %s3 = inlined_call_operand.vmem [shape: bf16[32,128], index: 3, kind: input, shape index: {}]
  %s4 = inlined_call_operand.vmem [shape: f32[1,128], index: 4, kind: input, shape index: {}]
  %s5 = inlined_call_operand.vmem [shape: bf16[48,128], index: 5, kind: output, shape index: {}]
  %s6 = sld [smem:[#allocation0]]
  $region34: #{vision_transformer_forward.15} parent=0
    _
  %s8 = ssub.s32 1, %s6
  %s9 = scalar_select 0, %s8, %s6
  // Predicated region
  $region2: #{vision_transformer_forward.15} parent=0 // pred_check
    _
  $region3: #{vision_transformer_forward.15} parent=0 // pred_check_branch
    %11 = sbr.rel (0) target = $region5
  $region4: #{vision_transformer_forward.15} parent=0 // pred_region
    _
  $region5: #{vision_transformer_forward.15} parent=0 // pred_fallthru
    _
  // Predicated region
  $region6: #{vision_transformer_forward.15} parent=0 // pred_check
    _
  $region7: #{vision_transformer_forward.15} parent=0 // pred_check_branch
    %13 = sbr.rel (0) target = $region9
  $region8: #{vision_transformer_forward.15} parent=0 // pred_region
    _
  $region9: #{vision_transformer_forward.15} parent=0 // pred_fallthru
    _
  // Predicated region
  $region10: #{vision_transformer_forward.15} parent=0 // pred_check
    _
  $region11: #{vision_transformer_forward.15} parent=0 // pred_check_branch
    %15 = sbr.rel (0) target = $region13
  $region12: #{vision_transformer_forward.15} parent=0 // pred_region
    _
  $region13: #{vision_transformer_forward.15} parent=0 // pred_fallthru
    _
  // Predicated region
  $region14: #{vision_transformer_forward.15} parent=0 // pred_check
    _
  $region15: #{vision_transformer_forward.15} parent=0 // pred_check_branch
    %17 = sbr.rel (0) target = $region17
  $region16: #{vision_transformer_forward.15} parent=0 // pred_region
    _
  $region17: #{vision_transformer_forward.15} parent=0 // pred_fallthru
    _
  // Predicated region
  $region18: #{vision_transformer_forward.15} parent=0 // pred_check
    _
  $region19: #{vision_transformer_forward.15} parent=0 // pred_check_branch
    %19 = sbr.rel (0) target = $region21
  $region20: #{vision_transformer_forward.15} parent=0 // pred_region
    _
  $region21: #{vision_transformer_forward.15} parent=0 // pred_fallthru
    _
  %p21 = scmp.eq.s32.totalorder 0, 0
  // Predicated region
  $region22: #{vision_transformer_forward.15} parent=0 // pred_check
    %p22 = pneg %p21
  $region23: #{vision_transformer_forward.15} parent=0 // pred_check_branch
    %24 = sbr.rel (%p22) target = $region25
  $region24: #{vision_transformer_forward.15} parent=0 // pred_region
    %v25 = vld [vmem:[%s0] sm:$0xf]
    %v26 = vld [vmem:[%s0 + $0x4] sm:$0xf]
    %v27 = vld [vmem:[%s0 + $0x8] sm:$0xf]
    %v28 = vld [vmem:[%s0 + $0xc] sm:$0xf]
    %v29 = vld [vmem:[%s0 + $0x10] sm:$0xf]
    %v30 = vld [vmem:[%s0 + $0x14] sm:$0xf]
    %v31 = vunpack.c.l.bf16 %v25
    %v32 = vunpack.c.l.bf16 %v26
    %v33 = vunpack.c.l.bf16 %v27
    %v34 = vunpack.c.l.bf16 %v28
    %v35 = vunpack.c.l.bf16 %v29
    %v36 = vunpack.c.l.bf16 %v30
    %vm37 = vcmask 261120
    %v38 = vsel %vm37, %v31, 0.0
    %39 = vadd.xlane.f32.xlu0 %v38
    %v40 = vpop.xlane.xlu0 %39
    %v41 = vsel %vm37, %v32, 0.0
    %42 = vadd.xlane.f32.xlu0 %v41
    %v43 = vpop.xlane.xlu0 %42
    %v44 = vsel %vm37, %v33, 0.0
    %45 = vadd.xlane.f32.xlu0 %v44
    %v46 = vpop.xlane.xlu0 %45
    %v47 = vsel %vm37, %v34, 0.0
    %48 = vadd.xlane.f32.xlu0 %v47
    %v49 = vpop.xlane.xlu0 %48
    %v50 = vsel %vm37, %v35, 0.0
    %51 = vadd.xlane.f32.xlu0 %v50
    %v52 = vpop.xlane.xlu0 %51
    %v53 = vsel %vm37, %v36, 0.0
    %54 = vadd.xlane.f32.xlu0 %v53
    %v55 = vpop.xlane.xlu0 %54
    %v56 = vrcp.pop 32.0
    %v57 = vmul.f32 32.0, %v56
    %v58 = vsub.f32 1.0, %v57
    %v59 = vmul.f32 %v56, %v58
    %v60 = vadd.f32 %v56, %v59
    %vm61 = vweird.f32 %v56
    %v62 = vsel %vm61, %v56, %v60
    %v63 = vmul.f32 %v40, %v62
    %v64 = vmul.f32 %v43, %v62
    %v65 = vmul.f32 %v46, %v62
    %v66 = vmul.f32 %v49, %v62
    %v67 = vmul.f32 %v52, %v62
    %v68 = vmul.f32 %v55, %v62
    %v69 = vsub.f32 %v31, %v63
    %v70 = vsub.f32 %v32, %v64
    %v71 = vsub.f32 %v33, %v65
    %v72 = vsub.f32 %v34, %v66
    %v73 = vsub.f32 %v35, %v67
    %v74 = vsub.f32 %v36, %v68
    %v75 = vmul.f32 %v69, %v69
    %v76 = vmul.f32 %v70, %v70
    %v77 = vmul.f32 %v71, %v71
    %v78 = vmul.f32 %v72, %v72
    %v79 = vmul.f32 %v73, %v73
    %v80 = vmul.f32 %v74, %v74
    %v81 = vsel %vm37, %v75, 0.0
    %82 = vadd.xlane.f32.xlu0 %v81
    %v83 = vpop.xlane.xlu0 %82
    %v84 = vsel %vm37, %v76, 0.0
    %85 = vadd.xlane.f32.xlu0 %v84
    %v86 = vpop.xlane.xlu0 %85
    %v87 = vsel %vm37, %v77, 0.0
    %88 = vadd.xlane.f32.xlu0 %v87
    %v89 = vpop.xlane.xlu0 %88
    %v90 = vsel %vm37, %v78, 0.0
    %91 = vadd.xlane.f32.xlu0 %v90
    %v92 = vpop.xlane.xlu0 %91
    %v93 = vsel %vm37, %v79, 0.0
    %94 = vadd.xlane.f32.xlu0 %v93
    %v95 = vpop.xlane.xlu0 %94
    %v96 = vsel %vm37, %v80, 0.0
    %97 = vadd.xlane.f32.xlu0 %v96
    %v98 = vpop.xlane.xlu0 %97
    %v99 = vmul.f32 %v83, %v62
    %v100 = vmul.f32 %v86, %v62
    %v101 = vmul.f32 %v89, %v62
    %v102 = vmul.f32 %v92, %v62
    %v103 = vmul.f32 %v95, %v62
    %v104 = vmul.f32 %v98, %v62
    %v105 = vadd.f32 %v99, 1e-05
    %v106 = vadd.f32 %v100, 1e-05
    %v107 = vadd.f32 %v101, 1e-05
    %v108 = vadd.f32 %v102, 1e-05
    %v109 = vadd.f32 %v103, 1e-05
    %v110 = vadd.f32 %v104, 1e-05
    %v111 = vrsqrt.pop %v105
    %v112 = vmul.f32 %v111, %v105
    %v113 = vmul.f32 %v112, %v111
    %v114 = vmul.f32 0.5, %v113
    %v115 = vsub.f32 1.5, %v114
    %v116 = vmul.f32 %v111, %v115
    %vm117 = vweird.f32 %v105
    %vm118 = vweird.f32 %v111
    %vm119 = vmor %vm117, %vm118
    %v120 = vsel %vm119, %v111, %v116
    %v121 = vrsqrt.pop %v106
    %v122 = vmul.f32 %v121, %v106
    %v123 = vmul.f32 %v122, %v121
    %v124 = vmul.f32 0.5, %v123
    %v125 = vsub.f32 1.5, %v124
    %v126 = vmul.f32 %v121, %v125
    %vm127 = vweird.f32 %v106
    %vm128 = vweird.f32 %v121
    %vm129 = vmor %vm127, %vm128
    %v130 = vsel %vm129, %v121, %v126
    %v131 = vrsqrt.pop %v107
    %v132 = vmul.f32 %v131, %v107
    %v133 = vmul.f32 %v132, %v131
    %v134 = vmul.f32 0.5, %v133
    %v135 = vsub.f32 1.5, %v134
    %v136 = vmul.f32 %v131, %v135
    %vm137 = vweird.f32 %v107
    %vm138 = vweird.f32 %v131
    %vm139 = vmor %vm137, %vm138
    %v140 = vsel %vm139, %v131, %v136
    %v141 = vrsqrt.pop %v108
    %v142 = vmul.f32 %v141, %v108
    %v143 = vmul.f32 %v142, %v141
    %v144 = vmul.f32 0.5, %v143
    %v145 = vsub.f32 1.5, %v144
    %v146 = vmul.f32 %v141, %v145
    %vm147 = vweird.f32 %v108
    %vm148 = vweird.f32 %v141
    %vm149 = vmor %vm147, %vm148
    %v150 = vsel %vm149, %v141, %v146
    %v151 = vrsqrt.pop %v109
    %v152 = vmul.f32 %v151, %v109
    %v153 = vmul.f32 %v152, %v151
    %v154 = vmul.f32 0.5, %v153
    %v155 = vsub.f32 1.5, %v154
    %v156 = vmul.f32 %v151, %v155
    %vm157 = vweird.f32 %v109
    %vm158 = vweird.f32 %v151
    %vm159 = vmor %vm157, %vm158
    %v160 = vsel %vm159, %v151, %v156
    %v161 = vrsqrt.pop %v110
    %v162 = vmul.f32 %v161, %v110
    %v163 = vmul.f32 %v162, %v161
    %v164 = vmul.f32 0.5, %v163
    %v165 = vsub.f32 1.5, %v164
    %v166 = vmul.f32 %v161, %v165
    %vm167 = vweird.f32 %v110
    %vm168 = vweird.f32 %v161
    %vm169 = vmor %vm167, %vm168
    %v170 = vsel %vm169, %v161, %v166
    %v171 = vmul.f32 %v69, %v120
    %v172 = vmul.f32 %v70, %v130
    %v173 = vmul.f32 %v71, %v140
    %v174 = vmul.f32 %v72, %v150
    %v175 = vmul.f32 %v73, %v160
    %v176 = vmul.f32 %v74, %v170
    %v177 = vld [vmem:[%s1] sm:$0x1]
    %v179 = vperm.slane %v177, 0
    %v181 = vmul.f32 %v171, %v179
    %v182 = vmul.f32 %v172, %v179
    %v183 = vmul.f32 %v173, %v179
    %v184 = vmul.f32 %v174, %v179
    %v185 = vmul.f32 %v175, %v179
    %v186 = vmul.f32 %v176, %v179
    %v187 = vld [vmem:[%s2] sm:$0x1]
    %v189 = vperm.slane %v187, 0
    %v191 = vadd.f32 %v181, %v189
    %v192 = vadd.f32 %v182, %v189
    %v193 = vadd.f32 %v183, %v189
    %v194 = vadd.f32 %v184, %v189
    %v195 = vadd.f32 %v185, %v189
    %v196 = vadd.f32 %v186, %v189
    %v197 = vpack.c.bf16 %v191, %v191
    %v198 = vpack.c.bf16 %v192, %v192
    %v199 = vpack.c.bf16 %v193, %v193
    %v200 = vpack.c.bf16 %v194, %v194
    %v201 = vpack.c.bf16 %v195, %v195
    %v202 = vpack.c.bf16 %v196, %v196
    %vm203 = vcmask 257024
    %204 = vst.msk [vmem:[#allocation2] sm:$0xf] %vm203, %v197
    %205 = vst.msk [vmem:[#allocation2 + $0x4] sm:$0xf] %vm203, %v198
    %206 = vst.msk [vmem:[#allocation2 + $0x8] sm:$0xf] %vm203, %v199
    %207 = vst.msk [vmem:[#allocation2 + $0xc] sm:$0xf] %vm203, %v200
    %208 = vst.msk [vmem:[#allocation2 + $0x10] sm:$0xf] %vm203, %v201
    %209 = vst.msk [vmem:[#allocation2 + $0x14] sm:$0xf] %vm203, %v202
  $region25: #{vision_transformer_forward.15} parent=0 // pred_fallthru
    _
  %v210 = vld [vmem:[#allocation2] sm:$0xf]
  %v211 = vld [vmem:[#allocation2 + $0x4] sm:$0xf]
  %v212 = vld [vmem:[#allocation2 + $0x8] sm:$0xf]
  %v213 = vld [vmem:[#allocation2 + $0xc] sm:$0xf]
  %v214 = vld [vmem:[#allocation2 + $0x10] sm:$0xf]
  %v215 = vld [vmem:[#allocation2 + $0x14] sm:$0xf]
  %v216 = vld [vmem:[%s3] sm:$0xf]
  %v217 = vld [vmem:[%s3 + $0x4] sm:$0xf]
  %v218 = vld [vmem:[%s3 + $0x8] sm:$0xf]
  %v219 = vld [vmem:[%s3 + $0xc] sm:$0xf]
  %v220 = vld [vmem:[%s4] sm:$0x1]
  %v222 = vperm.slane %v220, 0
  %v230 = vunpack.c.l.b16 %v210
  %v231 = vunpack.c.l.b16 %v211
  %v232 = vunpack.c.l.b16 %v212
  %v233 = vunpack.c.l.b16 %v213
  %v234 = vunpack.c.l.b16 %v214
  %v235 = vunpack.c.l.b16 %v215
  %v236 = vpack.c.b16 %v231, %v230
  %v237 = vpack.c.b16 %v233, %v232
  %v238 = vpack.c.b16 %v235, %v234
  %v243 = vunpack.c.l.b16 %v216
  %v244 = vunpack.c.l.b16 %v217
  %v245 = vunpack.c.l.b16 %v218
  %v246 = vunpack.c.l.b16 %v219
  %v247 = vpack.c.b16 %v244, %v243
  %v248 = vpack.c.b16 %v246, %v245
  %vm251 = vcmask 261120
  %v253 = vsel %vm251, %v236, 0
  %v256 = vsel %vm251, %v237, 0
  %v259 = vsel %vm251, %v238, 0
  %261 = vmatpush.bf16.msra.mxu0 0
  %262 = vmatpush.bf16.msra.mxu0 0
  %263 = vmatpush.bf16.msra.mxu0 0
  %264 = vmatpush.bf16.msra.mxu0 0
  %265 = vmatpush.bf16.msra.mxu0 0
  %266 = vmatpush.bf16.msra.mxu0 0
  %267 = vmatpush.bf16.msra.mxu0 %v248
  %268 = vmatpush.bf16.msra.mxu0 %v247
  %269 = vmatmul.bf16.gmra.mxu0 %v253
  %v270 = vpop.f32.mrf.mxu0
  %v271 = vadd.f32 %v222, %v270
  %v272 = vpop.f32.mrf.mxu0
  %v273 = vadd.f32 %v222, %v272
  %274 = vmatmul.bf16.gmra.mxu0 %v256
  %v275 = vpop.f32.mrf.mxu0
  %v276 = vadd.f32 %v222, %v275
  %v277 = vpop.f32.mrf.mxu0
  %v278 = vadd.f32 %v222, %v277
  %279 = vmatmul.bf16.gmra.mxu0 %v259
  %v280 = vpop.f32.mrf.mxu0
  %v281 = vadd.f32 %v222, %v280
  %v282 = vpop.f32.mrf.mxu0
  %v283 = vadd.f32 %v222, %v282
  %284 = vdwg.mxu0
  %v285 = vmul.f32 %v271, 1.702
  %v286 = vmul.f32 %v273, 1.702
  %v287 = vmul.f32 %v276, 1.702
  %v288 = vmul.f32 %v278, 1.702
  %v289 = vmul.f32 %v281, 1.702
  %v290 = vmul.f32 %v283, 1.702
  %v291 = vxor.u32 %v285, 2147483648
  %v292 = vxor.u32 %v286, 2147483648
  %v293 = vxor.u32 %v287, 2147483648
  %v294 = vxor.u32 %v288, 2147483648
  %v295 = vxor.u32 %v289, 2147483648
  %v296 = vxor.u32 %v290, 2147483648
  %v297 = vmul.f32 %v291, 1.442695
  %v298 = vpow.pop %v297
  %v299 = vmul.f32 %v292, 1.442695
  %v300 = vpow.pop %v299
  %v301 = vmul.f32 %v293, 1.442695
  %v302 = vpow.pop %v301
  %v303 = vmul.f32 %v294, 1.442695
  %v304 = vpow.pop %v303
  %v305 = vmul.f32 %v295, 1.442695
  %v306 = vpow.pop %v305
  %v307 = vmul.f32 %v296, 1.442695
  %v308 = vpow.pop %v307
  %v309 = vadd.f32 %v298, 1.0
  %v310 = vadd.f32 %v300, 1.0
  %v311 = vadd.f32 %v302, 1.0
  %v312 = vadd.f32 %v304, 1.0
  %v313 = vadd.f32 %v306, 1.0
  %v314 = vadd.f32 %v308, 1.0
  %v315 = vrcp.pop %v309
  %v316 = vmul.f32 %v309, %v315
  %v317 = vsub.f32 1.0, %v316
  %v318 = vmul.f32 %v315, %v317
  %v319 = vadd.f32 %v315, %v318
  %vm320 = vweird.f32 %v309
  %vm321 = vweird.f32 %v315
  %vm322 = vmor %vm320, %vm321
  %v323 = vsel %vm322, %v315, %v319
  %v324 = vand.u32 2147483647, %v309
  %vm325 = vcmp.eq.f32.partialorder %v324, 8.507059e+37
  %v326 = vand.u32 %v309, 2147483648
  %v327 = vor.u32 1.1754944e-38, %v326
  %v328 = vsel %vm325, %v327, %v323
  %v329 = vmul.f32 1.0, %v328
  %v330 = vrcp.pop %v310
  %v331 = vmul.f32 %v310, %v330
  %v332 = vsub.f32 1.0, %v331
  %v333 = vmul.f32 %v330, %v332
  %v334 = vadd.f32 %v330, %v333
  %vm335 = vweird.f32 %v310
  %vm336 = vweird.f32 %v330
  %vm337 = vmor %vm335, %vm336
  %v338 = vsel %vm337, %v330, %v334
  %v339 = vand.u32 2147483647, %v310
  %vm340 = vcmp.eq.f32.partialorder %v339, 8.507059e+37
  %v341 = vand.u32 %v310, 2147483648
  %v342 = vor.u32 1.1754944e-38, %v341
  %v343 = vsel %vm340, %v342, %v338
  %v344 = vmul.f32 1.0, %v343
  %v345 = vrcp.pop %v311
  %v346 = vmul.f32 %v311, %v345
  %v347 = vsub.f32 1.0, %v346
  %v348 = vmul.f32 %v345, %v347
  %v349 = vadd.f32 %v345, %v348
  %vm350 = vweird.f32 %v311
  %vm351 = vweird.f32 %v345
  %vm352 = vmor %vm350, %vm351
  %v353 = vsel %vm352, %v345, %v349
  %v354 = vand.u32 2147483647, %v311
  %vm355 = vcmp.eq.f32.partialorder %v354, 8.507059e+37
  %v356 = vand.u32 %v311, 2147483648
  %v357 = vor.u32 1.1754944e-38, %v356
  %v358 = vsel %vm355, %v357, %v353
  %v359 = vmul.f32 1.0, %v358
  %v360 = vrcp.pop %v312
  %v361 = vmul.f32 %v312, %v360
  %v362 = vsub.f32 1.0, %v361
  %v363 = vmul.f32 %v360, %v362
  %v364 = vadd.f32 %v360, %v363
  %vm365 = vweird.f32 %v312
  %vm366 = vweird.f32 %v360
  %vm367 = vmor %vm365, %vm366
  %v368 = vsel %vm367, %v360, %v364
  %v369 = vand.u32 2147483647, %v312
  %vm370 = vcmp.eq.f32.partialorder %v369, 8.507059e+37
  %v371 = vand.u32 %v312, 2147483648
  %v372 = vor.u32 1.1754944e-38, %v371
  %v373 = vsel %vm370, %v372, %v368
  %v374 = vmul.f32 1.0, %v373
  %v375 = vrcp.pop %v313
  %v376 = vmul.f32 %v313, %v375
  %v377 = vsub.f32 1.0, %v376
  %v378 = vmul.f32 %v375, %v377
  %v379 = vadd.f32 %v375, %v378
  %vm380 = vweird.f32 %v313
  %vm381 = vweird.f32 %v375
  %vm382 = vmor %vm380, %vm381
  %v383 = vsel %vm382, %v375, %v379
  %v384 = vand.u32 2147483647, %v313
  %vm385 = vcmp.eq.f32.partialorder %v384, 8.507059e+37
  %v386 = vand.u32 %v313, 2147483648
  %v387 = vor.u32 1.1754944e-38, %v386
  %v388 = vsel %vm385, %v387, %v383
  %v389 = vmul.f32 1.0, %v388
  %v390 = vrcp.pop %v314
  %v391 = vmul.f32 %v314, %v390
  %v392 = vsub.f32 1.0, %v391
  %v393 = vmul.f32 %v390, %v392
  %v394 = vadd.f32 %v390, %v393
  %vm395 = vweird.f32 %v314
  %vm396 = vweird.f32 %v390
  %vm397 = vmor %vm395, %vm396
  %v398 = vsel %vm397, %v390, %v394
  %v399 = vand.u32 2147483647, %v314
  %vm400 = vcmp.eq.f32.partialorder %v399, 8.507059e+37
  %v401 = vand.u32 %v314, 2147483648
  %v402 = vor.u32 1.1754944e-38, %v401
  %v403 = vsel %vm400, %v402, %v398
  %v404 = vmul.f32 1.0, %v403
  %v405 = vmul.f32 %v271, %v329
  %v406 = vmul.f32 %v273, %v344
  %v407 = vmul.f32 %v276, %v359
  %v408 = vmul.f32 %v278, %v374
  %v409 = vmul.f32 %v281, %v389
  %v410 = vmul.f32 %v283, %v404
  %v411 = vpack.c.bf16 %v405, %v405
  %v412 = vpack.c.bf16 %v406, %v406
  %v413 = vpack.c.bf16 %v407, %v407
  %v414 = vpack.c.bf16 %v408, %v408
  %v415 = vpack.c.bf16 %v409, %v409
  %v416 = vpack.c.bf16 %v410, %v410
  %417 = vst [vmem:[%s5] sm:$0xf] %v411
  %418 = vst [vmem:[%s5 + $0x4] sm:$0xf] %v412
  %419 = vst [vmem:[%s5 + $0x8] sm:$0xf] %v413
  %420 = vst [vmem:[%s5 + $0xc] sm:$0xf] %v414
  %421 = vst [vmem:[%s5 + $0x10] sm:$0xf] %v415
  %422 = vst [vmem:[%s5 + $0x14] sm:$0xf] %v416
  // Predicated region
  $region26: #{vision_transformer_forward.15} parent=0 // pred_check
    _
  $region27: #{vision_transformer_forward.15} parent=0 // pred_check_branch
    %424 = sbr.rel (0) target = $region29
  $region28: #{vision_transformer_forward.15} parent=0 // pred_region
    _
  $region29: #{vision_transformer_forward.15} parent=0 // pred_fallthru
    _
  // Predicated region
  $region30: #{vision_transformer_forward.15} parent=0 // pred_check
    _
  $region31: #{vision_transformer_forward.15} parent=0 // pred_check_branch
    %426 = sbr.rel (0) target = $region33
  $region32: #{vision_transformer_forward.15} parent=0 // pred_region
    _
  $region33: #{vision_transformer_forward.15} parent=0 // pred_fallthru
    _

// kernel: vision_transformer_forward.16
$region0: #{vision_transformer_forward.16}
  #allocation0 [shape = 'u32[]', space=smem, size = 0x4, offset = 0x4, fixed_abs, tag = 'smem constant byte address 0x4 - core index']
  #allocation1 [shape = 'u32[72,128]{1,0:T(1,128)}', space=vmem, size = 0x9000, scoped, tag = 'internal scratch']
  #allocation2 [shape = 'f32[48,128]{1,0:T(8,128)}', space=vmem, size = 0x6000, scoped, tag = 'scratch operand']
  %s0 = inlined_call_operand.vmem [shape: bf16[48,128], index: 0, kind: input, shape index: {}]
  %s1 = inlined_call_operand.vmem [shape: bf16[128,128], index: 1, kind: input, shape index: {}]
  %s2 = inlined_call_operand.vmem [shape: f32[1,128], index: 2, kind: input, shape index: {}]
  %s3 = inlined_call_operand.vmem [shape: bf16[48,128], index: 3, kind: input, shape index: {}]
  %s4 = inlined_call_operand.vmem [shape: bf16[48,128], index: 4, kind: output, shape index: {}]
  %s5 = sld [smem:[#allocation0]]
  $region34: #{vision_transformer_forward.16} parent=0
    _
  %s7 = ssub.s32 1, %s5
  %s8 = scalar_select 0, %s7, %s5
  // Predicated region
  $region2: #{vision_transformer_forward.16} parent=0 // pred_check
    _
  $region3: #{vision_transformer_forward.16} parent=0 // pred_check_branch
    %10 = sbr.rel (0) target = $region5
  $region4: #{vision_transformer_forward.16} parent=0 // pred_region
    _
  $region5: #{vision_transformer_forward.16} parent=0 // pred_fallthru
    _
  // Predicated region
  $region6: #{vision_transformer_forward.16} parent=0 // pred_check
    _
  $region7: #{vision_transformer_forward.16} parent=0 // pred_check_branch
    %12 = sbr.rel (0) target = $region9
  $region8: #{vision_transformer_forward.16} parent=0 // pred_region
    _
  $region9: #{vision_transformer_forward.16} parent=0 // pred_fallthru
    _
  // Predicated region
  $region10: #{vision_transformer_forward.16} parent=0 // pred_check
    _
  $region11: #{vision_transformer_forward.16} parent=0 // pred_check_branch
    %14 = sbr.rel (0) target = $region13
  $region12: #{vision_transformer_forward.16} parent=0 // pred_region
    _
  $region13: #{vision_transformer_forward.16} parent=0 // pred_fallthru
    _
  // Predicated region
  $region14: #{vision_transformer_forward.16} parent=0 // pred_check
    _
  $region15: #{vision_transformer_forward.16} parent=0 // pred_check_branch
    %16 = sbr.rel (0) target = $region17
  $region16: #{vision_transformer_forward.16} parent=0 // pred_region
    _
  $region17: #{vision_transformer_forward.16} parent=0 // pred_fallthru
    _
  %p17 = scmp.eq.s32.totalorder 0, 0
  // Predicated region
  $region18: #{vision_transformer_forward.16} parent=0 // pred_check
    %p18 = pneg %p17
  $region19: #{vision_transformer_forward.16} parent=0 // pred_check_branch
    %20 = sbr.rel (%p18) target = $region21
  $region20: #{vision_transformer_forward.16} parent=0 // pred_region
    %21 = vst [vmem:[#allocation2] sm:$0xff] 0.0
    %22 = vst [vmem:[#allocation2 + $0x8] sm:$0xff] 0.0
    %23 = vst [vmem:[#allocation2 + $0x10] sm:$0xff] 0.0
    %24 = vst [vmem:[#allocation2 + $0x18] sm:$0xff] 0.0
    %25 = vst [vmem:[#allocation2 + $0x20] sm:$0xff] 0.0
    %26 = vst [vmem:[#allocation2 + $0x28] sm:$0xff] 0.0
  $region21: #{vision_transformer_forward.16} parent=0 // pred_fallthru
    _
  %v27 = vld [vmem:[#allocation2] sm:$0xff]
  %v28 = vld [vmem:[#allocation2 + $0x8] sm:$0xff]
  %v29 = vld [vmem:[#allocation2 + $0x10] sm:$0xff]
  %v30 = vld [vmem:[#allocation2 + $0x18] sm:$0xff]
  %v31 = vld [vmem:[#allocation2 + $0x20] sm:$0xff]
  %v32 = vld [vmem:[#allocation2 + $0x28] sm:$0xff]
  %v33 = vld [vmem:[%s0] sm:$0xf]
  %v34 = vld [vmem:[%s0 + $0x4] sm:$0xf]
  %v35 = vld [vmem:[%s0 + $0x8] sm:$0xf]
  %v36 = vld [vmem:[%s0 + $0xc] sm:$0xf]
  %v37 = vld [vmem:[%s0 + $0x10] sm:$0xf]
  %v38 = vld [vmem:[%s0 + $0x14] sm:$0xf]
  %v39 = vld [vmem:[%s1] sm:$0xf]
  %v40 = vld [vmem:[%s1 + $0x4] sm:$0xf]
  %v41 = vld [vmem:[%s1 + $0x8] sm:$0xf]
  %v42 = vld [vmem:[%s1 + $0xc] sm:$0xf]
  %v43 = vld [vmem:[%s1 + $0x10] sm:$0xf]
  %v44 = vld [vmem:[%s1 + $0x14] sm:$0xf]
  %v45 = vld [vmem:[%s1 + $0x18] sm:$0xf]
  %v46 = vld [vmem:[%s1 + $0x1c] sm:$0xf]
  %v47 = vld [vmem:[%s1 + $0x20] sm:$0xf]
  %v48 = vld [vmem:[%s1 + $0x24] sm:$0xf]
  %v49 = vld [vmem:[%s1 + $0x28] sm:$0xf]
  %v50 = vld [vmem:[%s1 + $0x2c] sm:$0xf]
  %v51 = vld [vmem:[%s1 + $0x30] sm:$0xf]
  %v52 = vld [vmem:[%s1 + $0x34] sm:$0xf]
  %v53 = vld [vmem:[%s1 + $0x38] sm:$0xf]
  %v54 = vld [vmem:[%s1 + $0x3c] sm:$0xf]
  %v61 = vunpack.c.l.b16 %v33
  %v62 = vunpack.c.l.b16 %v34
  %v63 = vunpack.c.l.b16 %v35
  %v64 = vunpack.c.l.b16 %v36
  %v65 = vunpack.c.l.b16 %v37
  %v66 = vunpack.c.l.b16 %v38
  %v67 = vpack.c.b16 %v62, %v61
  %v68 = vpack.c.b16 %v64, %v63
  %v69 = vpack.c.b16 %v66, %v65
  %v89 = vunpack.c.l.b16 %v39
  %v90 = vunpack.c.l.b16 %v40
  %v91 = vunpack.c.l.b16 %v41
  %v92 = vunpack.c.l.b16 %v42
  %v93 = vunpack.c.l.b16 %v43
  %v94 = vunpack.c.l.b16 %v44
  %v95 = vunpack.c.l.b16 %v45
  %v96 = vunpack.c.l.b16 %v46
  %v97 = vunpack.c.l.b16 %v47
  %v98 = vunpack.c.l.b16 %v48
  %v99 = vunpack.c.l.b16 %v49
  %v100 = vunpack.c.l.b16 %v50
  %v101 = vunpack.c.l.b16 %v51
  %v102 = vunpack.c.l.b16 %v52
  %v103 = vunpack.c.l.b16 %v53
  %v104 = vunpack.c.l.b16 %v54
  %v105 = vpack.c.b16 %v90, %v89
  %v106 = vpack.c.b16 %v92, %v91
  %v107 = vpack.c.b16 %v94, %v93
  %v108 = vpack.c.b16 %v96, %v95
  %v109 = vpack.c.b16 %v98, %v97
  %v110 = vpack.c.b16 %v100, %v99
  %v111 = vpack.c.b16 %v102, %v101
  %v112 = vpack.c.b16 %v104, %v103
  %121 = vmatpush.bf16.msra.mxu0 %v112
  %122 = vmatpush.bf16.msra.mxu0 %v111
  %123 = vmatpush.bf16.msra.mxu0 %v110
  %124 = vmatpush.bf16.msra.mxu0 %v109
  %125 = vmatpush.bf16.msra.mxu0 %v108
  %126 = vmatpush.bf16.msra.mxu0 %v107
  %127 = vmatpush.bf16.msra.mxu0 %v106
  %128 = vmatpush.bf16.msra.mxu0 %v105
  %129 = vmatmul.bf16.gmra.mxu0 %v67
  %v130 = vpop.f32.mrf.mxu0
  %v131 = vadd.f32 0.0, %v130
  %v132 = vpop.f32.mrf.mxu0
  %v133 = vadd.f32 0.0, %v132
  %134 = vmatmul.bf16.gmra.mxu0 %v68
  %v135 = vpop.f32.mrf.mxu0
  %v136 = vadd.f32 0.0, %v135
  %v137 = vpop.f32.mrf.mxu0
  %v138 = vadd.f32 0.0, %v137
  %139 = vmatmul.bf16.gmra.mxu0 %v69
  %v140 = vpop.f32.mrf.mxu0
  %v141 = vadd.f32 0.0, %v140
  %v142 = vpop.f32.mrf.mxu0
  %v143 = vadd.f32 0.0, %v142
  %144 = vdwg.mxu0
  %v145 = vadd.f32 %v27, %v131
  %v146 = vadd.f32 %v28, %v133
  %v147 = vadd.f32 %v29, %v136
  %v148 = vadd.f32 %v30, %v138
  %v149 = vadd.f32 %v31, %v141
  %v150 = vadd.f32 %v32, %v143
  %151 = vst [vmem:[#allocation2] sm:$0xff] %v145
  %152 = vst [vmem:[#allocation2 + $0x8] sm:$0xff] %v146
  %153 = vst [vmem:[#allocation2 + $0x10] sm:$0xff] %v147
  %154 = vst [vmem:[#allocation2 + $0x18] sm:$0xff] %v148
  %155 = vst [vmem:[#allocation2 + $0x20] sm:$0xff] %v149
  %156 = vst [vmem:[#allocation2 + $0x28] sm:$0xff] %v150
  // Predicated region
  $region22: #{vision_transformer_forward.16} parent=0 // pred_check
    %p157 = pneg %p17
  $region23: #{vision_transformer_forward.16} parent=0 // pred_check_branch
    %159 = sbr.rel (%p157) target = $region25
  $region24: #{vision_transformer_forward.16} parent=0 // pred_region
    %v160 = vld [vmem:[#allocation2] sm:$0xff]
    %v161 = vld [vmem:[#allocation2 + $0x8] sm:$0xff]
    %v162 = vld [vmem:[#allocation2 + $0x10] sm:$0xff]
    %v163 = vld [vmem:[#allocation2 + $0x18] sm:$0xff]
    %v164 = vld [vmem:[#allocation2 + $0x20] sm:$0xff]
    %v165 = vld [vmem:[#allocation2 + $0x28] sm:$0xff]
    %v166 = vld [vmem:[%s2] sm:$0x1]
    %v168 = vperm.slane %v166, 0
    %v170 = vadd.f32 %v160, %v168
    %v171 = vadd.f32 %v161, %v168
    %v172 = vadd.f32 %v162, %v168
    %v173 = vadd.f32 %v163, %v168
    %v174 = vadd.f32 %v164, %v168
    %v175 = vadd.f32 %v165, %v168
    %v176 = vld [vmem:[%s3] sm:$0xf]
    %v177 = vld [vmem:[%s3 + $0x4] sm:$0xf]
    %v178 = vld [vmem:[%s3 + $0x8] sm:$0xf]
    %v179 = vld [vmem:[%s3 + $0xc] sm:$0xf]
    %v180 = vld [vmem:[%s3 + $0x10] sm:$0xf]
    %v181 = vld [vmem:[%s3 + $0x14] sm:$0xf]
    %v182 = vunpack.c.l.bf16 %v176
    %v183 = vunpack.c.l.bf16 %v177
    %v184 = vunpack.c.l.bf16 %v178
    %v185 = vunpack.c.l.bf16 %v179
    %v186 = vunpack.c.l.bf16 %v180
    %v187 = vunpack.c.l.bf16 %v181
    %v188 = vadd.f32 %v170, %v182
    %v189 = vadd.f32 %v171, %v183
    %v190 = vadd.f32 %v172, %v184
    %v191 = vadd.f32 %v173, %v185
    %v192 = vadd.f32 %v174, %v186
    %v193 = vadd.f32 %v175, %v187
    %v194 = vpack.c.bf16 %v188, %v188
    %v195 = vpack.c.bf16 %v189, %v189
    %v196 = vpack.c.bf16 %v190, %v190
    %v197 = vpack.c.bf16 %v191, %v191
    %v198 = vpack.c.bf16 %v192, %v192
    %v199 = vpack.c.bf16 %v193, %v193
    %200 = vst [vmem:[%s4] sm:$0xf] %v194
    %201 = vst [vmem:[%s4 + $0x4] sm:$0xf] %v195
    %202 = vst [vmem:[%s4 + $0x8] sm:$0xf] %v196
    %203 = vst [vmem:[%s4 + $0xc] sm:$0xf] %v197
    %204 = vst [vmem:[%s4 + $0x10] sm:$0xf] %v198
    %205 = vst [vmem:[%s4 + $0x14] sm:$0xf] %v199
  $region25: #{vision_transformer_forward.16} parent=0 // pred_fallthru
    _
  // Predicated region
  $region26: #{vision_transformer_forward.16} parent=0 // pred_check
    _
  $region27: #{vision_transformer_forward.16} parent=0 // pred_check_branch
    %207 = sbr.rel (0) target = $region29
  $region28: #{vision_transformer_forward.16} parent=0 // pred_region
    _
  $region29: #{vision_transformer_forward.16} parent=0 // pred_fallthru
    _
  // Predicated region
  $region30: #{vision_transformer_forward.16} parent=0 // pred_check
    _
  $region31: #{vision_transformer_forward.16} parent=0 // pred_check_branch
    %209 = sbr.rel (0) target = $region33
  $region32: #{vision_transformer_forward.16} parent=0 // pred_region
    _
  $region33: #{vision_transformer_forward.16} parent=0 // pred_fallthru
    _

// kernel: vision_transformer_forward.21
$region0: #{vision_transformer_forward.21}
  #allocation0 [shape = 'u32[]', space=smem, size = 0x4, offset = 0x4, fixed_abs, tag = 'smem constant byte address 0x4 - core index']
  #allocation1 [shape = 'u32[72,128]{1,0:T(1,128)}', space=vmem, size = 0x9000, scoped, tag = 'internal scratch']
  #allocation2 [shape = 'bf16[8,32]{1,0:T(8,128)(2,1)}', space=vmem, size = 0x800, scoped, tag = 'scratch operand']
  %s0 = inlined_call_operand.vmem [shape: bf16[8,32], index: 0, kind: input, shape index: {}]
  %s1 = inlined_call_operand.vmem [shape: f32[1,32], index: 1, kind: input, shape index: {}]
  %s2 = inlined_call_operand.vmem [shape: f32[1,32], index: 2, kind: input, shape index: {}]
  %s3 = inlined_call_operand.vmem [shape: bf16[32,128], index: 3, kind: input, shape index: {}]
  %s4 = inlined_call_operand.vmem [shape: f32[8,128], index: 4, kind: output, shape index: {}]
  %s5 = sld [smem:[#allocation0]]
  $region30: #{vision_transformer_forward.21} parent=0
    _
  %s7 = ssub.s32 1, %s5
  %s8 = scalar_select 0, %s7, %s5
  // Predicated region
  $region2: #{vision_transformer_forward.21} parent=0 // pred_check
    _
  $region3: #{vision_transformer_forward.21} parent=0 // pred_check_branch
    %10 = sbr.rel (0) target = $region5
  $region4: #{vision_transformer_forward.21} parent=0 // pred_region
    _
  $region5: #{vision_transformer_forward.21} parent=0 // pred_fallthru
    _
  // Predicated region
  $region6: #{vision_transformer_forward.21} parent=0 // pred_check
    _
  $region7: #{vision_transformer_forward.21} parent=0 // pred_check_branch
    %12 = sbr.rel (0) target = $region9
  $region8: #{vision_transformer_forward.21} parent=0 // pred_region
    _
  $region9: #{vision_transformer_forward.21} parent=0 // pred_fallthru
    _
  // Predicated region
  $region10: #{vision_transformer_forward.21} parent=0 // pred_check
    _
  $region11: #{vision_transformer_forward.21} parent=0 // pred_check_branch
    %14 = sbr.rel (0) target = $region13
  $region12: #{vision_transformer_forward.21} parent=0 // pred_region
    _
  $region13: #{vision_transformer_forward.21} parent=0 // pred_fallthru
    _
  // Predicated region
  $region14: #{vision_transformer_forward.21} parent=0 // pred_check
    _
  $region15: #{vision_transformer_forward.21} parent=0 // pred_check_branch
    %16 = sbr.rel (0) target = $region17
  $region16: #{vision_transformer_forward.21} parent=0 // pred_region
    _
  $region17: #{vision_transformer_forward.21} parent=0 // pred_fallthru
    _
  %p18 = scmp.eq.s32.totalorder 0, 0
  // Predicated region
  $region18: #{vision_transformer_forward.21} parent=0 // pred_check
    %p19 = pneg %p18
  $region19: #{vision_transformer_forward.21} parent=0 // pred_check_branch
    %21 = sbr.rel (%p19) target = $region21
  $region20: #{vision_transformer_forward.21} parent=0 // pred_region
    %v22 = vld [vmem:[%s0] sm:$0xf]
    %v23 = vunpack.c.l.bf16 %v22
    %vm24 = vcmask 261120
    %v25 = vsel %vm24, %v23, 0.0
    %26 = vadd.xlane.f32.xlu0 %v25
    %v27 = vpop.xlane.xlu0 %26
    %v28 = vrcp.pop 32.0
    %v29 = vmul.f32 32.0, %v28
    %v30 = vsub.f32 1.0, %v29
    %v31 = vmul.f32 %v28, %v30
    %v32 = vadd.f32 %v28, %v31
    %vm33 = vweird.f32 %v28
    %v34 = vsel %vm33, %v28, %v32
    %v35 = vmul.f32 %v27, %v34
    %v36 = vsub.f32 %v23, %v35
    %v37 = vmul.f32 %v36, %v36
    %v38 = vsel %vm24, %v37, 0.0
    %39 = vadd.xlane.f32.xlu0 %v38
    %v40 = vpop.xlane.xlu0 %39
    %v41 = vmul.f32 %v40, %v34
    %v42 = vadd.f32 %v41, 1e-05
    %v43 = vrsqrt.pop %v42
    %v44 = vmul.f32 %v43, %v42
    %v45 = vmul.f32 %v44, %v43
    %v46 = vmul.f32 0.5, %v45
    %v47 = vsub.f32 1.5, %v46
    %v48 = vmul.f32 %v43, %v47
    %vm49 = vweird.f32 %v42
    %vm50 = vweird.f32 %v43
    %vm51 = vmor %vm49, %vm50
    %v52 = vsel %vm51, %v43, %v48
    %v53 = vmul.f32 %v36, %v52
    %v54 = vld [vmem:[%s1] sm:$0x1]
    %v56 = vperm.slane %v54, 0
    %v58 = vmul.f32 %v53, %v56
    %v59 = vld [vmem:[%s2] sm:$0x1]
    %v61 = vperm.slane %v59, 0
    %v63 = vadd.f32 %v58, %v61
    %v64 = vpack.c.bf16 %v63, %v63
    %vm65 = vcmask 257024
    %66 = vst.msk [vmem:[#allocation2] sm:$0xf] %vm65, %v64
  $region21: #{vision_transformer_forward.21} parent=0 // pred_fallthru
    _
  %v67 = vld [vmem:[#allocation2] sm:$0xf]
  %v68 = vld [vmem:[%s3] sm:$0xf]
  %v69 = vld [vmem:[%s3 + $0x4] sm:$0xf]
  %v70 = vld [vmem:[%s3 + $0x8] sm:$0xf]
  %v71 = vld [vmem:[%s3 + $0xc] sm:$0xf]
  %v76 = vunpack.c.l.b16 %v68
  %v77 = vunpack.c.l.b16 %v69
  %v78 = vunpack.c.l.b16 %v70
  %v79 = vunpack.c.l.b16 %v71
  %v80 = vpack.c.b16 %v77, %v76
  %v81 = vpack.c.b16 %v79, %v78
  %vm84 = vcmask 261120
  %v86 = vsel %vm84, %v67, 0
  %88 = vmatpush.bf16.msra.mxu0 0
  %89 = vmatpush.bf16.msra.mxu0 0
  %90 = vmatpush.bf16.msra.mxu0 0
  %91 = vmatpush.bf16.msra.mxu0 0
  %92 = vmatpush.bf16.msra.mxu0 0
  %93 = vmatpush.bf16.msra.mxu0 0
  %94 = vmatpush.bf16.msra.mxu0 %v81
  %95 = vmatpush.bf16.msra.mxu0 %v80
  %96 = vmatmul.bf16.gmra.mxu0 %v86
  %v97 = vpop.f32.mrf.mxu0
  %v98 = vadd.f32 0.0, %v97
  %v99 = vpop.f32.mrf.mxu0
  %100 = vdwg.mxu0
  %101 = vst [vmem:[%s4] sm:$0xff] %v98
  // Predicated region
  $region22: #{vision_transformer_forward.21} parent=0 // pred_check
    _
  $region23: #{vision_transformer_forward.21} parent=0 // pred_check_branch
    %103 = sbr.rel (0) target = $region25
  $region24: #{vision_transformer_forward.21} parent=0 // pred_region
    _
  $region25: #{vision_transformer_forward.21} parent=0 // pred_fallthru
    _
  // Predicated region
  $region26: #{vision_transformer_forward.21} parent=0 // pred_check
    _
  $region27: #{vision_transformer_forward.21} parent=0 // pred_check_branch
    %105 = sbr.rel (0) target = $region29
  $region28: #{vision_transformer_forward.21} parent=0 // pred_region
    _
  $region29: #{vision_transformer_forward.21} parent=0 // pred_fallthru
    _

</llo_original>
